<compile_context>
chip_gen: v7x
topology: tpu7x:2x2x1
jax: 0.10.0
libtpu: 0.0.40
codegen_flags: <defaults>
</compile_context>

<pallas_src>
import functools
import math

import jax
import jax.numpy as jnp
from jax.experimental import pallas as pl
from jax.experimental.pallas import tpu as pltpu

EPS = 1e-5          # torch LayerNorm default eps
CLAMP = 50000.0     # clamp_min_for_underflow / clamp_max_for_overflow


# ------------------------------ helpers -------------------------------------


def _layernorm(x, g, b):
    mu = jnp.mean(x, axis=-1, keepdims=True)
    var = jnp.mean((x - mu) ** 2, axis=-1, keepdims=True)
    return (x - mu) * jax.lax.rsqrt(var + EPS) * g + b


def _choose_tile_t(T, max_tile):
    """Largest tile <= max_tile that divides T (prefer a multiple of 8)."""
    if T <= max_tile:
        return T
    fallback = None
    for t in range(max_tile, 0, -1):
        if T % t == 0:
            if t % 8 == 0:
                return t
            if fallback is None:
                fallback = t
    return fallback if fallback is not None else T


def _pick_vmem_limit():
    """Per-generation scoped VMEM limit: ~75% of physical, capped at 100 MiB."""
    try:
        cap = int(pltpu.get_tpu_info().vmem_capacity_bytes)
    except Exception:
        return None  # fall back to the compiler default
    return max(32 * 1024 * 1024, min((cap * 3) // 4, 100 * 1024 * 1024))


def _const_spec(a):
    zeros = (0,) * a.ndim
    return pl.BlockSpec(a.shape, lambda b, t, _z=zeros: _z)


# ----------------------------- Pallas kernel --------------------------------


def fusion_scale_kernel(
    v_ref, ln_ref,
    lnv_g_ref, lnv_b_ref,
    plW_ref, plb_ref,
    qW_ref, qb_ref, kW_ref, kb_ref,
    vvW_ref, vvb_ref, vlW_ref, vlb_ref,
    ovW_ref, ovb_ref, olW_ref, olb_ref,
    gv_ref,
    vout_ref, dl_ref,
    m_sc, l_sc, num_sc,
    *, num_heads,
):
    f32 = jnp.float32
    bf16 = jnp.bfloat16
    t = pl.program_id(1)

    @pl.when(t == 0)
    def _init():
        m_sc[...] = jnp.full_like(m_sc, -jnp.inf)
        l_sc[...] = jnp.zeros_like(l_sc)
        num_sc[...] = jnp.zeros_like(num_sc)

    # vision LayerNorm on this T-tile (rows are independent -> tiling-safe)
    v_n = _layernorm(v_ref[0].astype(f32),
                     lnv_g_ref[...].astype(f32), lnv_b_ref[...].astype(f32))
    v_b = v_n.astype(bf16)

    # proj_l on the (tiny) text tokens; recomputed per tile (S is tiny)
    l_p = jnp.dot(ln_ref[0], plW_ref[...], preferred_element_type=f32) + plb_ref[...]
    l_b = l_p.astype(bf16)

    tT, Cv = v_n.shape
    S = l_p.shape[0]
    dn = (((1,), (1,)), ((), ()))  # contract last dims, no batch dims

    acc_v = jnp.zeros((tT, Cv), f32)  # lane-dense f32 delta_v accumulator

    for h in range(num_heads):  # static unroll over heads
        # Per-head projections slice the *weights* along their leading (head)
        # axis (lane-dense [Cv, hd] blocks) instead of lane-slicing big values.
        qh = jnp.dot(v_b, qW_ref[h], preferred_element_type=f32) + qb_ref[h]   # scale folded in
        vvh = jnp.dot(v_b, vvW_ref[h], preferred_element_type=f32) + vvb_ref[h]
        kh = jnp.dot(l_b, kW_ref[h], preferred_element_type=f32) + kb_ref[h]
        vlh = jnp.dot(l_b, vlW_ref[h], preferred_element_type=f32) + vlb_ref[h]
        qh_b, kh_b = qh.astype(bf16), kh.astype(bf16)

        # ---- vision -> text: [tT, S] scores, softmax over S (tile-local) ----
        s = jax.lax.dot_general(qh_b, kh_b, dn, preferred_element_type=f32)
        s = jnp.clip(s, -CLAMP, CLAMP)
        pv = jnp.exp(s - jnp.max(s, axis=-1, keepdims=True))
        pv = pv * pl.reciprocal(jnp.sum(pv, axis=-1, keepdims=True), approx=True)
        # TODO(synk): dropout(p=0.1) on attention probs: eval-mode identity.
        out_vh = jnp.dot(pv.astype(bf16), vlh.astype(bf16),
                         preferred_element_type=f32)                     # [tT, hd]
        acc_v = acc_v + jnp.dot(out_vh.astype(bf16), ovW_ref[h],
                                preferred_element_type=f32)              # [tT, Cv]

        # ---- text -> vision: lane-dense [S, tT] scores via a 2nd tiny MXU ----
        # matmul (not an XLU transpose); flash-style online softmax over T.
        sl = jax.lax.dot_general(kh_b, qh_b, dn, preferred_element_type=f32)
        sl = jnp.clip(sl, -CLAMP, CLAMP)
        m_prev = m_sc[h]                                                 # [S, 1]
        m_new = jnp.maximum(m_prev, jnp.max(sl, axis=-1, keepdims=True))
        alpha = jnp.exp(m_prev - m_new)
        p = jnp.exp(sl - m_new)                                          # [S, tT]
        l_sc[h] = alpha * l_sc[h] + jnp.sum(p, axis=-1, keepdims=True)
        num_sc[h] = alpha * num_sc[h] + jnp.dot(p.astype(bf16), vvh.astype(bf16),
                                                preferred_element_type=f32)
        m_sc[h] = m_new

    # vision output for this tile: v_n + gamma_v * out_v_proj(attn_output_v)
    delta_v = acc_v + ovb_ref[...]
    vout_ref[0] = (v_n + gv_ref[...].astype(f32) * delta_v).astype(vout_ref.dtype)

    # text delta: finalize once after the last T tile
    @pl.when(t == pl.num_programs(1) - 1)
    def _finalize():
        dl = jnp.zeros((S, Cv), jnp.float32)
        for h in range(num_heads):
            ah = num_sc[h] * pl.reciprocal(l_sc[h], approx=True)         # [S, hd]
            dl = dl + jnp.dot(ah.astype(jnp.bfloat16), olW_ref[h],
                              preferred_element_type=jnp.float32)
        dl_ref[0] = (dl + olb_ref[...]).astype(dl_ref.dtype)


# ------------------------------ wrappers -------------------------------------

PACKED_ORDER = [
    "lnv_g", "lnv_b",
    "plW", "plb",
    "qW", "qb", "kW", "kb",
    "vvW", "vvb", "vlW", "vlb",
    "ovW", "ovb", "olW", "olb",
    "gv",
]


def pack_scale_params(p, num_heads):
    """Pre-split projection weights per head (leading head axis, lane-dense
    [Cv, hd] / [hd, Cv] blocks), fold the attention scale into qW AND qb,
    and cast matmul weights to bf16 (biases stay f32)."""
    bf16 = jnp.bfloat16
    Cv = p["vW"].shape[1]
    hd = Cv // num_heads
    scale = hd ** (-0.5)

    def cols_per_head(w):   # [Cin, Cv] -> [H, Cin, hd]
        cin = w.shape[0]
        return jnp.transpose(w.reshape(cin, num_heads, hd), (1, 0, 2))

    def bias_per_head(b):   # [1, Cv] -> [H, 1, hd]
        return jnp.transpose(b.reshape(1, num_heads, hd), (1, 0, 2))

    def rows_per_head(w):   # [Cv, Cout] -> [H, hd, Cout]
        return w.reshape(num_heads, hd, w.shape[1])

    return dict(
        lnv_g=p["lnv_g"], lnv_b=p["lnv_b"],
        plW=p["plW"].astype(bf16), plb=p["plb"],
        qW=(cols_per_head(p["vW"]) * scale).astype(bf16),
        qb=bias_per_head(p["vb"]) * scale,
        kW=cols_per_head(p["lW"]).astype(bf16), kb=bias_per_head(p["lb"]),
        vvW=cols_per_head(p["vvW"]).astype(bf16), vvb=bias_per_head(p["vvb"]),
        vlW=cols_per_head(p["vlW"]).astype(bf16), vlb=bias_per_head(p["vlb"]),
        ovW=rows_per_head(p["ovW"]).astype(bf16), ovb=p["ovb"],
        olW=rows_per_head(p["olW"]).astype(bf16), olb=p["olb"],
        gv=p["gv"],
    )


def run_scale(v_btc, l_n, pp, num_heads, *, tile_t_max=512, vmem_limit_bytes=None):
    """One fused scale: vision LN + BiMultiHeadAttention + gamma_v residual.

    v_btc : [B, T, Cv] bf16, l_n : [B, S, Ld] bf16 (text already LayerNormed).
    Returns (v_out [B,T,Cv] bf16, delta_l [B,S,Cv] bf16).
    """
    B, T, Cv = v_btc.shape
    S, Ld = l_n.shape[1], l_n.shape[2]
    hd = Cv // num_heads
    tile_t = _choose_tile_t(T, tile_t_max)
    n_t = T // tile_t

    param_arrays = [pp[k] for k in PACKED_ORDER]
    in_specs = [
        pl.BlockSpec((1, tile_t, Cv), lambda b, t: (b, t, 0)),
        pl.BlockSpec((1, S, Ld), lambda b, t: (b, 0, 0)),
    ] + [_const_spec(a) for a in param_arrays]
    out_specs = [
        pl.BlockSpec((1, tile_t, Cv), lambda b, t: (b, t, 0)),
        pl.BlockSpec((1, S, Cv), lambda b, t: (b, 0, 0)),   # resident over T
    ]
    out_shape = (
        jax.ShapeDtypeStruct((B, T, Cv), jnp.bfloat16),
        jax.ShapeDtypeStruct((B, S, Cv), jnp.bfloat16),
    )
    kern = functools.partial(fusion_scale_kernel, num_heads=num_heads)
    return pl.pallas_call(
        kern,
        out_shape=out_shape,
        grid=(B, n_t),
        in_specs=in_specs,
        out_specs=out_specs,
        scratch_shapes=[
            pltpu.VMEM((num_heads, S, 1), jnp.float32),    # running max  (per head)
            pltpu.VMEM((num_heads, S, 1), jnp.float32),    # running sum  (per head)
            pltpu.VMEM((num_heads, S, hd), jnp.float32),   # delta_l numerator
        ],
        compiler_params=pltpu.CompilerParams(
            dimension_semantics=("parallel", "arbitrary"),
            vmem_limit_bytes=vmem_limit_bytes,
        ),
    )(v_btc, l_n, *param_arrays)


# --------------------------- parameter creation ------------------------------


def _xavier(key, fan_in, fan_out):
    a = math.sqrt(6.0 / (fan_in + fan_out))
    return jax.random.uniform(key, (fan_in, fan_out), jnp.float32, -a, a)


def make_scale_params(key, Cv, Ld, init_values):
    # NOTE: torch inits the attention projection biases to 0; we use small
    # non-zero biases so the bias code path is actually exercised by the test
    # (the reference uses the same values, so semantics are unchanged).
    ks = jax.random.split(key, 16)
    z = lambda k: 0.02 * jax.random.normal(k, (1, Cv), jnp.float32)
    p = {}
    p["lnv_g"] = 1.0 + 0.1 * jax.random.normal(ks[0], (1, Cv), jnp.float32)
    p["lnv_b"] = 0.1 * jax.random.normal(ks[1], (1, Cv), jnp.float32)
    p["plW"] = _xavier(ks[2], Ld, Cv)
    p["plb"] = 0.05 * jax.random.normal(ks[3], (1, Cv), jnp.float32)
    p["vW"] = _xavier(ks[4], Cv, Cv); p["vb"] = z(ks[10])
    p["lW"] = _xavier(ks[5], Cv, Cv); p["lb"] = z(ks[11])
    p["vvW"] = _xavier(ks[6], Cv, Cv); p["vvb"] = z(ks[12])
    p["vlW"] = _xavier(ks[7], Cv, Cv); p["vlb"] = z(ks[13])
    p["ovW"] = _xavier(ks[8], Cv, Cv); p["ovb"] = z(ks[14])
    p["olW"] = _xavier(ks[9], Cv, Cv); p["olb"] = z(ks[15])
    p["gv"] = init_values * jnp.ones((1, Cv), jnp.float32)
    return p


def make_shared_params(key, Ld, sum_v, init_values):
    ks = jax.random.split(key, 4)
    return dict(
        lnl_g=1.0 + 0.1 * jax.random.normal(ks[0], (1, Ld), jnp.float32),
        lnl_b=0.1 * jax.random.normal(ks[1], (1, Ld), jnp.float32),
        fW=_xavier(ks[2], sum_v, Ld),
        fb=0.05 * jax.random.normal(ks[3], (1, Ld), jnp.float32),
        gl=init_values * jnp.ones((1, Ld), jnp.float32),
    )


# ---------------------------- pure-JAX reference -----------------------------


def _ref_bi_attn(v, l, p, num_heads):
    B, T, C = v.shape
    S = l.shape[1]
    hd = C // num_heads
    scale = hd ** (-0.5)
    q = (v @ p["vW"] + p["vb"]) * scale
    k = l @ p["lW"] + p["lb"]
    vv = v @ p["vvW"] + p["vvb"]
    vl = l @ p["vlW"] + p["vlb"]

    def heads(x, L):
        return x.reshape(B, L, num_heads, hd).transpose(0, 2, 1, 3)

    qh, kh, vvh, vlh = heads(q, T), heads(k, S), heads(vv, T), heads(vl, S)
    aw = jnp.einsum("bhtd,bhsd->bhts", qh, kh)
    aw = jnp.clip(aw, -CLAMP, CLAMP)
    awT = jnp.swapaxes(aw, -1, -2)
    awl = awT - jnp.max(awT, -1, keepdims=True)
    awl = jnp.clip(awl, -CLAMP, CLAMP)
    awl = jax.nn.softmax(awl, -1)
    awv = jax.nn.softmax(aw, -1)
    ov = jnp.einsum("bhts,bhsd->bhtd", awv, vlh).transpose(0, 2, 1, 3).reshape(B, T, C)
    ol = jnp.einsum("bhst,bhtd->bhsd", awl, vvh).transpose(0, 2, 1, 3).reshape(B, S, C)
    return ov @ p["ovW"] + p["ovb"], ol @ p["olW"] + p["olb"]


def reference_forward(img_feats, text, scale_params, shared, num_heads):
    l_n = _layernorm(text, shared["lnl_g"], shared["lnl_b"])
    vs, dls = [], []
    for i, x in enumerate(img_feats):
        B, C, H, W = x.shape
        p = scale_params[i]
        v = jnp.transpose(x.reshape(B, C, H * W), (0, 2, 1))
        v_n = _layernorm(v, p["lnv_g"], p["lnv_b"])
        l_p = l_n @ p["plW"] + p["plb"]
        dv, dl = _ref_bi_attn(v_n, l_p, p, num_heads)
        v_new = v_n + p["gv"] * dv
        vs.append(jnp.transpose(v_new, (0, 2, 1)).reshape(B, C, H, W))
        dls.append(dl)
    dl_cat = jnp.concatenate(dls, -1)
    t_out = text + shared["gl"] * (dl_cat @ shared["fW"] + shared["fb"])
    return vs, t_out


# ---------------------------------- main --------------------------------------

if __name__ == "__main__":
    key = jax.random.PRNGKey(0)
    B, S, l_dim, num_heads = 2, 8, 32, 2
    v_dims = [32, 64]      # img_channel (per-scale channel dims)
    spatials = [8, 4]      # H = W per scale
    # The module default is 1e-4; use 1.0 here so the delta paths are actually
    # exercised by the correctness check (not ~1e-4-scale perturbations).
    init_values = 1.0

    k_inp, k_par = jax.random.split(key)
    ki = jax.random.split(k_inp, len(v_dims) + 1)
    img_feats = [
        jax.random.normal(ki[i], (B, v_dims[i], spatials[i], spatials[i]), jnp.float32)
        for i in range(len(v_dims))
    ]
    text_feats = jax.random.normal(ki[-1], (B, S, l_dim), jnp.float32)

    kp = jax.random.split(k_par, len(v_dims) + 1)
    shared = make_shared_params(kp[-1], l_dim, sum(v_dims), init_values)
    scale_params = [make_scale_params(kp[i], v_dims[i], l_dim, init_values)
                    for i in range(len(v_dims))]

    vmem_limit = _pick_vmem_limit()

    # text LayerNorm once in plain XLA (S=8, Ld=32 is below one vreg of work;
    # review: fold the tiny LN kernel away) -> bf16 kernel input.
    l_n_bf16 = _layernorm(text_feats, shared["lnl_g"], shared["lnl_b"]).astype(jnp.bfloat16)

    vs_out, dls = [], []
    for i, x in enumerate(img_feats):
        Bx, C, H, W = x.shape
        v_btc = jnp.transpose(x.reshape(Bx, C, H * W), (0, 2, 1)).astype(jnp.bfloat16)
        packed = pack_scale_params(scale_params[i], num_heads)
        # tile_t_max=32 keeps the test tiny AND exercises the multi-tile online
        # accumulation path (scale 0: T=64 -> 2 tiles); use ~512 at real sizes.
        v_out, dl = run_scale(v_btc, l_n_bf16, packed, num_heads,
                              tile_t_max=32, vmem_limit_bytes=vmem_limit)
        vs_out.append(
            jnp.transpose(v_out.astype(jnp.float32), (0, 2, 1)).reshape(Bx, C, H, W))
        dls.append(dl)

    # final text fusion in plain XLA (tiny): text + gamma_l * final_proj_l(cat(dl))
    dl_cat = jnp.concatenate(dls, axis=-1).astype(jnp.float32)
    text_out = text_feats + shared["gl"] * (dl_cat @ shared["fW"] + shared["fb"])

    jax.block_until_ready(text_out)
    for v in vs_out:
        jax.block_until_ready(v)

    # ---- correctness vs pure-f32 reference ----
    # Tolerance 3e-2 covers the bf16-MXU / bf16-HBM-I/O / approx-reciprocal
    # precision budget; with init_values=1.0 a structural error in the delta
    # paths would produce O(0.1-1) deviations and fail this check.
    vs_ref, text_ref = reference_forward(img_feats, text_feats, scale_params,
                                         shared, num_heads)
    for a, r in zip(vs_out, vs_ref):
        err = float(jnp.max(jnp.abs(a - r)))
        assert jnp.allclose(a, r, rtol=3e-2, atol=3e-2), f"vision max err {err}"
    err = float(jnp.max(jnp.abs(text_out - text_ref)))
    assert jnp.allclose(text_out, text_ref, rtol=3e-2, atol=3e-2), f"text max err {err}"

    print("KERNEL_OK")
</pallas_src>

<mosaic_0001>
module attributes {stable_mosaic.version = 11 : i64} {
  func.func @fusion_scale_kernel(%arg0: i32, %arg1: i32, %arg2: memref<1x32x32xbf16, #tpu.memory_space<vmem>>, %arg3: memref<1x8x32xbf16, #tpu.memory_space<vmem>>, %arg4: memref<1x32xf32, #tpu.memory_space<vmem>>, %arg5: memref<1x32xf32, #tpu.memory_space<vmem>>, %arg6: memref<32x32xbf16, #tpu.memory_space<vmem>>, %arg7: memref<1x32xf32, #tpu.memory_space<vmem>>, %arg8: memref<2x32x16xbf16, #tpu.memory_space<vmem>>, %arg9: memref<2x1x16xf32, #tpu.memory_space<vmem>>, %arg10: memref<2x32x16xbf16, #tpu.memory_space<vmem>>, %arg11: memref<2x1x16xf32, #tpu.memory_space<vmem>>, %arg12: memref<2x32x16xbf16, #tpu.memory_space<vmem>>, %arg13: memref<2x1x16xf32, #tpu.memory_space<vmem>>, %arg14: memref<2x32x16xbf16, #tpu.memory_space<vmem>>, %arg15: memref<2x1x16xf32, #tpu.memory_space<vmem>>, %arg16: memref<2x16x32xbf16, #tpu.memory_space<vmem>>, %arg17: memref<1x32xf32, #tpu.memory_space<vmem>>, %arg18: memref<2x16x32xbf16, #tpu.memory_space<vmem>>, %arg19: memref<1x32xf32, #tpu.memory_space<vmem>>, %arg20: memref<1x32xf32, #tpu.memory_space<vmem>>, %arg21: memref<1x32x32xbf16, #tpu.memory_space<vmem>>, %arg22: memref<1x8x32xbf16, #tpu.memory_space<vmem>>, %arg23: memref<2x8x1xf32, #tpu.memory_space<vmem>>, %arg24: memref<2x8x1xf32, #tpu.memory_space<vmem>>, %arg25: memref<2x8x16xf32, #tpu.memory_space<vmem>>) attributes {dimension_semantics = [#tpu.dimension_semantics<parallel>, #tpu.dimension_semantics<arbitrary>], iteration_bounds = array<i64: 2, 2>, scalar_prefetch = 0 : i64, scratch_operands = 3 : i64, tpu.core_type = #tpu.core_type<tc>, window_params = [{transform_indices = @transform_0, window_bounds = array<i64: 1, 32, 32>}, {transform_indices = @transform_1, window_bounds = array<i64: 1, 8, 32>}, {pipeline_mode = #tpu.pipeline_mode<synchronous>, transform_indices = @transform_2, window_bounds = array<i64: 1, 32>}, {pipeline_mode = #tpu.pipeline_mode<synchronous>, transform_indices = @transform_3, window_bounds = array<i64: 1, 32>}, {pipeline_mode = #tpu.pipeline_mode<synchronous>, transform_indices = @transform_4, window_bounds = array<i64: 32, 32>}, {pipeline_mode = #tpu.pipeline_mode<synchronous>, transform_indices = @transform_5, window_bounds = array<i64: 1, 32>}, {pipeline_mode = #tpu.pipeline_mode<synchronous>, transform_indices = @transform_6, window_bounds = array<i64: 2, 32, 16>}, {pipeline_mode = #tpu.pipeline_mode<synchronous>, transform_indices = @transform_7, window_bounds = array<i64: 2, 1, 16>}, {pipeline_mode = #tpu.pipeline_mode<synchronous>, transform_indices = @transform_8, window_bounds = array<i64: 2, 32, 16>}, {pipeline_mode = #tpu.pipeline_mode<synchronous>, transform_indices = @transform_9, window_bounds = array<i64: 2, 1, 16>}, {pipeline_mode = #tpu.pipeline_mode<synchronous>, transform_indices = @transform_10, window_bounds = array<i64: 2, 32, 16>}, {pipeline_mode = #tpu.pipeline_mode<synchronous>, transform_indices = @transform_11, window_bounds = array<i64: 2, 1, 16>}, {pipeline_mode = #tpu.pipeline_mode<synchronous>, transform_indices = @transform_12, window_bounds = array<i64: 2, 32, 16>}, {pipeline_mode = #tpu.pipeline_mode<synchronous>, transform_indices = @transform_13, window_bounds = array<i64: 2, 1, 16>}, {pipeline_mode = #tpu.pipeline_mode<synchronous>, transform_indices = @transform_14, window_bounds = array<i64: 2, 16, 32>}, {pipeline_mode = #tpu.pipeline_mode<synchronous>, transform_indices = @transform_15, window_bounds = array<i64: 1, 32>}, {pipeline_mode = #tpu.pipeline_mode<synchronous>, transform_indices = @transform_16, window_bounds = array<i64: 2, 16, 32>}, {pipeline_mode = #tpu.pipeline_mode<synchronous>, transform_indices = @transform_17, window_bounds = array<i64: 1, 32>}, {pipeline_mode = #tpu.pipeline_mode<synchronous>, transform_indices = @transform_18, window_bounds = array<i64: 1, 32>}, {transform_indices = @transform_19, window_bounds = array<i64: 1, 32, 32>}, {transform_indices = @transform_20, window_bounds = array<i64: 1, 8, 32>}]} {
    %c0_i32 = arith.constant 0 : i32
    %0 = arith.cmpi eq, %arg1, %c0_i32 : i32
    %1 = arith.extui %0 : i1 to i32
    %c0_i32_0 = arith.constant 0 : i32
    %2 = arith.cmpi ne, %1, %c0_i32_0 : i32
    scf.if %2 {
      %cst_151 = arith.constant 0xFF800000 : f32
      %236 = vector.broadcast %cst_151 : f32 to vector<2x8x1xf32>
      %c0_152 = arith.constant 0 : index
      %c0_153 = arith.constant 0 : index
      %c0_154 = arith.constant 0 : index
      %237 = vector.load %arg23[%c0_152, %c0_153, %c0_154] : memref<2x8x1xf32, #tpu.memory_space<vmem>>, vector<2x8x1xf32>
      tpu.vector_store %arg23[%c0_152, %c0_153, %c0_154], %236 {strides = array<i32>} : memref<2x8x1xf32, #tpu.memory_space<vmem>>, vector<2x8x1xf32>,
      %cst_155 = arith.constant 0.000000e+00 : f32
      %238 = vector.broadcast %cst_155 : f32 to vector<2x8x1xf32>
      %c0_156 = arith.constant 0 : index
      %c0_157 = arith.constant 0 : index
      %c0_158 = arith.constant 0 : index
      %239 = vector.load %arg24[%c0_156, %c0_157, %c0_158] : memref<2x8x1xf32, #tpu.memory_space<vmem>>, vector<2x8x1xf32>
      tpu.vector_store %arg24[%c0_156, %c0_157, %c0_158], %238 {strides = array<i32>} : memref<2x8x1xf32, #tpu.memory_space<vmem>>, vector<2x8x1xf32>,
      %cst_159 = arith.constant 0.000000e+00 : f32
      %240 = vector.broadcast %cst_159 : f32 to vector<2x8x16xf32>
      %c0_160 = arith.constant 0 : index
      %c0_161 = arith.constant 0 : index
      %c0_162 = arith.constant 0 : index
      %241 = vector.load %arg25[%c0_160, %c0_161, %c0_162] : memref<2x8x16xf32, #tpu.memory_space<vmem>>, vector<2x8x16xf32>
      tpu.vector_store %arg25[%c0_160, %c0_161, %c0_162], %240 {strides = array<i32>} : memref<2x8x16xf32, #tpu.memory_space<vmem>>, vector<2x8x16xf32>,
    } else {
    }
    %c0 = arith.constant 0 : index
    %c0_1 = arith.constant 0 : index
    %c0_2 = arith.constant 0 : index
    %3 = vector.load %arg2[%c0, %c0_1, %c0_2] : memref<1x32x32xbf16, #tpu.memory_space<vmem>>, vector<1x32x32xbf16>
    %4 = vector.shape_cast %3 : vector<1x32x32xbf16> to vector<32x32xbf16>
    %5 = arith.extf %4 : vector<32x32xbf16> to vector<32x32xf32>
    %c0_3 = arith.constant 0 : index
    %c0_4 = arith.constant 0 : index
    %6 = vector.load %arg4[%c0_3, %c0_4] : memref<1x32xf32, #tpu.memory_space<vmem>>, vector<1x32xf32>
    %c0_5 = arith.constant 0 : index
    %c0_6 = arith.constant 0 : index
    %7 = vector.load %arg5[%c0_5, %c0_6] : memref<1x32xf32, #tpu.memory_space<vmem>>, vector<1x32xf32>
    %cst = arith.constant dense<0.000000e+00> : vector<32xf32>
    %8 = vector.multi_reduction <add>, %5, %cst [1] : vector<32x32xf32> to vector<32xf32>
    %9 = vector.shape_cast %8 : vector<32xf32> to vector<32x1xf32>
    %cst_7 = arith.constant 3.200000e+01 : f32
    %10 = vector.broadcast %cst_7 : f32 to vector<32x1xf32>
    %11 = arith.divf %9, %10 : vector<32x1xf32>
    %12 = vector.broadcast %11 : vector<32x1xf32> to vector<32x32xf32>
    %13 = arith.subf %5, %12 : vector<32x32xf32>
    %14 = arith.mulf %13, %13 : vector<32x32xf32>
    %cst_8 = arith.constant dense<0.000000e+00> : vector<32xf32>
    %15 = vector.multi_reduction <add>, %14, %cst_8 [1] : vector<32x32xf32> to vector<32xf32>
    %16 = vector.shape_cast %15 : vector<32xf32> to vector<32x1xf32>
    %cst_9 = arith.constant 3.200000e+01 : f32
    %17 = vector.broadcast %cst_9 : f32 to vector<32x1xf32>
    %18 = arith.divf %16, %17 : vector<32x1xf32>
    %19 = vector.broadcast %11 : vector<32x1xf32> to vector<32x32xf32>
    %20 = arith.subf %5, %19 : vector<32x32xf32>
    %cst_10 = arith.constant 9.99999974E-6 : f32
    %21 = vector.broadcast %cst_10 : f32 to vector<32x1xf32>
    %22 = arith.addf %18, %21 : vector<32x1xf32>
    %23 = math.rsqrt %22 : vector<32x1xf32>
    %24 = vector.broadcast %23 : vector<32x1xf32> to vector<32x32xf32>
    %25 = arith.mulf %20, %24 : vector<32x32xf32>
    %26 = vector.broadcast %6 : vector<1x32xf32> to vector<32x32xf32>
    %27 = arith.mulf %25, %26 : vector<32x32xf32>
    %28 = vector.broadcast %7 : vector<1x32xf32> to vector<32x32xf32>
    %29 = arith.addf %27, %28 : vector<32x32xf32>
    %30 = arith.truncf %29 : vector<32x32xf32> to vector<32x32xbf16>
    %c0_11 = arith.constant 0 : index
    %c0_12 = arith.constant 0 : index
    %c0_13 = arith.constant 0 : index
    %31 = vector.load %arg3[%c0_11, %c0_12, %c0_13] : memref<1x8x32xbf16, #tpu.memory_space<vmem>>, vector<1x8x32xbf16>
    %32 = vector.shape_cast %31 : vector<1x8x32xbf16> to vector<8x32xbf16>
    %c0_14 = arith.constant 0 : index
    %c0_15 = arith.constant 0 : index
    %33 = vector.load %arg6[%c0_14, %c0_15] : memref<32x32xbf16, #tpu.memory_space<vmem>>, vector<32x32xbf16>
    %cst_16 = arith.constant dense<0.000000e+00> : vector<8x32xf32>
    %34 = tpu.matmul %32, %33, %cst_16 {dimension_numbers = #tpu.dot_dimension_numbers<[1], [0], [0], [1], [0, 0, 1, 1], [], []>} : vector<8x32xbf16>, vector<32x32xbf16>, vector<8x32xf32> -> vector<8x32xf32>
    %c0_17 = arith.constant 0 : index
    %c0_18 = arith.constant 0 : index
    %35 = vector.load %arg7[%c0_17, %c0_18] : memref<1x32xf32, #tpu.memory_space<vmem>>, vector<1x32xf32>
    %36 = vector.broadcast %35 : vector<1x32xf32> to vector<8x32xf32>
    %37 = arith.addf %34, %36 : vector<8x32xf32>
    %38 = arith.truncf %37 : vector<8x32xf32> to vector<8x32xbf16>
    %cst_19 = arith.constant 0.000000e+00 : f32
    %39 = vector.broadcast %cst_19 : f32 to vector<32x32xf32>
    %c0_20 = arith.constant 0 : index
    %c0_21 = arith.constant 0 : index
    %c0_22 = arith.constant 0 : index
    %40 = vector.load %arg8[%c0_20, %c0_21, %c0_22] : memref<2x32x16xbf16, #tpu.memory_space<vmem>>, vector<1x32x16xbf16>
    %41 = vector.shape_cast %40 : vector<1x32x16xbf16> to vector<32x16xbf16>
    %cst_23 = arith.constant dense<0.000000e+00> : vector<32x16xf32>
    %42 = tpu.matmul %30, %41, %cst_23 {dimension_numbers = #tpu.dot_dimension_numbers<[1], [0], [0], [1], [0, 0, 1, 1], [], []>} : vector<32x32xbf16>, vector<32x16xbf16>, vector<32x16xf32> -> vector<32x16xf32>
    %c0_24 = arith.constant 0 : index
    %c0_25 = arith.constant 0 : index
    %c0_26 = arith.constant 0 : index
    %43 = vector.load %arg9[%c0_24, %c0_25, %c0_26] : memref<2x1x16xf32, #tpu.memory_space<vmem>>, vector<1x1x16xf32>
    %44 = vector.shape_cast %43 : vector<1x1x16xf32> to vector<1x16xf32>
    %45 = vector.broadcast %44 : vector<1x16xf32> to vector<32x16xf32>
    %46 = arith.addf %42, %45 : vector<32x16xf32>
    %c0_27 = arith.constant 0 : index
    %c0_28 = arith.constant 0 : index
    %c0_29 = arith.constant 0 : index
    %47 = vector.load %arg12[%c0_27, %c0_28, %c0_29] : memref<2x32x16xbf16, #tpu.memory_space<vmem>>, vector<1x32x16xbf16>
    %48 = vector.shape_cast %47 : vector<1x32x16xbf16> to vector<32x16xbf16>
    %cst_30 = arith.constant dense<0.000000e+00> : vector<32x16xf32>
    %49 = tpu.matmul %30, %48, %cst_30 {dimension_numbers = #tpu.dot_dimension_numbers<[1], [0], [0], [1], [0, 0, 1, 1], [], []>} : vector<32x32xbf16>, vector<32x16xbf16>, vector<32x16xf32> -> vector<32x16xf32>
    %c0_31 = arith.constant 0 : index
    %c0_32 = arith.constant 0 : index
    %c0_33 = arith.constant 0 : index
    %50 = vector.load %arg13[%c0_31, %c0_32, %c0_33] : memref<2x1x16xf32, #tpu.memory_space<vmem>>, vector<1x1x16xf32>
    %51 = vector.shape_cast %50 : vector<1x1x16xf32> to vector<1x16xf32>
    %52 = vector.broadcast %51 : vector<1x16xf32> to vector<32x16xf32>
    %53 = arith.addf %49, %52 : vector<32x16xf32>
    %c0_34 = arith.constant 0 : index
    %c0_35 = arith.constant 0 : index
    %c0_36 = arith.constant 0 : index
    %54 = vector.load %arg10[%c0_34, %c0_35, %c0_36] : memref<2x32x16xbf16, #tpu.memory_space<vmem>>, vector<1x32x16xbf16>
    %55 = vector.shape_cast %54 : vector<1x32x16xbf16> to vector<32x16xbf16>
    %cst_37 = arith.constant dense<0.000000e+00> : vector<8x16xf32>
    %56 = tpu.matmul %38, %55, %cst_37 {dimension_numbers = #tpu.dot_dimension_numbers<[1], [0], [0], [1], [0, 0, 1, 1], [], []>} : vector<8x32xbf16>, vector<32x16xbf16>, vector<8x16xf32> -> vector<8x16xf32>
    %c0_38 = arith.constant 0 : index
    %c0_39 = arith.constant 0 : index
    %c0_40 = arith.constant 0 : index
    %57 = vector.load %arg11[%c0_38, %c0_39, %c0_40] : memref<2x1x16xf32, #tpu.memory_space<vmem>>, vector<1x1x16xf32>
    %58 = vector.shape_cast %57 : vector<1x1x16xf32> to vector<1x16xf32>
    %59 = vector.broadcast %58 : vector<1x16xf32> to vector<8x16xf32>
    %60 = arith.addf %56, %59 : vector<8x16xf32>
    %c0_41 = arith.constant 0 : index
    %c0_42 = arith.constant 0 : index
    %c0_43 = arith.constant 0 : index
    %61 = vector.load %arg14[%c0_41, %c0_42, %c0_43] : memref<2x32x16xbf16, #tpu.memory_space<vmem>>, vector<1x32x16xbf16>
    %62 = vector.shape_cast %61 : vector<1x32x16xbf16> to vector<32x16xbf16>
    %cst_44 = arith.constant dense<0.000000e+00> : vector<8x16xf32>
    %63 = tpu.matmul %38, %62, %cst_44 {dimension_numbers = #tpu.dot_dimension_numbers<[1], [0], [0], [1], [0, 0, 1, 1], [], []>} : vector<8x32xbf16>, vector<32x16xbf16>, vector<8x16xf32> -> vector<8x16xf32>
    %c0_45 = arith.constant 0 : index
    %c0_46 = arith.constant 0 : index
    %c0_47 = arith.constant 0 : index
    %64 = vector.load %arg15[%c0_45, %c0_46, %c0_47] : memref<2x1x16xf32, #tpu.memory_space<vmem>>, vector<1x1x16xf32>
    %65 = vector.shape_cast %64 : vector<1x1x16xf32> to vector<1x16xf32>
    %66 = vector.broadcast %65 : vector<1x16xf32> to vector<8x16xf32>
    %67 = arith.addf %63, %66 : vector<8x16xf32>
    %68 = arith.truncf %46 : vector<32x16xf32> to vector<32x16xbf16>
    %69 = arith.truncf %60 : vector<8x16xf32> to vector<8x16xbf16>
    %cst_48 = arith.constant dense<0.000000e+00> : vector<32x8xf32>
    %70 = tpu.matmul %68, %69, %cst_48 {dimension_numbers = #tpu.dot_dimension_numbers<[1], [1], [0], [0], [0, 0, 1, 0], [], []>} : vector<32x16xbf16>, vector<8x16xbf16>, vector<32x8xf32> -> vector<32x8xf32>
    %cst_49 = arith.constant -5.000000e+04 : f32
    %cst_50 = arith.constant 5.000000e+04 : f32
    %71 = vector.broadcast %cst_49 : f32 to vector<32x8xf32>
    %72 = arith.maximumf %71, %70 : vector<32x8xf32>
    %73 = vector.broadcast %cst_50 : f32 to vector<32x8xf32>
    %74 = arith.minimumf %73, %72 : vector<32x8xf32>
    %cst_51 = arith.constant dense<0xFF800000> : vector<32xf32>
    %75 = vector.multi_reduction <maximumf>, %74, %cst_51 [1] : vector<32x8xf32> to vector<32xf32>
    %76 = vector.shape_cast %75 : vector<32xf32> to vector<32x1xf32>
    %77 = vector.broadcast %76 : vector<32x1xf32> to vector<32x8xf32>
    %78 = arith.subf %74, %77 : vector<32x8xf32>
    %79 = math.exp %78 : vector<32x8xf32>
    %cst_52 = arith.constant dense<0.000000e+00> : vector<32xf32>
    %80 = vector.multi_reduction <add>, %79, %cst_52 [1] : vector<32x8xf32> to vector<32xf32>
    %81 = vector.shape_cast %80 : vector<32xf32> to vector<32x1xf32>
    %82 = tpu.reciprocal %81 {approx = true} : vector<32x1xf32> -> vector<32x1xf32>
    %83 = vector.broadcast %82 : vector<32x1xf32> to vector<32x8xf32>
    %84 = arith.mulf %79, %83 : vector<32x8xf32>
    %85 = arith.truncf %84 : vector<32x8xf32> to vector<32x8xbf16>
    %86 = arith.truncf %67 : vector<8x16xf32> to vector<8x16xbf16>
    %cst_53 = arith.constant dense<0.000000e+00> : vector<32x16xf32>
    %87 = tpu.matmul %85, %86, %cst_53 {dimension_numbers = #tpu.dot_dimension_numbers<[1], [0], [0], [1], [0, 0, 1, 1], [], []>} : vector<32x8xbf16>, vector<8x16xbf16>, vector<32x16xf32> -> vector<32x16xf32>
    %88 = arith.truncf %87 : vector<32x16xf32> to vector<32x16xbf16>
    %c0_54 = arith.constant 0 : index
    %c0_55 = arith.constant 0 : index
    %c0_56 = arith.constant 0 : index
    %89 = vector.load %arg16[%c0_54, %c0_55, %c0_56] : memref<2x16x32xbf16, #tpu.memory_space<vmem>>, vector<1x16x32xbf16>
    %90 = vector.shape_cast %89 : vector<1x16x32xbf16> to vector<16x32xbf16>
    %cst_57 = arith.constant dense<0.000000e+00> : vector<32x32xf32>
    %91 = tpu.matmul %88, %90, %cst_57 {dimension_numbers = #tpu.dot_dimension_numbers<[1], [0], [0], [1], [0, 0, 1, 1], [], []>} : vector<32x16xbf16>, vector<16x32xbf16>, vector<32x32xf32> -> vector<32x32xf32>
    %92 = arith.addf %39, %91 : vector<32x32xf32>
    %cst_58 = arith.constant dense<0.000000e+00> : vector<8x32xf32>
    %93 = tpu.matmul %69, %68, %cst_58 {dimension_numbers = #tpu.dot_dimension_numbers<[1], [1], [0], [0], [0, 0, 1, 0], [], []>} : vector<8x16xbf16>, vector<32x16xbf16>, vector<8x32xf32> -> vector<8x32xf32>
    %cst_59 = arith.constant -5.000000e+04 : f32
    %cst_60 = arith.constant 5.000000e+04 : f32
    %94 = vector.broadcast %cst_59 : f32 to vector<8x32xf32>
    %95 = arith.maximumf %94, %93 : vector<8x32xf32>
    %96 = vector.broadcast %cst_60 : f32 to vector<8x32xf32>
    %97 = arith.minimumf %96, %95 : vector<8x32xf32>
    %c0_61 = arith.constant 0 : index
    %c0_62 = arith.constant 0 : index
    %c0_63 = arith.constant 0 : index
    %98 = vector.load %arg23[%c0_61, %c0_62, %c0_63] : memref<2x8x1xf32, #tpu.memory_space<vmem>>, vector<1x8x1xf32>
    %99 = vector.shape_cast %98 : vector<1x8x1xf32> to vector<8x1xf32>
    %cst_64 = arith.constant dense<0xFF800000> : vector<8xf32>
    %100 = vector.multi_reduction <maximumf>, %97, %cst_64 [1] : vector<8x32xf32> to vector<8xf32>
    %101 = vector.shape_cast %100 : vector<8xf32> to vector<8x1xf32>
    %102 = arith.maximumf %99, %101 : vector<8x1xf32>
    %103 = arith.subf %99, %102 : vector<8x1xf32>
    %104 = math.exp %103 : vector<8x1xf32>
    %105 = vector.broadcast %102 : vector<8x1xf32> to vector<8x32xf32>
    %106 = arith.subf %97, %105 : vector<8x32xf32>
    %107 = math.exp %106 : vector<8x32xf32>
    %c0_65 = arith.constant 0 : index
    %c0_66 = arith.constant 0 : index
    %c0_67 = arith.constant 0 : index
    %108 = vector.load %arg24[%c0_65, %c0_66, %c0_67] : memref<2x8x1xf32, #tpu.memory_space<vmem>>, vector<1x8x1xf32>
    %109 = vector.shape_cast %108 : vector<1x8x1xf32> to vector<8x1xf32>
    %110 = arith.mulf %104, %109 : vector<8x1xf32>
    %cst_68 = arith.constant dense<0.000000e+00> : vector<8xf32>
    %111 = vector.multi_reduction <add>, %107, %cst_68 [1] : vector<8x32xf32> to vector<8xf32>
    %112 = vector.shape_cast %111 : vector<8xf32> to vector<8x1xf32>
    %113 = arith.addf %110, %112 : vector<8x1xf32>
    %c0_69 = arith.constant 0 : index
    %c0_70 = arith.constant 0 : index
    %c0_71 = arith.constant 0 : index
    %114 = vector.load %arg24[%c0_69, %c0_70, %c0_71] : memref<2x8x1xf32, #tpu.memory_space<vmem>>, vector<1x8x1xf32>
    %115 = vector.shape_cast %114 : vector<1x8x1xf32> to vector<8x1xf32>
    %116 = vector.shape_cast %113 : vector<8x1xf32> to vector<1x8x1xf32>
    tpu.vector_store %arg24[%c0_69, %c0_70, %c0_71], %116 {strides = array<i32>} : memref<2x8x1xf32, #tpu.memory_space<vmem>>, vector<1x8x1xf32>,
    %c0_72 = arith.constant 0 : index
    %c0_73 = arith.constant 0 : index
    %c0_74 = arith.constant 0 : index
    %117 = vector.load %arg25[%c0_72, %c0_73, %c0_74] : memref<2x8x16xf32, #tpu.memory_space<vmem>>, vector<1x8x16xf32>
    %118 = vector.shape_cast %117 : vector<1x8x16xf32> to vector<8x16xf32>
    %119 = vector.broadcast %104 : vector<8x1xf32> to vector<8x16xf32>
    %120 = arith.mulf %119, %118 : vector<8x16xf32>
    %121 = arith.truncf %107 : vector<8x32xf32> to vector<8x32xbf16>
    %122 = arith.truncf %53 : vector<32x16xf32> to vector<32x16xbf16>
    %cst_75 = arith.constant dense<0.000000e+00> : vector<8x16xf32>
    %123 = tpu.matmul %121, %122, %cst_75 {dimension_numbers = #tpu.dot_dimension_numbers<[1], [0], [0], [1], [0, 0, 1, 1], [], []>} : vector<8x32xbf16>, vector<32x16xbf16>, vector<8x16xf32> -> vector<8x16xf32>
    %124 = arith.addf %120, %123 : vector<8x16xf32>
    %c0_76 = arith.constant 0 : index
    %c0_77 = arith.constant 0 : index
    %c0_78 = arith.constant 0 : index
    %125 = vector.load %arg25[%c0_76, %c0_77, %c0_78] : memref<2x8x16xf32, #tpu.memory_space<vmem>>, vector<1x8x16xf32>
    %126 = vector.shape_cast %125 : vector<1x8x16xf32> to vector<8x16xf32>
    %127 = vector.shape_cast %124 : vector<8x16xf32> to vector<1x8x16xf32>
    tpu.vector_store %arg25[%c0_76, %c0_77, %c0_78], %127 {strides = array<i32>} : memref<2x8x16xf32, #tpu.memory_space<vmem>>, vector<1x8x16xf32>,
    %c0_79 = arith.constant 0 : index
    %c0_80 = arith.constant 0 : index
    %c0_81 = arith.constant 0 : index
    %128 = vector.load %arg23[%c0_79, %c0_80, %c0_81] : memref<2x8x1xf32, #tpu.memory_space<vmem>>, vector<1x8x1xf32>
    %129 = vector.shape_cast %128 : vector<1x8x1xf32> to vector<8x1xf32>
    %130 = vector.shape_cast %102 : vector<8x1xf32> to vector<1x8x1xf32>
    tpu.vector_store %arg23[%c0_79, %c0_80, %c0_81], %130 {strides = array<i32>} : memref<2x8x1xf32, #tpu.memory_space<vmem>>, vector<1x8x1xf32>,
    %c1 = arith.constant 1 : index
    %c0_82 = arith.constant 0 : index
    %c0_83 = arith.constant 0 : index
    %131 = vector.load %arg8[%c1, %c0_82, %c0_83] : memref<2x32x16xbf16, #tpu.memory_space<vmem>>, vector<1x32x16xbf16>
    %132 = vector.shape_cast %131 : vector<1x32x16xbf16> to vector<32x16xbf16>
    %cst_84 = arith.constant dense<0.000000e+00> : vector<32x16xf32>
    %133 = tpu.matmul %30, %132, %cst_84 {dimension_numbers = #tpu.dot_dimension_numbers<[1], [0], [0], [1], [0, 0, 1, 1], [], []>} : vector<32x32xbf16>, vector<32x16xbf16>, vector<32x16xf32> -> vector<32x16xf32>
    %c1_85 = arith.constant 1 : index
    %c0_86 = arith.constant 0 : index
    %c0_87 = arith.constant 0 : index
    %134 = vector.load %arg9[%c1_85, %c0_86, %c0_87] : memref<2x1x16xf32, #tpu.memory_space<vmem>>, vector<1x1x16xf32>
    %135 = vector.shape_cast %134 : vector<1x1x16xf32> to vector<1x16xf32>
    %136 = vector.broadcast %135 : vector<1x16xf32> to vector<32x16xf32>
    %137 = arith.addf %133, %136 : vector<32x16xf32>
    %c1_88 = arith.constant 1 : index
    %c0_89 = arith.constant 0 : index
    %c0_90 = arith.constant 0 : index
    %138 = vector.load %arg12[%c1_88, %c0_89, %c0_90] : memref<2x32x16xbf16, #tpu.memory_space<vmem>>, vector<1x32x16xbf16>
    %139 = vector.shape_cast %138 : vector<1x32x16xbf16> to vector<32x16xbf16>
    %cst_91 = arith.constant dense<0.000000e+00> : vector<32x16xf32>
    %140 = tpu.matmul %30, %139, %cst_91 {dimension_numbers = #tpu.dot_dimension_numbers<[1], [0], [0], [1], [0, 0, 1, 1], [], []>} : vector<32x32xbf16>, vector<32x16xbf16>, vector<32x16xf32> -> vector<32x16xf32>
    %c1_92 = arith.constant 1 : index
    %c0_93 = arith.constant 0 : index
    %c0_94 = arith.constant 0 : index
    %141 = vector.load %arg13[%c1_92, %c0_93, %c0_94] : memref<2x1x16xf32, #tpu.memory_space<vmem>>, vector<1x1x16xf32>
    %142 = vector.shape_cast %141 : vector<1x1x16xf32> to vector<1x16xf32>
    %143 = vector.broadcast %142 : vector<1x16xf32> to vector<32x16xf32>
    %144 = arith.addf %140, %143 : vector<32x16xf32>
    %c1_95 = arith.constant 1 : index
    %c0_96 = arith.constant 0 : index
    %c0_97 = arith.constant 0 : index
    %145 = vector.load %arg10[%c1_95, %c0_96, %c0_97] : memref<2x32x16xbf16, #tpu.memory_space<vmem>>, vector<1x32x16xbf16>
    %146 = vector.shape_cast %145 : vector<1x32x16xbf16> to vector<32x16xbf16>
    %cst_98 = arith.constant dense<0.000000e+00> : vector<8x16xf32>
    %147 = tpu.matmul %38, %146, %cst_98 {dimension_numbers = #tpu.dot_dimension_numbers<[1], [0], [0], [1], [0, 0, 1, 1], [], []>} : vector<8x32xbf16>, vector<32x16xbf16>, vector<8x16xf32> -> vector<8x16xf32>
    %c1_99 = arith.constant 1 : index
    %c0_100 = arith.constant 0 : index
    %c0_101 = arith.constant 0 : index
    %148 = vector.load %arg11[%c1_99, %c0_100, %c0_101] : memref<2x1x16xf32, #tpu.memory_space<vmem>>, vector<1x1x16xf32>
    %149 = vector.shape_cast %148 : vector<1x1x16xf32> to vector<1x16xf32>
    %150 = vector.broadcast %149 : vector<1x16xf32> to vector<8x16xf32>
    %151 = arith.addf %147, %150 : vector<8x16xf32>
    %c1_102 = arith.constant 1 : index
    %c0_103 = arith.constant 0 : index
    %c0_104 = arith.constant 0 : index
    %152 = vector.load %arg14[%c1_102, %c0_103, %c0_104] : memref<2x32x16xbf16, #tpu.memory_space<vmem>>, vector<1x32x16xbf16>
    %153 = vector.shape_cast %152 : vector<1x32x16xbf16> to vector<32x16xbf16>
    %cst_105 = arith.constant dense<0.000000e+00> : vector<8x16xf32>
    %154 = tpu.matmul %38, %153, %cst_105 {dimension_numbers = #tpu.dot_dimension_numbers<[1], [0], [0], [1], [0, 0, 1, 1], [], []>} : vector<8x32xbf16>, vector<32x16xbf16>, vector<8x16xf32> -> vector<8x16xf32>
    %c1_106 = arith.constant 1 : index
    %c0_107 = arith.constant 0 : index
    %c0_108 = arith.constant 0 : index
    %155 = vector.load %arg15[%c1_106, %c0_107, %c0_108] : memref<2x1x16xf32, #tpu.memory_space<vmem>>, vector<1x1x16xf32>
    %156 = vector.shape_cast %155 : vector<1x1x16xf32> to vector<1x16xf32>
    %157 = vector.broadcast %156 : vector<1x16xf32> to vector<8x16xf32>
    %158 = arith.addf %154, %157 : vector<8x16xf32>
    %159 = arith.truncf %137 : vector<32x16xf32> to vector<32x16xbf16>
    %160 = arith.truncf %151 : vector<8x16xf32> to vector<8x16xbf16>
    %cst_109 = arith.constant dense<0.000000e+00> : vector<32x8xf32>
    %161 = tpu.matmul %159, %160, %cst_109 {dimension_numbers = #tpu.dot_dimension_numbers<[1], [1], [0], [0], [0, 0, 1, 0], [], []>} : vector<32x16xbf16>, vector<8x16xbf16>, vector<32x8xf32> -> vector<32x8xf32>
    %cst_110 = arith.constant -5.000000e+04 : f32
    %cst_111 = arith.constant 5.000000e+04 : f32
    %162 = vector.broadcast %cst_110 : f32 to vector<32x8xf32>
    %163 = arith.maximumf %162, %161 : vector<32x8xf32>
    %164 = vector.broadcast %cst_111 : f32 to vector<32x8xf32>
    %165 = arith.minimumf %164, %163 : vector<32x8xf32>
    %cst_112 = arith.constant dense<0xFF800000> : vector<32xf32>
    %166 = vector.multi_reduction <maximumf>, %165, %cst_112 [1] : vector<32x8xf32> to vector<32xf32>
    %167 = vector.shape_cast %166 : vector<32xf32> to vector<32x1xf32>
    %168 = vector.broadcast %167 : vector<32x1xf32> to vector<32x8xf32>
    %169 = arith.subf %165, %168 : vector<32x8xf32>
    %170 = math.exp %169 : vector<32x8xf32>
    %cst_113 = arith.constant dense<0.000000e+00> : vector<32xf32>
    %171 = vector.multi_reduction <add>, %170, %cst_113 [1] : vector<32x8xf32> to vector<32xf32>
    %172 = vector.shape_cast %171 : vector<32xf32> to vector<32x1xf32>
    %173 = tpu.reciprocal %172 {approx = true} : vector<32x1xf32> -> vector<32x1xf32>
    %174 = vector.broadcast %173 : vector<32x1xf32> to vector<32x8xf32>
    %175 = arith.mulf %170, %174 : vector<32x8xf32>
    %176 = arith.truncf %175 : vector<32x8xf32> to vector<32x8xbf16>
    %177 = arith.truncf %158 : vector<8x16xf32> to vector<8x16xbf16>
    %cst_114 = arith.constant dense<0.000000e+00> : vector<32x16xf32>
    %178 = tpu.matmul %176, %177, %cst_114 {dimension_numbers = #tpu.dot_dimension_numbers<[1], [0], [0], [1], [0, 0, 1, 1], [], []>} : vector<32x8xbf16>, vector<8x16xbf16>, vector<32x16xf32> -> vector<32x16xf32>
    %179 = arith.truncf %178 : vector<32x16xf32> to vector<32x16xbf16>
    %c1_115 = arith.constant 1 : index
    %c0_116 = arith.constant 0 : index
    %c0_117 = arith.constant 0 : index
    %180 = vector.load %arg16[%c1_115, %c0_116, %c0_117] : memref<2x16x32xbf16, #tpu.memory_space<vmem>>, vector<1x16x32xbf16>
    %181 = vector.shape_cast %180 : vector<1x16x32xbf16> to vector<16x32xbf16>
    %cst_118 = arith.constant dense<0.000000e+00> : vector<32x32xf32>
    %182 = tpu.matmul %179, %181, %cst_118 {dimension_numbers = #tpu.dot_dimension_numbers<[1], [0], [0], [1], [0, 0, 1, 1], [], []>} : vector<32x16xbf16>, vector<16x32xbf16>, vector<32x32xf32> -> vector<32x32xf32>
    %183 = arith.addf %92, %182 : vector<32x32xf32>
    %cst_119 = arith.constant dense<0.000000e+00> : vector<8x32xf32>
    %184 = tpu.matmul %160, %159, %cst_119 {dimension_numbers = #tpu.dot_dimension_numbers<[1], [1], [0], [0], [0, 0, 1, 0], [], []>} : vector<8x16xbf16>, vector<32x16xbf16>, vector<8x32xf32> -> vector<8x32xf32>
    %cst_120 = arith.constant -5.000000e+04 : f32
    %cst_121 = arith.constant 5.000000e+04 : f32
    %185 = vector.broadcast %cst_120 : f32 to vector<8x32xf32>
    %186 = arith.maximumf %185, %184 : vector<8x32xf32>
    %187 = vector.broadcast %cst_121 : f32 to vector<8x32xf32>
    %188 = arith.minimumf %187, %186 : vector<8x32xf32>
    %c1_122 = arith.constant 1 : index
    %c0_123 = arith.constant 0 : index
    %c0_124 = arith.constant 0 : index
    %189 = vector.load %arg23[%c1_122, %c0_123, %c0_124] : memref<2x8x1xf32, #tpu.memory_space<vmem>>, vector<1x8x1xf32>
    %190 = vector.shape_cast %189 : vector<1x8x1xf32> to vector<8x1xf32>
    %cst_125 = arith.constant dense<0xFF800000> : vector<8xf32>
    %191 = vector.multi_reduction <maximumf>, %188, %cst_125 [1] : vector<8x32xf32> to vector<8xf32>
    %192 = vector.shape_cast %191 : vector<8xf32> to vector<8x1xf32>
    %193 = arith.maximumf %190, %192 : vector<8x1xf32>
    %194 = arith.subf %190, %193 : vector<8x1xf32>
    %195 = math.exp %194 : vector<8x1xf32>
    %196 = vector.broadcast %193 : vector<8x1xf32> to vector<8x32xf32>
    %197 = arith.subf %188, %196 : vector<8x32xf32>
    %198 = math.exp %197 : vector<8x32xf32>
    %c1_126 = arith.constant 1 : index
    %c0_127 = arith.constant 0 : index
    %c0_128 = arith.constant 0 : index
    %199 = vector.load %arg24[%c1_126, %c0_127, %c0_128] : memref<2x8x1xf32, #tpu.memory_space<vmem>>, vector<1x8x1xf32>
    %200 = vector.shape_cast %199 : vector<1x8x1xf32> to vector<8x1xf32>
    %201 = arith.mulf %195, %200 : vector<8x1xf32>
    %cst_129 = arith.constant dense<0.000000e+00> : vector<8xf32>
    %202 = vector.multi_reduction <add>, %198, %cst_129 [1] : vector<8x32xf32> to vector<8xf32>
    %203 = vector.shape_cast %202 : vector<8xf32> to vector<8x1xf32>
    %204 = arith.addf %201, %203 : vector<8x1xf32>
    %c1_130 = arith.constant 1 : index
    %c0_131 = arith.constant 0 : index
    %c0_132 = arith.constant 0 : index
    %205 = vector.load %arg24[%c1_130, %c0_131, %c0_132] : memref<2x8x1xf32, #tpu.memory_space<vmem>>, vector<1x8x1xf32>
    %206 = vector.shape_cast %205 : vector<1x8x1xf32> to vector<8x1xf32>
    %207 = vector.shape_cast %204 : vector<8x1xf32> to vector<1x8x1xf32>
    tpu.vector_store %arg24[%c1_130, %c0_131, %c0_132], %207 {strides = array<i32>} : memref<2x8x1xf32, #tpu.memory_space<vmem>>, vector<1x8x1xf32>,
    %c1_133 = arith.constant 1 : index
    %c0_134 = arith.constant 0 : index
    %c0_135 = arith.constant 0 : index
    %208 = vector.load %arg25[%c1_133, %c0_134, %c0_135] : memref<2x8x16xf32, #tpu.memory_space<vmem>>, vector<1x8x16xf32>
    %209 = vector.shape_cast %208 : vector<1x8x16xf32> to vector<8x16xf32>
    %210 = vector.broadcast %195 : vector<8x1xf32> to vector<8x16xf32>
    %211 = arith.mulf %210, %209 : vector<8x16xf32>
    %212 = arith.truncf %198 : vector<8x32xf32> to vector<8x32xbf16>
    %213 = arith.truncf %144 : vector<32x16xf32> to vector<32x16xbf16>
    %cst_136 = arith.constant dense<0.000000e+00> : vector<8x16xf32>
    %214 = tpu.matmul %212, %213, %cst_136 {dimension_numbers = #tpu.dot_dimension_numbers<[1], [0], [0], [1], [0, 0, 1, 1], [], []>} : vector<8x32xbf16>, vector<32x16xbf16>, vector<8x16xf32> -> vector<8x16xf32>
    %215 = arith.addf %211, %214 : vector<8x16xf32>
    %c1_137 = arith.constant 1 : index
    %c0_138 = arith.constant 0 : index
    %c0_139 = arith.constant 0 : index
    %216 = vector.load %arg25[%c1_137, %c0_138, %c0_139] : memref<2x8x16xf32, #tpu.memory_space<vmem>>, vector<1x8x16xf32>
    %217 = vector.shape_cast %216 : vector<1x8x16xf32> to vector<8x16xf32>
    %218 = vector.shape_cast %215 : vector<8x16xf32> to vector<1x8x16xf32>
    tpu.vector_store %arg25[%c1_137, %c0_138, %c0_139], %218 {strides = array<i32>} : memref<2x8x16xf32, #tpu.memory_space<vmem>>, vector<1x8x16xf32>,
    %c1_140 = arith.constant 1 : index
    %c0_141 = arith.constant 0 : index
    %c0_142 = arith.constant 0 : index
    %219 = vector.load %arg23[%c1_140, %c0_141, %c0_142] : memref<2x8x1xf32, #tpu.memory_space<vmem>>, vector<1x8x1xf32>
    %220 = vector.shape_cast %219 : vector<1x8x1xf32> to vector<8x1xf32>
    %221 = vector.shape_cast %193 : vector<8x1xf32> to vector<1x8x1xf32>
    tpu.vector_store %arg23[%c1_140, %c0_141, %c0_142], %221 {strides = array<i32>} : memref<2x8x1xf32, #tpu.memory_space<vmem>>, vector<1x8x1xf32>,
    %c0_143 = arith.constant 0 : index
    %c0_144 = arith.constant 0 : index
    %222 = vector.load %arg17[%c0_143, %c0_144] : memref<1x32xf32, #tpu.memory_space<vmem>>, vector<1x32xf32>
    %223 = vector.broadcast %222 : vector<1x32xf32> to vector<32x32xf32>
    %224 = arith.addf %183, %223 : vector<32x32xf32>
    %c0_145 = arith.constant 0 : index
    %c0_146 = arith.constant 0 : index
    %225 = vector.load %arg20[%c0_145, %c0_146] : memref<1x32xf32, #tpu.memory_space<vmem>>, vector<1x32xf32>
    %226 = vector.broadcast %225 : vector<1x32xf32> to vector<32x32xf32>
    %227 = arith.mulf %226, %224 : vector<32x32xf32>
    %228 = arith.addf %29, %227 : vector<32x32xf32>
    %229 = arith.truncf %228 : vector<32x32xf32> to vector<32x32xbf16>
    %c0_147 = arith.constant 0 : index
    %c0_148 = arith.constant 0 : index
    %c0_149 = arith.constant 0 : index
    %230 = vector.load %arg21[%c0_147, %c0_148, %c0_149] : memref<1x32x32xbf16, #tpu.memory_space<vmem>>, vector<1x32x32xbf16>
    %231 = vector.shape_cast %230 : vector<1x32x32xbf16> to vector<32x32xbf16>
    %232 = vector.shape_cast %229 : vector<32x32xbf16> to vector<1x32x32xbf16>
    tpu.vector_store %arg21[%c0_147, %c0_148, %c0_149], %232 {strides = array<i32>} : memref<1x32x32xbf16, #tpu.memory_space<vmem>>, vector<1x32x32xbf16>,
    %c1_i32 = arith.constant 1 : i32
    %233 = arith.cmpi eq, %arg1, %c1_i32 : i32
    %234 = arith.extui %233 : i1 to i32
    %c0_i32_150 = arith.constant 0 : i32
    %235 = arith.cmpi ne, %234, %c0_i32_150 : i32
    scf.if %235 {
      %cst_151 = arith.constant 0.000000e+00 : f32
      %236 = vector.broadcast %cst_151 : f32 to vector<8x32xf32>
      %c0_152 = arith.constant 0 : index
      %c0_153 = arith.constant 0 : index
      %c0_154 = arith.constant 0 : index
      %237 = vector.load %arg25[%c0_152, %c0_153, %c0_154] : memref<2x8x16xf32, #tpu.memory_space<vmem>>, vector<1x8x16xf32>
      %238 = vector.shape_cast %237 : vector<1x8x16xf32> to vector<8x16xf32>
      %c0_155 = arith.constant 0 : index
      %c0_156 = arith.constant 0 : index
      %c0_157 = arith.constant 0 : index
      %239 = vector.load %arg24[%c0_155, %c0_156, %c0_157] : memref<2x8x1xf32, #tpu.memory_space<vmem>>, vector<1x8x1xf32>
      %240 = vector.shape_cast %239 : vector<1x8x1xf32> to vector<8x1xf32>
      %241 = tpu.reciprocal %240 {approx = true} : vector<8x1xf32> -> vector<8x1xf32>
      %242 = vector.broadcast %241 : vector<8x1xf32> to vector<8x16xf32>
      %243 = arith.mulf %238, %242 : vector<8x16xf32>
      %244 = arith.truncf %243 : vector<8x16xf32> to vector<8x16xbf16>
      %c0_158 = arith.constant 0 : index
      %c0_159 = arith.constant 0 : index
      %c0_160 = arith.constant 0 : index
      %245 = vector.load %arg18[%c0_158, %c0_159, %c0_160] : memref<2x16x32xbf16, #tpu.memory_space<vmem>>, vector<1x16x32xbf16>
      %246 = vector.shape_cast %245 : vector<1x16x32xbf16> to vector<16x32xbf16>
      %cst_161 = arith.constant dense<0.000000e+00> : vector<8x32xf32>
      %247 = tpu.matmul %244, %246, %cst_161 {dimension_numbers = #tpu.dot_dimension_numbers<[1], [0], [0], [1], [0, 0, 1, 1], [], []>} : vector<8x16xbf16>, vector<16x32xbf16>, vector<8x32xf32> -> vector<8x32xf32>
      %248 = arith.addf %236, %247 : vector<8x32xf32>
      %c1_162 = arith.constant 1 : index
      %c0_163 = arith.constant 0 : index
      %c0_164 = arith.constant 0 : index
      %249 = vector.load %arg25[%c1_162, %c0_163, %c0_164] : memref<2x8x16xf32, #tpu.memory_space<vmem>>, vector<1x8x16xf32>
      %250 = vector.shape_cast %249 : vector<1x8x16xf32> to vector<8x16xf32>
      %c1_165 = arith.constant 1 : index
      %c0_166 = arith.constant 0 : index
      %c0_167 = arith.constant 0 : index
      %251 = vector.load %arg24[%c1_165, %c0_166, %c0_167] : memref<2x8x1xf32, #tpu.memory_space<vmem>>, vector<1x8x1xf32>
      %252 = vector.shape_cast %251 : vector<1x8x1xf32> to vector<8x1xf32>
      %253 = tpu.reciprocal %252 {approx = true} : vector<8x1xf32> -> vector<8x1xf32>
      %254 = vector.broadcast %253 : vector<8x1xf32> to vector<8x16xf32>
      %255 = arith.mulf %250, %254 : vector<8x16xf32>
      %256 = arith.truncf %255 : vector<8x16xf32> to vector<8x16xbf16>
      %c1_168 = arith.constant 1 : index
      %c0_169 = arith.constant 0 : index
      %c0_170 = arith.constant 0 : index
      %257 = vector.load %arg18[%c1_168, %c0_169, %c0_170] : memref<2x16x32xbf16, #tpu.memory_space<vmem>>, vector<1x16x32xbf16>
      %258 = vector.shape_cast %257 : vector<1x16x32xbf16> to vector<16x32xbf16>
      %cst_171 = arith.constant dense<0.000000e+00> : vector<8x32xf32>
      %259 = tpu.matmul %256, %258, %cst_171 {dimension_numbers = #tpu.dot_dimension_numbers<[1], [0], [0], [1], [0, 0, 1, 1], [], []>} : vector<8x16xbf16>, vector<16x32xbf16>, vector<8x32xf32> -> vector<8x32xf32>
      %260 = arith.addf %248, %259 : vector<8x32xf32>
      %c0_172 = arith.constant 0 : index
      %c0_173 = arith.constant 0 : index
      %261 = vector.load %arg19[%c0_172, %c0_173] : memref<1x32xf32, #tpu.memory_space<vmem>>, vector<1x32xf32>
      %262 = vector.broadcast %261 : vector<1x32xf32> to vector<8x32xf32>
      %263 = arith.addf %260, %262 : vector<8x32xf32>
      %264 = arith.truncf %263 : vector<8x32xf32> to vector<8x32xbf16>
      %c0_174 = arith.constant 0 : index
      %c0_175 = arith.constant 0 : index
      %c0_176 = arith.constant 0 : index
      %265 = vector.load %arg22[%c0_174, %c0_175, %c0_176] : memref<1x8x32xbf16, #tpu.memory_space<vmem>>, vector<1x8x32xbf16>
      %266 = vector.shape_cast %265 : vector<1x8x32xbf16> to vector<8x32xbf16>
      %267 = vector.shape_cast %264 : vector<8x32xbf16> to vector<1x8x32xbf16>
      tpu.vector_store %arg22[%c0_174, %c0_175, %c0_176], %267 {strides = array<i32>} : memref<1x8x32xbf16, #tpu.memory_space<vmem>>, vector<1x8x32xbf16>,
    } else {
    }
    return
  }
  func.func @transform_0(%arg0: i32, %arg1: i32) -> (i32, i32, i32) {
    %c0_i32 = arith.constant 0 : i32
    %c0_i32_0 = arith.constant 0 : i32
    return %arg0, %arg1, %c0_i32 : i32, i32, i32
  }
  func.func @transform_1(%arg0: i32, %arg1: i32) -> (i32, i32, i32) {
    %c0_i32 = arith.constant 0 : i32
    %c0_i32_0 = arith.constant 0 : i32
    %c0_i32_1 = arith.constant 0 : i32
    return %arg0, %c0_i32, %c0_i32_0 : i32, i32, i32
  }
  func.func @transform_2(%arg0: i32, %arg1: i32) -> (i32, i32) {
    %c0_i32 = arith.constant 0 : i32
    %c0_i32_0 = arith.constant 0 : i32
    %c0_i32_1 = arith.constant 0 : i32
    return %c0_i32, %c0_i32_0 : i32, i32
  }
  func.func @transform_3(%arg0: i32, %arg1: i32) -> (i32, i32) {
    %c0_i32 = arith.constant 0 : i32
    %c0_i32_0 = arith.constant 0 : i32
    %c0_i32_1 = arith.constant 0 : i32
    return %c0_i32, %c0_i32_0 : i32, i32
  }
  func.func @transform_4(%arg0: i32, %arg1: i32) -> (i32, i32) {
    %c0_i32 = arith.constant 0 : i32
    %c0_i32_0 = arith.constant 0 : i32
    %c0_i32_1 = arith.constant 0 : i32
    return %c0_i32, %c0_i32_0 : i32, i32
  }
  func.func @transform_5(%arg0: i32, %arg1: i32) -> (i32, i32) {
    %c0_i32 = arith.constant 0 : i32
    %c0_i32_0 = arith.constant 0 : i32
    %c0_i32_1 = arith.constant 0 : i32
    return %c0_i32, %c0_i32_0 : i32, i32
  }
  func.func @transform_6(%arg0: i32, %arg1: i32) -> (i32, i32, i32) {
    %c0_i32 = arith.constant 0 : i32
    %c0_i32_0 = arith.constant 0 : i32
    %c0_i32_1 = arith.constant 0 : i32
    %c0_i32_2 = arith.constant 0 : i32
    return %c0_i32, %c0_i32_0, %c0_i32_1 : i32, i32, i32
  }
  func.func @transform_7(%arg0: i32, %arg1: i32) -> (i32, i32, i32) {
    %c0_i32 = arith.constant 0 : i32
    %c0_i32_0 = arith.constant 0 : i32
    %c0_i32_1 = arith.constant 0 : i32
    %c0_i32_2 = arith.constant 0 : i32
    return %c0_i32, %c0_i32_0, %c0_i32_1 : i32, i32, i32
  }
  func.func @transform_8(%arg0: i32, %arg1: i32) -> (i32, i32, i32) {
    %c0_i32 = arith.constant 0 : i32
    %c0_i32_0 = arith.constant 0 : i32
    %c0_i32_1 = arith.constant 0 : i32
    %c0_i32_2 = arith.constant 0 : i32
    return %c0_i32, %c0_i32_0, %c0_i32_1 : i32, i32, i32
  }
  func.func @transform_9(%arg0: i32, %arg1: i32) -> (i32, i32, i32) {
    %c0_i32 = arith.constant 0 : i32
    %c0_i32_0 = arith.constant 0 : i32
    %c0_i32_1 = arith.constant 0 : i32
    %c0_i32_2 = arith.constant 0 : i32
    return %c0_i32, %c0_i32_0, %c0_i32_1 : i32, i32, i32
  }
  func.func @transform_10(%arg0: i32, %arg1: i32) -> (i32, i32, i32) {
    %c0_i32 = arith.constant 0 : i32
    %c0_i32_0 = arith.constant 0 : i32
    %c0_i32_1 = arith.constant 0 : i32
    %c0_i32_2 = arith.constant 0 : i32
    return %c0_i32, %c0_i32_0, %c0_i32_1 : i32, i32, i32
  }
  func.func @transform_11(%arg0: i32, %arg1: i32) -> (i32, i32, i32) {
    %c0_i32 = arith.constant 0 : i32
    %c0_i32_0 = arith.constant 0 : i32
    %c0_i32_1 = arith.constant 0 : i32
    %c0_i32_2 = arith.constant 0 : i32
    return %c0_i32, %c0_i32_0, %c0_i32_1 : i32, i32, i32
  }
  func.func @transform_12(%arg0: i32, %arg1: i32) -> (i32, i32, i32) {
    %c0_i32 = arith.constant 0 : i32
    %c0_i32_0 = arith.constant 0 : i32
    %c0_i32_1 = arith.constant 0 : i32
    %c0_i32_2 = arith.constant 0 : i32
    return %c0_i32, %c0_i32_0, %c0_i32_1 : i32, i32, i32
  }
  func.func @transform_13(%arg0: i32, %arg1: i32) -> (i32, i32, i32) {
    %c0_i32 = arith.constant 0 : i32
    %c0_i32_0 = arith.constant 0 : i32
    %c0_i32_1 = arith.constant 0 : i32
    %c0_i32_2 = arith.constant 0 : i32
    return %c0_i32, %c0_i32_0, %c0_i32_1 : i32, i32, i32
  }
  func.func @transform_14(%arg0: i32, %arg1: i32) -> (i32, i32, i32) {
    %c0_i32 = arith.constant 0 : i32
    %c0_i32_0 = arith.constant 0 : i32
    %c0_i32_1 = arith.constant 0 : i32
    %c0_i32_2 = arith.constant 0 : i32
    return %c0_i32, %c0_i32_0, %c0_i32_1 : i32, i32, i32
  }
  func.func @transform_15(%arg0: i32, %arg1: i32) -> (i32, i32) {
    %c0_i32 = arith.constant 0 : i32
    %c0_i32_0 = arith.constant 0 : i32
    %c0_i32_1 = arith.constant 0 : i32
    return %c0_i32, %c0_i32_0 : i32, i32
  }
  func.func @transform_16(%arg0: i32, %arg1: i32) -> (i32, i32, i32) {
    %c0_i32 = arith.constant 0 : i32
    %c0_i32_0 = arith.constant 0 : i32
    %c0_i32_1 = arith.constant 0 : i32
    %c0_i32_2 = arith.constant 0 : i32
    return %c0_i32, %c0_i32_0, %c0_i32_1 : i32, i32, i32
  }
  func.func @transform_17(%arg0: i32, %arg1: i32) -> (i32, i32) {
    %c0_i32 = arith.constant 0 : i32
    %c0_i32_0 = arith.constant 0 : i32
    %c0_i32_1 = arith.constant 0 : i32
    return %c0_i32, %c0_i32_0 : i32, i32
  }
  func.func @transform_18(%arg0: i32, %arg1: i32) -> (i32, i32) {
    %c0_i32 = arith.constant 0 : i32
    %c0_i32_0 = arith.constant 0 : i32
    %c0_i32_1 = arith.constant 0 : i32
    return %c0_i32, %c0_i32_0 : i32, i32
  }
  func.func @transform_19(%arg0: i32, %arg1: i32) -> (i32, i32, i32) {
    %c0_i32 = arith.constant 0 : i32
    %c0_i32_0 = arith.constant 0 : i32
    return %arg0, %arg1, %c0_i32 : i32, i32, i32
  }
  func.func @transform_20(%arg0: i32, %arg1: i32) -> (i32, i32, i32) {
    %c0_i32 = arith.constant 0 : i32
    %c0_i32_0 = arith.constant 0 : i32
    %c0_i32_1 = arith.constant 0 : i32
    return %arg0, %c0_i32, %c0_i32_0 : i32, i32, i32
  }
}

</mosaic_0001>

<llo_original>
// kernel: tpu_custom_call.1
$region0: #{tpu_custom_call.1}
  #allocation0 [shape = 'u32[]', space=smem, size = 0x4, offset = 0x4, fixed_abs, tag = 'smem constant byte address 0x4 - core index']
  #allocation1 [shape = 'u32[144,128]{1,0:T(1,128)}', space=vmem, size = 0x12000, scoped, tag = 'internal scratch']
  #allocation2 [shape = 'f32[2,8,1]{2,1,0:T(8,128)}', space=vmem, size = 0x2000, scoped, tag = 'scratch operand']
  #allocation3 [shape = 'f32[2,8,1]{2,1,0:T(8,128)}', space=vmem, size = 0x2000, scoped, tag = 'scratch operand']
  #allocation4 [shape = 'f32[2,8,16]{2,1,0:T(8,128)}', space=vmem, size = 0x2000, scoped, tag = 'scratch operand']
  %s0 = inlined_call_operand.vmem [shape: bf16[2,64,32], index: 0, kind: input, shape index: {}]
  %s1 = inlined_call_operand.vmem [shape: bf16[2,8,32], index: 1, kind: input, shape index: {}]
  %s2 = inlined_call_operand.vmem [shape: f32[1,32], index: 2, kind: input, shape index: {}]
  %s3 = inlined_call_operand.vmem [shape: f32[1,32], index: 3, kind: input, shape index: {}]
  %s4 = inlined_call_operand.vmem [shape: bf16[32,32], index: 4, kind: input, shape index: {}]
  %s5 = inlined_call_operand.vmem [shape: f32[1,32], index: 5, kind: input, shape index: {}]
  %s6 = inlined_call_operand.vmem [shape: bf16[2,32,16], index: 6, kind: input, shape index: {}]
  %s7 = inlined_call_operand.vmem [shape: f32[2,1,16], index: 7, kind: input, shape index: {}]
  %s8 = inlined_call_operand.vmem [shape: bf16[2,32,16], index: 8, kind: input, shape index: {}]
  %s9 = inlined_call_operand.vmem [shape: f32[2,1,16], index: 9, kind: input, shape index: {}]
  %s10 = inlined_call_operand.vmem [shape: bf16[2,32,16], index: 10, kind: input, shape index: {}]
  %s11 = inlined_call_operand.vmem [shape: f32[2,1,16], index: 11, kind: input, shape index: {}]
  %s12 = inlined_call_operand.vmem [shape: bf16[2,32,16], index: 12, kind: input, shape index: {}]
  %s13 = inlined_call_operand.vmem [shape: f32[2,1,16], index: 13, kind: input, shape index: {}]
  %s14 = inlined_call_operand.vmem [shape: bf16[2,16,32], index: 14, kind: input, shape index: {}]
  %s15 = inlined_call_operand.vmem [shape: f32[1,32], index: 15, kind: input, shape index: {}]
  %s16 = inlined_call_operand.vmem [shape: bf16[2,16,32], index: 16, kind: input, shape index: {}]
  %s17 = inlined_call_operand.vmem [shape: f32[1,32], index: 17, kind: input, shape index: {}]
  %s18 = inlined_call_operand.vmem [shape: f32[1,32], index: 18, kind: input, shape index: {}]
  %s19 = inlined_call_operand.vmem [shape: bf16[2,64,32], index: 19, kind: output, shape index: {0}]
  %s20 = inlined_call_operand.hbm [shape: bf16[2,8,32], index: 20, kind: output, shape index: {1}]
  %21 = xla_tuple %s19, %s20
  %s22 = sld [smem:[#allocation0]]
  $region125: #{tpu_custom_call.1} parent=0
    _
  %s24 = ssub.s32 1, %s22
  %s25 = scalar_select 0, %s24, %s22
  $region1: #{tpu_custom_call.1} parent=0
    #allocation5 [shape = 'u8[4096]{0}', space=vmem, size = 0x1000, scoped, tag = 'output window, operand 1']
    #allocation6 [shape = 's32[2]{0}', space=sflag, size = 0x8, scoped, tag = 'scoped memory for tpu_custom_call.1']
    %26 = vsyncpa [#allocation6], 0
    %s27 = scalar_lea.sflag [#allocation6], 1
    %28 = vsyncpa %s27, 0
    loop: start=0, step=1, limit=6
    $region2: #{tpu_custom_call.1} parent=1 // loop_pre_header
      _
    $region3: #{tpu_custom_call.1} parent=1 // loop_header
      %s30 = sphi 0, %s34
      %p31 = scmp.ge.s32.totalorder %s30, 6
      %s37 = sphi 0, %s49
      %s38 = sphi 0, %s45
      %s39 = sphi 0, %s37
      %s40 = sphi 0, %s38
      %s41 = sphi 0, %s39
      %s42 = sphi 0, %s40
      %s54 = sphi 0, %s56
      %s57 = sphi 0, %s54
      %s58 = sphi 0, %s57
      %s74 = sphi 0, %s58
      %s80 = sphi 0, %s82
      %s83 = sphi 0, %s80
      %s84 = sphi 0, %s83
      %s100 = sphi 0, %s84
      %s104 = sphi 0, %s104
      %s106 = sphi 0, %s104
      %s107 = sphi 0, %s106
      %s121 = sphi 0, %s107
      %s125 = sphi 0, %s125
      %s127 = sphi 0, %s125
      %s128 = sphi 0, %s127
      %s142 = sphi 0, %s128
      %s146 = sphi 0, %s146
      %s148 = sphi 0, %s146
      %s149 = sphi 0, %s148
      %s163 = sphi 0, %s149
      %s167 = sphi 0, %s167
      %s169 = sphi 0, %s167
      %s170 = sphi 0, %s169
      %s184 = sphi 0, %s170
      %s188 = sphi 0, %s188
      %s190 = sphi 0, %s188
      %s191 = sphi 0, %s190
      %s205 = sphi 0, %s191
      %s209 = sphi 0, %s209
      %s211 = sphi 0, %s209
      %s212 = sphi 0, %s211
      %s226 = sphi 0, %s212
      %s230 = sphi 0, %s230
      %s232 = sphi 0, %s230
      %s233 = sphi 0, %s232
      %s247 = sphi 0, %s233
      %s251 = sphi 0, %s251
      %s253 = sphi 0, %s251
      %s254 = sphi 0, %s253
      %s268 = sphi 0, %s254
      %s272 = sphi 0, %s272
      %s274 = sphi 0, %s272
      %s275 = sphi 0, %s274
      %s289 = sphi 0, %s275
      %s293 = sphi 0, %s293
      %s295 = sphi 0, %s293
      %s296 = sphi 0, %s295
      %s310 = sphi 0, %s296
      %s314 = sphi 0, %s314
      %s316 = sphi 0, %s314
      %s317 = sphi 0, %s316
      %s331 = sphi 0, %s317
      %s335 = sphi 0, %s335
      %s337 = sphi 0, %s335
      %s338 = sphi 0, %s337
      %s352 = sphi 0, %s338
      %s356 = sphi 0, %s356
      %s358 = sphi 0, %s356
      %s359 = sphi 0, %s358
      %s373 = sphi 0, %s359
      %s377 = sphi 0, %s377
      %s379 = sphi 0, %s377
      %s380 = sphi 0, %s379
      %s394 = sphi 0, %s380
      %s398 = sphi 0, %s398
      %s400 = sphi 0, %s398
      %s401 = sphi 0, %s400
      %s415 = sphi 0, %s401
      %s419 = sphi 0, %s419
      %s421 = sphi 0, %s419
      %s422 = sphi 0, %s421
      %s436 = sphi 0, %s422
      %s440 = sphi 0, %s440
      %s442 = sphi 0, %s440
      %s443 = sphi 0, %s442
      %s457 = sphi 0, %s443
      %s465 = sphi 0, %s467
      %s468 = sphi 0, %s465
      %s469 = sphi 0, %s468
      %s485 = sphi 0, %s469
      %s491 = sphi 0, %s493
      %s494 = sphi 0, %s491
      %s495 = sphi 0, %s494
      %s511 = sphi 0, %s495
    $region4: #{tpu_custom_call.1} parent=1 // loop_header_branch
      %33 = sbr.rel (%p31) target = $region8
    $region5: #{tpu_custom_call.1} parent=1 // loop_body
      %s35 = ssub.s32 %s30, 1
      %s36 = ssub.s32 %s30, 2
      %s43 = sadd.s32 1, %s38
      %p44 = scmp.ge.s32.totalorder %s43, 2
      %s45 = scalar_select %p44, 0, %s43
      %s46 = sadd.s32 1, %s37
      %s47 = scalar_select %p44, %s46, %s37
      %p48 = scmp.ge.s32.totalorder %s47, 2
      %s49 = scalar_select %p48, 0, %s47
      %s50 = ssub.s32 %s37, %s49
      %s51 = ssub.s32 %s38, %s45
      %s52 = sor.u32 %s50, %s51
      %p53 = scmp.eq.s32.totalorder %s52, 0
      %s55 = sadd.s32 %s54, 1
      %s56 = scalar_select %p53, %s54, %s55
      %p59 = pneg %p53
      %p60 = scmp.eq.s32.totalorder %s30, 3
      %p61 = por %p59, %p60
      %p62 = scmp.ne.s32.totalorder %s54, %s57
      %p63 = scmp.eq.s32.totalorder %s30, 0
      %p64 = por %p62, %p63
      %p65 = scmp.ne.s32.totalorder %s54, %s57
      %p66 = scmp.eq.s32.totalorder %s35, 3
      %p67 = por %p65, %p66
      %p68 = scmp.ne.s32.totalorder %s57, %s58
      %p69 = scmp.eq.s32.totalorder %s35, 0
      %p70 = por %p68, %p69
      %p71 = scmp.ne.s32.totalorder %s57, %s58
      %p72 = scmp.eq.s32.totalorder %s36, 3
      %p73 = por %p71, %p72
      %p75 = scmp.ne.s32.totalorder %s58, %s74
      %p76 = scmp.eq.s32.totalorder %s36, 0
      %p77 = por %p75, %p76
      %s78 = ssub.s32 %s37, %s49
      %p79 = scmp.eq.s32.totalorder %s78, 0
      %s81 = sadd.s32 %s80, 1
      %s82 = scalar_select %p79, %s80, %s81
      %p85 = pneg %p79
      %p86 = scmp.eq.s32.totalorder %s30, 3
      %p87 = por %p85, %p86
      %p88 = scmp.ne.s32.totalorder %s80, %s83
      %p89 = scmp.eq.s32.totalorder %s30, 0
      %p90 = por %p88, %p89
      %p91 = scmp.ne.s32.totalorder %s80, %s83
      %p92 = scmp.eq.s32.totalorder %s35, 3
      %p93 = por %p91, %p92
      %p94 = scmp.ne.s32.totalorder %s83, %s84
      %p95 = scmp.eq.s32.totalorder %s35, 0
      %p96 = por %p94, %p95
      %p97 = scmp.ne.s32.totalorder %s83, %s84
      %p98 = scmp.eq.s32.totalorder %s36, 3
      %p99 = por %p97, %p98
      %p101 = scmp.ne.s32.totalorder %s84, %s100
      %p102 = scmp.eq.s32.totalorder %s36, 0
      %p103 = por %p101, %p102
      %s105 = sadd.s32 %s104, 1
      %p108 = scmp.eq.s32.totalorder %s30, 3
      %p109 = scmp.ne.s32.totalorder %s104, %s106
      %p110 = scmp.eq.s32.totalorder %s30, 0
      %p111 = por %p109, %p110
      %p112 = scmp.ne.s32.totalorder %s104, %s106
      %p113 = scmp.eq.s32.totalorder %s35, 3
      %p114 = por %p112, %p113
      %p115 = scmp.ne.s32.totalorder %s106, %s107
      %p116 = scmp.eq.s32.totalorder %s35, 0
      %p117 = por %p115, %p116
      %p118 = scmp.ne.s32.totalorder %s106, %s107
      %p119 = scmp.eq.s32.totalorder %s36, 3
      %p120 = por %p118, %p119
      %p122 = scmp.ne.s32.totalorder %s107, %s121
      %p123 = scmp.eq.s32.totalorder %s36, 0
      %p124 = por %p122, %p123
      %s126 = sadd.s32 %s125, 1
      %p129 = scmp.eq.s32.totalorder %s30, 3
      %p130 = scmp.ne.s32.totalorder %s125, %s127
      %p131 = scmp.eq.s32.totalorder %s30, 0
      %p132 = por %p130, %p131
      %p133 = scmp.ne.s32.totalorder %s125, %s127
      %p134 = scmp.eq.s32.totalorder %s35, 3
      %p135 = por %p133, %p134
      %p136 = scmp.ne.s32.totalorder %s127, %s128
      %p137 = scmp.eq.s32.totalorder %s35, 0
      %p138 = por %p136, %p137
      %p139 = scmp.ne.s32.totalorder %s127, %s128
      %p140 = scmp.eq.s32.totalorder %s36, 3
      %p141 = por %p139, %p140
      %p143 = scmp.ne.s32.totalorder %s128, %s142
      %p144 = scmp.eq.s32.totalorder %s36, 0
      %p145 = por %p143, %p144
      %s147 = sadd.s32 %s146, 1
      %p150 = scmp.eq.s32.totalorder %s30, 3
      %p151 = scmp.ne.s32.totalorder %s146, %s148
      %p152 = scmp.eq.s32.totalorder %s30, 0
      %p153 = por %p151, %p152
      %p154 = scmp.ne.s32.totalorder %s146, %s148
      %p155 = scmp.eq.s32.totalorder %s35, 3
      %p156 = por %p154, %p155
      %p157 = scmp.ne.s32.totalorder %s148, %s149
      %p158 = scmp.eq.s32.totalorder %s35, 0
      %p159 = por %p157, %p158
      %p160 = scmp.ne.s32.totalorder %s148, %s149
      %p161 = scmp.eq.s32.totalorder %s36, 3
      %p162 = por %p160, %p161
      %p164 = scmp.ne.s32.totalorder %s149, %s163
      %p165 = scmp.eq.s32.totalorder %s36, 0
      %p166 = por %p164, %p165
      %s168 = sadd.s32 %s167, 1
      %p171 = scmp.eq.s32.totalorder %s30, 3
      %p172 = scmp.ne.s32.totalorder %s167, %s169
      %p173 = scmp.eq.s32.totalorder %s30, 0
      %p174 = por %p172, %p173
      %p175 = scmp.ne.s32.totalorder %s167, %s169
      %p176 = scmp.eq.s32.totalorder %s35, 3
      %p177 = por %p175, %p176
      %p178 = scmp.ne.s32.totalorder %s169, %s170
      %p179 = scmp.eq.s32.totalorder %s35, 0
      %p180 = por %p178, %p179
      %p181 = scmp.ne.s32.totalorder %s169, %s170
      %p182 = scmp.eq.s32.totalorder %s36, 3
      %p183 = por %p181, %p182
      %p185 = scmp.ne.s32.totalorder %s170, %s184
      %p186 = scmp.eq.s32.totalorder %s36, 0
      %p187 = por %p185, %p186
      %s189 = sadd.s32 %s188, 1
      %p192 = scmp.eq.s32.totalorder %s30, 3
      %p193 = scmp.ne.s32.totalorder %s188, %s190
      %p194 = scmp.eq.s32.totalorder %s30, 0
      %p195 = por %p193, %p194
      %p196 = scmp.ne.s32.totalorder %s188, %s190
      %p197 = scmp.eq.s32.totalorder %s35, 3
      %p198 = por %p196, %p197
      %p199 = scmp.ne.s32.totalorder %s190, %s191
      %p200 = scmp.eq.s32.totalorder %s35, 0
      %p201 = por %p199, %p200
      %p202 = scmp.ne.s32.totalorder %s190, %s191
      %p203 = scmp.eq.s32.totalorder %s36, 3
      %p204 = por %p202, %p203
      %p206 = scmp.ne.s32.totalorder %s191, %s205
      %p207 = scmp.eq.s32.totalorder %s36, 0
      %p208 = por %p206, %p207
      %s210 = sadd.s32 %s209, 1
      %p213 = scmp.eq.s32.totalorder %s30, 3
      %p214 = scmp.ne.s32.totalorder %s209, %s211
      %p215 = scmp.eq.s32.totalorder %s30, 0
      %p216 = por %p214, %p215
      %p217 = scmp.ne.s32.totalorder %s209, %s211
      %p218 = scmp.eq.s32.totalorder %s35, 3
      %p219 = por %p217, %p218
      %p220 = scmp.ne.s32.totalorder %s211, %s212
      %p221 = scmp.eq.s32.totalorder %s35, 0
      %p222 = por %p220, %p221
      %p223 = scmp.ne.s32.totalorder %s211, %s212
      %p224 = scmp.eq.s32.totalorder %s36, 3
      %p225 = por %p223, %p224
      %p227 = scmp.ne.s32.totalorder %s212, %s226
      %p228 = scmp.eq.s32.totalorder %s36, 0
      %p229 = por %p227, %p228
      %s231 = sadd.s32 %s230, 1
      %p234 = scmp.eq.s32.totalorder %s30, 3
      %p235 = scmp.ne.s32.totalorder %s230, %s232
      %p236 = scmp.eq.s32.totalorder %s30, 0
      %p237 = por %p235, %p236
      %p238 = scmp.ne.s32.totalorder %s230, %s232
      %p239 = scmp.eq.s32.totalorder %s35, 3
      %p240 = por %p238, %p239
      %p241 = scmp.ne.s32.totalorder %s232, %s233
      %p242 = scmp.eq.s32.totalorder %s35, 0
      %p243 = por %p241, %p242
      %p244 = scmp.ne.s32.totalorder %s232, %s233
      %p245 = scmp.eq.s32.totalorder %s36, 3
      %p246 = por %p244, %p245
      %p248 = scmp.ne.s32.totalorder %s233, %s247
      %p249 = scmp.eq.s32.totalorder %s36, 0
      %p250 = por %p248, %p249
      %s252 = sadd.s32 %s251, 1
      %p255 = scmp.eq.s32.totalorder %s30, 3
      %p256 = scmp.ne.s32.totalorder %s251, %s253
      %p257 = scmp.eq.s32.totalorder %s30, 0
      %p258 = por %p256, %p257
      %p259 = scmp.ne.s32.totalorder %s251, %s253
      %p260 = scmp.eq.s32.totalorder %s35, 3
      %p261 = por %p259, %p260
      %p262 = scmp.ne.s32.totalorder %s253, %s254
      %p263 = scmp.eq.s32.totalorder %s35, 0
      %p264 = por %p262, %p263
      %p265 = scmp.ne.s32.totalorder %s253, %s254
      %p266 = scmp.eq.s32.totalorder %s36, 3
      %p267 = por %p265, %p266
      %p269 = scmp.ne.s32.totalorder %s254, %s268
      %p270 = scmp.eq.s32.totalorder %s36, 0
      %p271 = por %p269, %p270
      %s273 = sadd.s32 %s272, 1
      %p276 = scmp.eq.s32.totalorder %s30, 3
      %p277 = scmp.ne.s32.totalorder %s272, %s274
      %p278 = scmp.eq.s32.totalorder %s30, 0
      %p279 = por %p277, %p278
      %p280 = scmp.ne.s32.totalorder %s272, %s274
      %p281 = scmp.eq.s32.totalorder %s35, 3
      %p282 = por %p280, %p281
      %p283 = scmp.ne.s32.totalorder %s274, %s275
      %p284 = scmp.eq.s32.totalorder %s35, 0
      %p285 = por %p283, %p284
      %p286 = scmp.ne.s32.totalorder %s274, %s275
      %p287 = scmp.eq.s32.totalorder %s36, 3
      %p288 = por %p286, %p287
      %p290 = scmp.ne.s32.totalorder %s275, %s289
      %p291 = scmp.eq.s32.totalorder %s36, 0
      %p292 = por %p290, %p291
      %s294 = sadd.s32 %s293, 1
      %p297 = scmp.eq.s32.totalorder %s30, 3
      %p298 = scmp.ne.s32.totalorder %s293, %s295
      %p299 = scmp.eq.s32.totalorder %s30, 0
      %p300 = por %p298, %p299
      %p301 = scmp.ne.s32.totalorder %s293, %s295
      %p302 = scmp.eq.s32.totalorder %s35, 3
      %p303 = por %p301, %p302
      %p304 = scmp.ne.s32.totalorder %s295, %s296
      %p305 = scmp.eq.s32.totalorder %s35, 0
      %p306 = por %p304, %p305
      %p307 = scmp.ne.s32.totalorder %s295, %s296
      %p308 = scmp.eq.s32.totalorder %s36, 3
      %p309 = por %p307, %p308
      %p311 = scmp.ne.s32.totalorder %s296, %s310
      %p312 = scmp.eq.s32.totalorder %s36, 0
      %p313 = por %p311, %p312
      %s315 = sadd.s32 %s314, 1
      %p318 = scmp.eq.s32.totalorder %s30, 3
      %p319 = scmp.ne.s32.totalorder %s314, %s316
      %p320 = scmp.eq.s32.totalorder %s30, 0
      %p321 = por %p319, %p320
      %p322 = scmp.ne.s32.totalorder %s314, %s316
      %p323 = scmp.eq.s32.totalorder %s35, 3
      %p324 = por %p322, %p323
      %p325 = scmp.ne.s32.totalorder %s316, %s317
      %p326 = scmp.eq.s32.totalorder %s35, 0
      %p327 = por %p325, %p326
      %p328 = scmp.ne.s32.totalorder %s316, %s317
      %p329 = scmp.eq.s32.totalorder %s36, 3
      %p330 = por %p328, %p329
      %p332 = scmp.ne.s32.totalorder %s317, %s331
      %p333 = scmp.eq.s32.totalorder %s36, 0
      %p334 = por %p332, %p333
      %s336 = sadd.s32 %s335, 1
      %p339 = scmp.eq.s32.totalorder %s30, 3
      %p340 = scmp.ne.s32.totalorder %s335, %s337
      %p341 = scmp.eq.s32.totalorder %s30, 0
      %p342 = por %p340, %p341
      %p343 = scmp.ne.s32.totalorder %s335, %s337
      %p344 = scmp.eq.s32.totalorder %s35, 3
      %p345 = por %p343, %p344
      %p346 = scmp.ne.s32.totalorder %s337, %s338
      %p347 = scmp.eq.s32.totalorder %s35, 0
      %p348 = por %p346, %p347
      %p349 = scmp.ne.s32.totalorder %s337, %s338
      %p350 = scmp.eq.s32.totalorder %s36, 3
      %p351 = por %p349, %p350
      %p353 = scmp.ne.s32.totalorder %s338, %s352
      %p354 = scmp.eq.s32.totalorder %s36, 0
      %p355 = por %p353, %p354
      %s357 = sadd.s32 %s356, 1
      %p360 = scmp.eq.s32.totalorder %s30, 3
      %p361 = scmp.ne.s32.totalorder %s356, %s358
      %p362 = scmp.eq.s32.totalorder %s30, 0
      %p363 = por %p361, %p362
      %p364 = scmp.ne.s32.totalorder %s356, %s358
      %p365 = scmp.eq.s32.totalorder %s35, 3
      %p366 = por %p364, %p365
      %p367 = scmp.ne.s32.totalorder %s358, %s359
      %p368 = scmp.eq.s32.totalorder %s35, 0
      %p369 = por %p367, %p368
      %p370 = scmp.ne.s32.totalorder %s358, %s359
      %p371 = scmp.eq.s32.totalorder %s36, 3
      %p372 = por %p370, %p371
      %p374 = scmp.ne.s32.totalorder %s359, %s373
      %p375 = scmp.eq.s32.totalorder %s36, 0
      %p376 = por %p374, %p375
      %s378 = sadd.s32 %s377, 1
      %p381 = scmp.eq.s32.totalorder %s30, 3
      %p382 = scmp.ne.s32.totalorder %s377, %s379
      %p383 = scmp.eq.s32.totalorder %s30, 0
      %p384 = por %p382, %p383
      %p385 = scmp.ne.s32.totalorder %s377, %s379
      %p386 = scmp.eq.s32.totalorder %s35, 3
      %p387 = por %p385, %p386
      %p388 = scmp.ne.s32.totalorder %s379, %s380
      %p389 = scmp.eq.s32.totalorder %s35, 0
      %p390 = por %p388, %p389
      %p391 = scmp.ne.s32.totalorder %s379, %s380
      %p392 = scmp.eq.s32.totalorder %s36, 3
      %p393 = por %p391, %p392
      %p395 = scmp.ne.s32.totalorder %s380, %s394
      %p396 = scmp.eq.s32.totalorder %s36, 0
      %p397 = por %p395, %p396
      %s399 = sadd.s32 %s398, 1
      %p402 = scmp.eq.s32.totalorder %s30, 3
      %p403 = scmp.ne.s32.totalorder %s398, %s400
      %p404 = scmp.eq.s32.totalorder %s30, 0
      %p405 = por %p403, %p404
      %p406 = scmp.ne.s32.totalorder %s398, %s400
      %p407 = scmp.eq.s32.totalorder %s35, 3
      %p408 = por %p406, %p407
      %p409 = scmp.ne.s32.totalorder %s400, %s401
      %p410 = scmp.eq.s32.totalorder %s35, 0
      %p411 = por %p409, %p410
      %p412 = scmp.ne.s32.totalorder %s400, %s401
      %p413 = scmp.eq.s32.totalorder %s36, 3
      %p414 = por %p412, %p413
      %p416 = scmp.ne.s32.totalorder %s401, %s415
      %p417 = scmp.eq.s32.totalorder %s36, 0
      %p418 = por %p416, %p417
      %s420 = sadd.s32 %s419, 1
      %p423 = scmp.eq.s32.totalorder %s30, 3
      %p424 = scmp.ne.s32.totalorder %s419, %s421
      %p425 = scmp.eq.s32.totalorder %s30, 0
      %p426 = por %p424, %p425
      %p427 = scmp.ne.s32.totalorder %s419, %s421
      %p428 = scmp.eq.s32.totalorder %s35, 3
      %p429 = por %p427, %p428
      %p430 = scmp.ne.s32.totalorder %s421, %s422
      %p431 = scmp.eq.s32.totalorder %s35, 0
      %p432 = por %p430, %p431
      %p433 = scmp.ne.s32.totalorder %s421, %s422
      %p434 = scmp.eq.s32.totalorder %s36, 3
      %p435 = por %p433, %p434
      %p437 = scmp.ne.s32.totalorder %s422, %s436
      %p438 = scmp.eq.s32.totalorder %s36, 0
      %p439 = por %p437, %p438
      %s441 = sadd.s32 %s440, 1
      %p444 = scmp.eq.s32.totalorder %s30, 3
      %p445 = scmp.ne.s32.totalorder %s440, %s442
      %p446 = scmp.eq.s32.totalorder %s30, 0
      %p447 = por %p445, %p446
      %p448 = scmp.ne.s32.totalorder %s440, %s442
      %p449 = scmp.eq.s32.totalorder %s35, 3
      %p450 = por %p448, %p449
      %p451 = scmp.ne.s32.totalorder %s442, %s443
      %p452 = scmp.eq.s32.totalorder %s35, 0
      %p453 = por %p451, %p452
      %p454 = scmp.ne.s32.totalorder %s442, %s443
      %p455 = scmp.eq.s32.totalorder %s36, 3
      %p456 = por %p454, %p455
      %p458 = scmp.ne.s32.totalorder %s443, %s457
      %p459 = scmp.eq.s32.totalorder %s36, 0
      %p460 = por %p458, %p459
      %s461 = ssub.s32 %s37, %s49
      %s462 = ssub.s32 %s38, %s45
      %s463 = sor.u32 %s461, %s462
      %p464 = scmp.eq.s32.totalorder %s463, 0
      %s466 = sadd.s32 %s465, 1
      %s467 = scalar_select %p464, %s465, %s466
      %p470 = pneg %p464
      %p471 = scmp.eq.s32.totalorder %s30, 3
      %p472 = por %p470, %p471
      %p473 = scmp.ne.s32.totalorder %s465, %s468
      %p474 = scmp.eq.s32.totalorder %s30, 0
      %p475 = por %p473, %p474
      %p476 = scmp.ne.s32.totalorder %s465, %s468
      %p477 = scmp.eq.s32.totalorder %s35, 3
      %p478 = por %p476, %p477
      %p479 = scmp.ne.s32.totalorder %s468, %s469
      %p480 = scmp.eq.s32.totalorder %s35, 0
      %p481 = por %p479, %p480
      %p482 = scmp.ne.s32.totalorder %s468, %s469
      %p483 = scmp.eq.s32.totalorder %s36, 3
      %p484 = por %p482, %p483
      %p486 = scmp.ne.s32.totalorder %s469, %s485
      %p487 = scmp.eq.s32.totalorder %s36, 0
      %p488 = por %p486, %p487
      %s489 = ssub.s32 %s37, %s49
      %p490 = scmp.eq.s32.totalorder %s489, 0
      %s492 = sadd.s32 %s491, 1
      %s493 = scalar_select %p490, %s491, %s492
      %p496 = pneg %p490
      %p497 = scmp.eq.s32.totalorder %s30, 3
      %p498 = por %p496, %p497
      %p499 = scmp.ne.s32.totalorder %s491, %s494
      %p500 = scmp.eq.s32.totalorder %s30, 0
      %p501 = por %p499, %p500
      %p502 = scmp.ne.s32.totalorder %s491, %s494
      %p503 = scmp.eq.s32.totalorder %s35, 3
      %p504 = por %p502, %p503
      %p505 = scmp.ne.s32.totalorder %s494, %s495
      %p506 = scmp.eq.s32.totalorder %s35, 0
      %p507 = por %p505, %p506
      %p508 = scmp.ne.s32.totalorder %s494, %s495
      %p509 = scmp.eq.s32.totalorder %s36, 3
      %p510 = por %p508, %p509
      %p512 = scmp.ne.s32.totalorder %s495, %s511
      %p513 = scmp.eq.s32.totalorder %s36, 0
      %p514 = por %p512, %p513
      %p515 = scmp.le.s32.totalorder 1, %s30
      %p516 = scmp.lt.s32.totalorder %s30, 5
      %p517 = pnand %p515, %p516
      %p518 = pneg %p517
      // Predicated region
      $region9: #{tpu_custom_call.1} parent=5 // pred_check
        _
      $region10: #{tpu_custom_call.1} parent=5 // pred_check_branch
        %520 = sbr.rel (%p517) target = $region12
      $region11: #{tpu_custom_call.1} parent=5 // pred_region
        %s521 = ssub.s32 %s30, 1
        // Predicated region
        $region13: #{tpu_custom_call.1} parent=11 // pred_check
          %p522 = pneg %p117
        $region14: #{tpu_custom_call.1} parent=11 // pred_check_branch
          %524 = sbr.rel (%p522) target = $region16
        $region15: #{tpu_custom_call.1} parent=11 // pred_region
          _
        $region16: #{tpu_custom_call.1} parent=11 // pred_fallthru
          _
        // Predicated region
        $region17: #{tpu_custom_call.1} parent=11 // pred_check
          %p525 = pneg %p138
        $region18: #{tpu_custom_call.1} parent=11 // pred_check_branch
          %527 = sbr.rel (%p525) target = $region20
        $region19: #{tpu_custom_call.1} parent=11 // pred_region
          _
        $region20: #{tpu_custom_call.1} parent=11 // pred_fallthru
          _
        // Predicated region
        $region21: #{tpu_custom_call.1} parent=11 // pred_check
          %p528 = pneg %p159
        $region22: #{tpu_custom_call.1} parent=11 // pred_check_branch
          %530 = sbr.rel (%p528) target = $region24
        $region23: #{tpu_custom_call.1} parent=11 // pred_region
          _
        $region24: #{tpu_custom_call.1} parent=11 // pred_fallthru
          _
        // Predicated region
        $region25: #{tpu_custom_call.1} parent=11 // pred_check
          %p531 = pneg %p180
        $region26: #{tpu_custom_call.1} parent=11 // pred_check_branch
          %533 = sbr.rel (%p531) target = $region28
        $region27: #{tpu_custom_call.1} parent=11 // pred_region
          _
        $region28: #{tpu_custom_call.1} parent=11 // pred_fallthru
          _
        // Predicated region
        $region29: #{tpu_custom_call.1} parent=11 // pred_check
          %p534 = pneg %p201
        $region30: #{tpu_custom_call.1} parent=11 // pred_check_branch
          %536 = sbr.rel (%p534) target = $region32
        $region31: #{tpu_custom_call.1} parent=11 // pred_region
          _
        $region32: #{tpu_custom_call.1} parent=11 // pred_fallthru
          _
        // Predicated region
        $region33: #{tpu_custom_call.1} parent=11 // pred_check
          %p537 = pneg %p222
        $region34: #{tpu_custom_call.1} parent=11 // pred_check_branch
          %539 = sbr.rel (%p537) target = $region36
        $region35: #{tpu_custom_call.1} parent=11 // pred_region
          _
        $region36: #{tpu_custom_call.1} parent=11 // pred_fallthru
          _
        // Predicated region
        $region37: #{tpu_custom_call.1} parent=11 // pred_check
          %p540 = pneg %p243
        $region38: #{tpu_custom_call.1} parent=11 // pred_check_branch
          %542 = sbr.rel (%p540) target = $region40
        $region39: #{tpu_custom_call.1} parent=11 // pred_region
          _
        $region40: #{tpu_custom_call.1} parent=11 // pred_fallthru
          _
        // Predicated region
        $region41: #{tpu_custom_call.1} parent=11 // pred_check
          %p543 = pneg %p264
        $region42: #{tpu_custom_call.1} parent=11 // pred_check_branch
          %545 = sbr.rel (%p543) target = $region44
        $region43: #{tpu_custom_call.1} parent=11 // pred_region
          _
        $region44: #{tpu_custom_call.1} parent=11 // pred_fallthru
          _
        // Predicated region
        $region45: #{tpu_custom_call.1} parent=11 // pred_check
          %p546 = pneg %p285
        $region46: #{tpu_custom_call.1} parent=11 // pred_check_branch
          %548 = sbr.rel (%p546) target = $region48
        $region47: #{tpu_custom_call.1} parent=11 // pred_region
          _
        $region48: #{tpu_custom_call.1} parent=11 // pred_fallthru
          _
        // Predicated region
        $region49: #{tpu_custom_call.1} parent=11 // pred_check
          %p549 = pneg %p306
        $region50: #{tpu_custom_call.1} parent=11 // pred_check_branch
          %551 = sbr.rel (%p549) target = $region52
        $region51: #{tpu_custom_call.1} parent=11 // pred_region
          _
        $region52: #{tpu_custom_call.1} parent=11 // pred_fallthru
          _
        // Predicated region
        $region53: #{tpu_custom_call.1} parent=11 // pred_check
          %p552 = pneg %p327
        $region54: #{tpu_custom_call.1} parent=11 // pred_check_branch
          %554 = sbr.rel (%p552) target = $region56
        $region55: #{tpu_custom_call.1} parent=11 // pred_region
          _
        $region56: #{tpu_custom_call.1} parent=11 // pred_fallthru
          _
        // Predicated region
        $region57: #{tpu_custom_call.1} parent=11 // pred_check
          %p555 = pneg %p348
        $region58: #{tpu_custom_call.1} parent=11 // pred_check_branch
          %557 = sbr.rel (%p555) target = $region60
        $region59: #{tpu_custom_call.1} parent=11 // pred_region
          _
        $region60: #{tpu_custom_call.1} parent=11 // pred_fallthru
          _
        // Predicated region
        $region61: #{tpu_custom_call.1} parent=11 // pred_check
          %p558 = pneg %p369
        $region62: #{tpu_custom_call.1} parent=11 // pred_check_branch
          %560 = sbr.rel (%p558) target = $region64
        $region63: #{tpu_custom_call.1} parent=11 // pred_region
          _
        $region64: #{tpu_custom_call.1} parent=11 // pred_fallthru
          _
        // Predicated region
        $region65: #{tpu_custom_call.1} parent=11 // pred_check
          %p561 = pneg %p390
        $region66: #{tpu_custom_call.1} parent=11 // pred_check_branch
          %563 = sbr.rel (%p561) target = $region68
        $region67: #{tpu_custom_call.1} parent=11 // pred_region
          _
        $region68: #{tpu_custom_call.1} parent=11 // pred_fallthru
          _
        // Predicated region
        $region69: #{tpu_custom_call.1} parent=11 // pred_check
          %p564 = pneg %p411
        $region70: #{tpu_custom_call.1} parent=11 // pred_check_branch
          %566 = sbr.rel (%p564) target = $region72
        $region71: #{tpu_custom_call.1} parent=11 // pred_region
          _
        $region72: #{tpu_custom_call.1} parent=11 // pred_fallthru
          _
        // Predicated region
        $region73: #{tpu_custom_call.1} parent=11 // pred_check
          %p567 = pneg %p432
        $region74: #{tpu_custom_call.1} parent=11 // pred_check_branch
          %569 = sbr.rel (%p567) target = $region76
        $region75: #{tpu_custom_call.1} parent=11 // pred_region
          _
        $region76: #{tpu_custom_call.1} parent=11 // pred_fallthru
          _
        // Predicated region
        $region77: #{tpu_custom_call.1} parent=11 // pred_check
          %p570 = pneg %p453
        $region78: #{tpu_custom_call.1} parent=11 // pred_check_branch
          %572 = sbr.rel (%p570) target = $region80
        $region79: #{tpu_custom_call.1} parent=11 // pred_region
          _
        $region80: #{tpu_custom_call.1} parent=11 // pred_fallthru
          _
      $region12: #{tpu_custom_call.1} parent=5 // pred_fallthru
        _
      %p573 = scmp.lt.s32.totalorder %s30, 4
      // Predicated region
      $region81: #{tpu_custom_call.1} parent=5 // pred_check
        %p574 = pneg %p573
      $region82: #{tpu_custom_call.1} parent=5 // pred_check_branch
        %576 = sbr.rel (%p574) target = $region84
      $region83: #{tpu_custom_call.1} parent=5 // pred_region
        // Predicated region
        $region85: #{tpu_custom_call.1} parent=83 // pred_check
          %p577 = pneg %p64
        $region86: #{tpu_custom_call.1} parent=83 // pred_check_branch
          %579 = sbr.rel (%p577) target = $region88
        $region87: #{tpu_custom_call.1} parent=83 // pred_region
          %s580 = smul.u32 4, %s38
          %p581 = scmp.lt.s32.totalorder %s37, 1
          %s582 = scalar_select %p581, %s37, 1
          %p583 = scmp.lt.s32.totalorder %s580, 7
          %s584 = scalar_select %p583, %s580, 7
          %s585 = smul.addr %s582, 8
          %s586 = sadd.s32 %s584, %s585
          %s587 = smul.addr %s586, 4
          %s588 = scalar_lea.vmem %s0, %s587
          %s589 = smul.u32 4, %s38
        $region88: #{tpu_custom_call.1} parent=83 // pred_fallthru
          _
        // Predicated region
        $region89: #{tpu_custom_call.1} parent=83 // pred_check
          %p590 = pneg %p90
        $region90: #{tpu_custom_call.1} parent=83 // pred_check_branch
          %592 = sbr.rel (%p590) target = $region92
        $region91: #{tpu_custom_call.1} parent=83 // pred_region
          %p593 = scmp.lt.s32.totalorder %s37, 1
          %s594 = scalar_select %p593, %s37, 1
          %s595 = smul.addr %s594, 4
          %s596 = scalar_lea.vmem %s1, %s595
        $region92: #{tpu_custom_call.1} parent=83 // pred_fallthru
          _
      $region84: #{tpu_custom_call.1} parent=5 // pred_fallthru
        _
      %p597 = scmp.le.s32.totalorder 1, %s30
      %p598 = scmp.lt.s32.totalorder %s30, 5
      %p599 = pnand %p597, %p598
      %p600 = pneg %p599
      // Predicated region
      $region93: #{tpu_custom_call.1} parent=5 // pred_check
        _
      $region94: #{tpu_custom_call.1} parent=5 // pred_check_branch
        %602 = sbr.rel (%p599) target = $region96
      $region95: #{tpu_custom_call.1} parent=5 // pred_region
        %s603 = ssub.s32 %s30, 1
        %s604 = smul.u32 4, %s40
        %p605 = scmp.lt.s32.totalorder %s39, 1
        %s606 = scalar_select %p605, %s39, 1
        %p607 = scmp.lt.s32.totalorder %s604, 7
        %s608 = scalar_select %p607, %s604, 7
        %s609 = smul.addr %s606, 8
        %s610 = sadd.s32 %s608, %s609
        %s611 = smul.addr %s610, 4
        %s612 = scalar_lea.vmem %s0, %s611
        %p613 = pneg %p70
        %p614 = pneg %p67
        %p615 = scmp.lt.s32.totalorder %s39, 1
        %s616 = scalar_select %p615, %s39, 1
        %s617 = smul.addr %s616, 4
        %s618 = scalar_lea.vmem %s1, %s617
        %p619 = pneg %p96
        %p620 = pneg %p93
        %p621 = pneg %p117
        %p622 = pneg %p114
        %p623 = pneg %p138
        %p624 = pneg %p135
        %p625 = pneg %p159
        %p626 = pneg %p156
        %p627 = pneg %p180
        %p628 = pneg %p177
        %p629 = pneg %p201
        %p630 = pneg %p198
        %p631 = pneg %p222
        %p632 = pneg %p219
        %p633 = pneg %p243
        %p634 = pneg %p240
        %p635 = pneg %p264
        %p636 = pneg %p261
        %p637 = pneg %p285
        %p638 = pneg %p282
        %p639 = pneg %p306
        %p640 = pneg %p303
        %p641 = pneg %p327
        %p642 = pneg %p324
        %p643 = pneg %p348
        %p644 = pneg %p345
        %p645 = pneg %p369
        %p646 = pneg %p366
        %p647 = pneg %p390
        %p648 = pneg %p387
        %p649 = pneg %p411
        %p650 = pneg %p408
        %p651 = pneg %p432
        %p652 = pneg %p429
        %p653 = pneg %p453
        %p654 = pneg %p450
        %p655 = pneg %p481
        %p656 = pneg %p478
        %s657 = smul.u32 4, %s40
        %p658 = scmp.lt.s32.totalorder %s39, 1
        %s659 = scalar_select %p658, %s39, 1
        %p660 = scmp.lt.s32.totalorder %s657, 7
        %s661 = scalar_select %p660, %s657, 7
        %s662 = smul.addr %s659, 8
        %s663 = sadd.s32 %s661, %s662
        %s664 = smul.addr %s663, 4
        %s665 = scalar_lea.vmem %s19, %s664
        %p666 = pneg %p507
        %p667 = pneg %p504
        %s668 = sand.u32 %s494, 1
        %s669 = scalar_lea.sflag [#allocation6], %s668
        %s670 = sand.u32 %s494, 1
        %s671 = smul.addr %s670, 4
        %s672 = scalar_lea.vmem [#allocation5], %s671
        %s673 = smul.u32 4, %s40
        %p674 = scmp.lt.s32.totalorder %s39, 1
        %s675 = scalar_select %p674, %s39, 1
        %p676 = scmp.lt.s32.totalorder %s673, 7
        %s677 = scalar_select %p676, %s673, 7
        %s678 = smul.addr %s675, 8
        %s679 = sadd.s32 %s677, %s678
        %s680 = smul.addr %s679, 4
        %s681 = scalar_lea.vmem %s0, %s680
        %s682 = smul.u32 4, %s40
        %p683 = scmp.lt.s32.totalorder %s39, 1
        %s684 = scalar_select %p683, %s39, 1
        %s685 = smul.addr %s684, 4
        %s686 = scalar_lea.vmem %s1, %s685
        %s687 = smul.u32 4, %s40
        %p688 = scmp.lt.s32.totalorder %s39, 1
        %s689 = scalar_select %p688, %s39, 1
        %p690 = scmp.lt.s32.totalorder %s687, 7
        %s691 = scalar_select %p690, %s687, 7
        %s692 = smul.addr %s689, 8
        %s693 = sadd.s32 %s691, %s692
        %s694 = smul.addr %s693, 4
        %s695 = scalar_lea.vmem %s19, %s694
        %s696 = smul.u32 4, %s40
        %p698 = scmp.eq.s32.totalorder %s40, 0
        // Predicated region
        $region97: #{tpu_custom_call.1} parent=95 // pred_check
          %p699 = pneg %p698
        $region98: #{tpu_custom_call.1} parent=95 // pred_check_branch
          %701 = sbr.rel (%p699) target = $region100
        $region99: #{tpu_custom_call.1} parent=95 // pred_region
          %vm702 = vcmask 7168
          %703 = vst.msk [vmem:[#allocation2] sm:$0xff] %vm702, -inf
          %704 = vst.msk [vmem:[#allocation2 + $0x8] sm:$0xff] %vm702, -inf
          %705 = vst.msk [vmem:[#allocation3] sm:$0xff] %vm702, 0.0
          %706 = vst.msk [vmem:[#allocation3 + $0x8] sm:$0xff] %vm702, 0.0
          %vm707 = vcmask 130048
          %708 = vst.msk [vmem:[#allocation4] sm:$0xff] %vm707, 0.0
          %709 = vst.msk [vmem:[#allocation4 + $0x8] sm:$0xff] %vm707, 0.0
        $region100: #{tpu_custom_call.1} parent=95 // pred_fallthru
          _
        %v710 = vld [vmem:[%s681] sm:$0xf]
        %v711 = vld [vmem:[%s681 + $0x4] sm:$0xf]
        %v712 = vld [vmem:[%s681 + $0x8] sm:$0xf]
        %v713 = vld [vmem:[%s681 + $0xc] sm:$0xf]
        %v714 = vunpack.c.l.bf16 %v710
        %v715 = vunpack.c.l.bf16 %v711
        %v716 = vunpack.c.l.bf16 %v712
        %v717 = vunpack.c.l.bf16 %v713
        %v718 = vld [vmem:[%s2] sm:$0x1]
        %v719 = vld [vmem:[%s3] sm:$0x1]
        %vm720 = vcmask 261120
        %v721 = vsel %vm720, %v714, 0.0
        %722 = vadd.xlane.f32.xlu0 %v721
        %v723 = vpop.xlane.xlu0 %722
        %v724 = vsel %vm720, %v715, 0.0
        %725 = vadd.xlane.f32.xlu0 %v724
        %v726 = vpop.xlane.xlu0 %725
        %v727 = vsel %vm720, %v716, 0.0
        %728 = vadd.xlane.f32.xlu0 %v727
        %v729 = vpop.xlane.xlu0 %728
        %v730 = vsel %vm720, %v717, 0.0
        %731 = vadd.xlane.f32.xlu0 %v730
        %v732 = vpop.xlane.xlu0 %731
        %v733 = vrcp.pop 32.0
        %v734 = vmul.f32 %v723, %v733
        %v735 = vmul.f32 %v726, %v733
        %v736 = vmul.f32 %v729, %v733
        %v737 = vmul.f32 %v732, %v733
        %v738 = vsub.f32 %v714, %v734
        %v739 = vsub.f32 %v715, %v735
        %v740 = vsub.f32 %v716, %v736
        %v741 = vsub.f32 %v717, %v737
        %v742 = vmul.f32 %v738, %v738
        %v743 = vmul.f32 %v739, %v739
        %v744 = vmul.f32 %v740, %v740
        %v745 = vmul.f32 %v741, %v741
        %v746 = vsel %vm720, %v742, 0.0
        %747 = vadd.xlane.f32.xlu0 %v746
        %v748 = vpop.xlane.xlu0 %747
        %v749 = vsel %vm720, %v743, 0.0
        %750 = vadd.xlane.f32.xlu0 %v749
        %v751 = vpop.xlane.xlu0 %750
        %v752 = vsel %vm720, %v744, 0.0
        %753 = vadd.xlane.f32.xlu0 %v752
        %v754 = vpop.xlane.xlu0 %753
        %v755 = vsel %vm720, %v745, 0.0
        %756 = vadd.xlane.f32.xlu0 %v755
        %v757 = vpop.xlane.xlu0 %756
        %v758 = vmul.f32 %v748, %v733
        %v759 = vmul.f32 %v751, %v733
        %v760 = vmul.f32 %v754, %v733
        %v761 = vmul.f32 %v757, %v733
        %v762 = vadd.f32 %v758, 1e-05
        %v763 = vadd.f32 %v759, 1e-05
        %v764 = vadd.f32 %v760, 1e-05
        %v765 = vadd.f32 %v761, 1e-05
        %v766 = vrsqrt.pop %v762
        %v767 = vrsqrt.pop %v763
        %v768 = vrsqrt.pop %v764
        %v769 = vrsqrt.pop %v765
        %v770 = vmul.f32 %v738, %v766
        %v771 = vmul.f32 %v739, %v767
        %v772 = vmul.f32 %v740, %v768
        %v773 = vmul.f32 %v741, %v769
        %v775 = vlaneseq
        %v776 = vshrl.u32 %v775, 7
        %v777 = vsub.s32 0, %v776
        %v778 = vrot.slane %v718, %v777
        %v780 = vmul.f32 %v770, %v778
        %v781 = vmul.f32 %v771, %v778
        %v782 = vmul.f32 %v772, %v778
        %v783 = vmul.f32 %v773, %v778
        %v785 = vlaneseq
        %v786 = vshrl.u32 %v785, 7
        %v787 = vsub.s32 0, %v786
        %v788 = vrot.slane %v719, %v787
        %v790 = vadd.f32 %v780, %v788
        %v791 = vadd.f32 %v781, %v788
        %v792 = vadd.f32 %v782, %v788
        %v793 = vadd.f32 %v783, %v788
        %v794 = vpack.c.bf16 %v791, %v790
        %v795 = vpack.c.bf16 %v793, %v792
        %v796 = vld [vmem:[%s686] sm:$0xf]
        %v797 = vld [vmem:[%s4] sm:$0xf]
        %v798 = vld [vmem:[%s4 + $0x4] sm:$0xf]
        %v799 = vld [vmem:[%s4 + $0x8] sm:$0xf]
        %v800 = vld [vmem:[%s4 + $0xc] sm:$0xf]
        %v801 = vld [vmem:[%s5] sm:$0x1]
        %v803 = vlaneseq
        %v804 = vshrl.u32 %v803, 7
        %v805 = vsub.s32 0, %v804
        %v806 = vrot.slane %v801, %v805
        %v812 = vunpack.c.l.b16 %v797
        %v813 = vunpack.c.l.b16 %v798
        %v814 = vunpack.c.l.b16 %v799
        %v815 = vunpack.c.l.b16 %v800
        %v816 = vpack.c.b16 %v813, %v812
        %v817 = vpack.c.b16 %v815, %v814
        %v821 = vsel %vm720, %v796, 0
        %823 = vmatprep.subr.bf16.mxu0 0
        %824 = vmatpush1.bf16.msra.mxu0 %v816
        %825 = vmatprep.subr.bf16.mxu0 0
        %826 = vmatpush1.bf16.msra.mxu0 %v817
        %827 = vmatprep.subr.bf16.mxu0 0
        %828 = vmatpush1.bf16.msra.mxu0 0
        %829 = vmatprep.subr.bf16.mxu0 0
        %830 = vmatpush1.bf16.msra.mxu0 0
        %831 = vmatprep.subr.bf16.mxu0 0
        %832 = vmatpush1.bf16.msra.mxu0 0
        %833 = vmatprep.subr.bf16.mxu0 0
        %834 = vmatpush1.bf16.msra.mxu0 0
        %835 = vmatprep.subr.bf16.mxu0 0
        %836 = vmatpush1.bf16.msra.mxu0 0
        %837 = vmatprep.subr.bf16.mxu0 0
        %838 = vmatpush1.bf16.msra.mxu0 0
        %839 = vmatprep.subr.bf16.mxu0 0
        %840 = vmatpush1.bf16.msra.mxu0 0
        %841 = vmatprep.subr.bf16.mxu0 0
        %842 = vmatpush1.bf16.msra.mxu0 0
        %843 = vmatprep.subr.bf16.mxu0 0
        %844 = vmatpush1.bf16.msra.mxu0 0
        %845 = vmatprep.subr.bf16.mxu0 0
        %846 = vmatpush1.bf16.msra.mxu0 0
        %847 = vmatprep.subr.bf16.mxu0 0
        %848 = vmatpush1.bf16.msra.mxu0 0
        %849 = vmatprep.subr.bf16.mxu0 0
        %850 = vmatpush1.bf16.msra.mxu0 0
        %851 = vmatprep.subr.bf16.mxu0 0
        %852 = vmatpush1.bf16.msra.mxu0 0
        %853 = vmatprep.subr.bf16.mxu0 0
        %854 = vmatpush1.bf16.msra.mxu0 0
        %855 = vmatprep.mubr.bf16.mxu0 0
        %856 = vmatmul.mubr.bf16.gmra.mrb[0].mxu0 %v821
        %v857 = vpop.f32.mrb[0].mxu0
        %v858 = vadd.f32 %v806, %v857
        %v859 = vpop.f32.mrb[0].mxu0
        %v860 = vpop.f32.mrb[0].mxu0
        %v861 = vpop.f32.mrb[0].mxu0
        %862 = vdwg.mxu0
        %v863 = vpack.c.bf16 %v858, %v858
        %v864 = vld [vmem:[%s6] sm:$0xf]
        %v865 = vld [vmem:[%s6 + $0x4] sm:$0xf]
        %v866 = vld [vmem:[%s6 + $0x8] sm:$0xf]
        %v867 = vld [vmem:[%s6 + $0xc] sm:$0xf]
        %v868 = vld [vmem:[%s7] sm:$0x1]
        %v870 = vlaneseq
        %v871 = vshrl.u32 %v870, 7
        %v872 = vsub.s32 0, %v871
        %v873 = vrot.slane %v868, %v872
        %v879 = vunpack.c.l.b16 %v864
        %v880 = vunpack.c.l.b16 %v865
        %v881 = vunpack.c.l.b16 %v866
        %v882 = vunpack.c.l.b16 %v867
        %v883 = vpack.c.b16 %v880, %v879
        %v884 = vpack.c.b16 %v882, %v881
        %v888 = vsel %vm720, %v794, 0
        %v891 = vsel %vm720, %v795, 0
        %893 = vmatprep.subr.bf16.mxu0 0
        %894 = vmatpush1.bf16.msra.mxu0 %v883
        %895 = vmatprep.subr.bf16.mxu0 0
        %896 = vmatpush1.bf16.msra.mxu0 %v884
        %897 = vmatprep.subr.bf16.mxu0 0
        %898 = vmatpush1.bf16.msra.mxu0 0
        %899 = vmatprep.subr.bf16.mxu0 0
        %900 = vmatpush1.bf16.msra.mxu0 0
        %901 = vmatprep.subr.bf16.mxu0 0
        %902 = vmatpush1.bf16.msra.mxu0 0
        %903 = vmatprep.subr.bf16.mxu0 0
        %904 = vmatpush1.bf16.msra.mxu0 0
        %905 = vmatprep.subr.bf16.mxu0 0
        %906 = vmatpush1.bf16.msra.mxu0 0
        %907 = vmatprep.subr.bf16.mxu0 0
        %908 = vmatpush1.bf16.msra.mxu0 0
        %909 = vmatprep.subr.bf16.mxu0 0
        %910 = vmatpush1.bf16.msra.mxu0 0
        %911 = vmatprep.subr.bf16.mxu0 0
        %912 = vmatpush1.bf16.msra.mxu0 0
        %913 = vmatprep.subr.bf16.mxu0 0
        %914 = vmatpush1.bf16.msra.mxu0 0
        %915 = vmatprep.subr.bf16.mxu0 0
        %916 = vmatpush1.bf16.msra.mxu0 0
        %917 = vmatprep.subr.bf16.mxu0 0
        %918 = vmatpush1.bf16.msra.mxu0 0
        %919 = vmatprep.subr.bf16.mxu0 0
        %920 = vmatpush1.bf16.msra.mxu0 0
        %921 = vmatprep.subr.bf16.mxu0 0
        %922 = vmatpush1.bf16.msra.mxu0 0
        %923 = vmatprep.subr.bf16.mxu0 0
        %924 = vmatpush1.bf16.msra.mxu0 0
        %925 = vmatprep.mubr.bf16.mxu0 0
        %926 = vmatmul.mubr.bf16.gmra.mrb[0].mxu0 %v888
        %v927 = vpop.f32.mrb[0].mxu0
        %v928 = vadd.f32 %v873, %v927
        %v929 = vpop.f32.mrb[0].mxu0
        %v930 = vpop.f32.mrb[0].mxu0
        %v931 = vadd.f32 %v873, %v930
        %v932 = vpop.f32.mrb[0].mxu0
        %933 = vmatprep.mubr.bf16.mxu0 0
        %934 = vmatmul.mubr.bf16.gmra.mrb[0].mxu0 %v891
        %v935 = vpop.f32.mrb[0].mxu0
        %v936 = vadd.f32 %v873, %v935
        %v937 = vpop.f32.mrb[0].mxu0
        %v938 = vpop.f32.mrb[0].mxu0
        %v939 = vadd.f32 %v873, %v938
        %v940 = vpop.f32.mrb[0].mxu0
        %941 = vdwg.mxu0
        %v942 = vld [vmem:[%s10] sm:$0xf]
        %v943 = vld [vmem:[%s10 + $0x4] sm:$0xf]
        %v944 = vld [vmem:[%s10 + $0x8] sm:$0xf]
        %v945 = vld [vmem:[%s10 + $0xc] sm:$0xf]
        %v946 = vld [vmem:[%s11] sm:$0x1]
        %v948 = vlaneseq
        %v949 = vshrl.u32 %v948, 7
        %v950 = vsub.s32 0, %v949
        %v951 = vrot.slane %v946, %v950
        %v957 = vunpack.c.l.b16 %v942
        %v958 = vunpack.c.l.b16 %v943
        %v959 = vunpack.c.l.b16 %v944
        %v960 = vunpack.c.l.b16 %v945
        %v961 = vpack.c.b16 %v958, %v957
        %v962 = vpack.c.b16 %v960, %v959
        %965 = vmatprep.subr.bf16.mxu0 0
        %966 = vmatpush1.bf16.msra.mxu0 %v961
        %967 = vmatprep.subr.bf16.mxu0 0
        %968 = vmatpush1.bf16.msra.mxu0 %v962
        %969 = vmatprep.subr.bf16.mxu0 0
        %970 = vmatpush1.bf16.msra.mxu0 0
        %971 = vmatprep.subr.bf16.mxu0 0
        %972 = vmatpush1.bf16.msra.mxu0 0
        %973 = vmatprep.subr.bf16.mxu0 0
        %974 = vmatpush1.bf16.msra.mxu0 0
        %975 = vmatprep.subr.bf16.mxu0 0
        %976 = vmatpush1.bf16.msra.mxu0 0
        %977 = vmatprep.subr.bf16.mxu0 0
        %978 = vmatpush1.bf16.msra.mxu0 0
        %979 = vmatprep.subr.bf16.mxu0 0
        %980 = vmatpush1.bf16.msra.mxu0 0
        %981 = vmatprep.subr.bf16.mxu0 0
        %982 = vmatpush1.bf16.msra.mxu0 0
        %983 = vmatprep.subr.bf16.mxu0 0
        %984 = vmatpush1.bf16.msra.mxu0 0
        %985 = vmatprep.subr.bf16.mxu0 0
        %986 = vmatpush1.bf16.msra.mxu0 0
        %987 = vmatprep.subr.bf16.mxu0 0
        %988 = vmatpush1.bf16.msra.mxu0 0
        %989 = vmatprep.subr.bf16.mxu0 0
        %990 = vmatpush1.bf16.msra.mxu0 0
        %991 = vmatprep.subr.bf16.mxu0 0
        %992 = vmatpush1.bf16.msra.mxu0 0
        %993 = vmatprep.subr.bf16.mxu0 0
        %994 = vmatpush1.bf16.msra.mxu0 0
        %995 = vmatprep.subr.bf16.mxu0 0
        %996 = vmatpush1.bf16.msra.mxu0 0
        %997 = vmatprep.mubr.bf16.mxu0 0
        %998 = vmatmul.mubr.bf16.gmra.mrb[0].mxu0 %v888
        %v999 = vpop.f32.mrb[0].mxu0
        %v1000 = vadd.f32 %v951, %v999
        %v1001 = vpop.f32.mrb[0].mxu0
        %v1002 = vpop.f32.mrb[0].mxu0
        %v1003 = vadd.f32 %v951, %v1002
        %v1004 = vpop.f32.mrb[0].mxu0
        %1005 = vmatprep.mubr.bf16.mxu0 0
        %1006 = vmatmul.mubr.bf16.gmra.mrb[0].mxu0 %v891
        %v1007 = vpop.f32.mrb[0].mxu0
        %v1008 = vadd.f32 %v951, %v1007
        %v1009 = vpop.f32.mrb[0].mxu0
        %v1010 = vpop.f32.mrb[0].mxu0
        %v1011 = vadd.f32 %v951, %v1010
        %v1012 = vpop.f32.mrb[0].mxu0
        %1013 = vdwg.mxu0
        %v1014 = vld [vmem:[%s8] sm:$0xf]
        %v1015 = vld [vmem:[%s8 + $0x4] sm:$0xf]
        %v1016 = vld [vmem:[%s8 + $0x8] sm:$0xf]
        %v1017 = vld [vmem:[%s8 + $0xc] sm:$0xf]
        %v1018 = vld [vmem:[%s9] sm:$0x1]
        %v1020 = vlaneseq
        %v1021 = vshrl.u32 %v1020, 7
        %v1022 = vsub.s32 0, %v1021
        %v1023 = vrot.slane %v1018, %v1022
        %v1029 = vunpack.c.l.b16 %v1014
        %v1030 = vunpack.c.l.b16 %v1015
        %v1031 = vunpack.c.l.b16 %v1016
        %v1032 = vunpack.c.l.b16 %v1017
        %v1033 = vpack.c.b16 %v1030, %v1029
        %v1034 = vpack.c.b16 %v1032, %v1031
        %v1038 = vsel %vm720, %v863, 0
        %1040 = vmatprep.subr.bf16.mxu0 0
        %1041 = vmatpush1.bf16.msra.mxu0 %v1033
        %1042 = vmatprep.subr.bf16.mxu0 0
        %1043 = vmatpush1.bf16.msra.mxu0 %v1034
        %1044 = vmatprep.subr.bf16.mxu0 0
        %1045 = vmatpush1.bf16.msra.mxu0 0
        %1046 = vmatprep.subr.bf16.mxu0 0
        %1047 = vmatpush1.bf16.msra.mxu0 0
        %1048 = vmatprep.subr.bf16.mxu0 0
        %1049 = vmatpush1.bf16.msra.mxu0 0
        %1050 = vmatprep.subr.bf16.mxu0 0
        %1051 = vmatpush1.bf16.msra.mxu0 0
        %1052 = vmatprep.subr.bf16.mxu0 0
        %1053 = vmatpush1.bf16.msra.mxu0 0
        %1054 = vmatprep.subr.bf16.mxu0 0
        %1055 = vmatpush1.bf16.msra.mxu0 0
        %1056 = vmatprep.subr.bf16.mxu0 0
        %1057 = vmatpush1.bf16.msra.mxu0 0
        %1058 = vmatprep.subr.bf16.mxu0 0
        %1059 = vmatpush1.bf16.msra.mxu0 0
        %1060 = vmatprep.subr.bf16.mxu0 0
        %1061 = vmatpush1.bf16.msra.mxu0 0
        %1062 = vmatprep.subr.bf16.mxu0 0
        %1063 = vmatpush1.bf16.msra.mxu0 0
        %1064 = vmatprep.subr.bf16.mxu0 0
        %1065 = vmatpush1.bf16.msra.mxu0 0
        %1066 = vmatprep.subr.bf16.mxu0 0
        %1067 = vmatpush1.bf16.msra.mxu0 0
        %1068 = vmatprep.subr.bf16.mxu0 0
        %1069 = vmatpush1.bf16.msra.mxu0 0
        %1070 = vmatprep.subr.bf16.mxu0 0
        %1071 = vmatpush1.bf16.msra.mxu0 0
        %1072 = vmatprep.mubr.bf16.mxu0 0
        %1073 = vmatmul.mubr.bf16.gmra.mrb[0].mxu0 %v1038
        %v1074 = vpop.f32.mrb[0].mxu0
        %v1075 = vadd.f32 %v1023, %v1074
        %v1076 = vpop.f32.mrb[0].mxu0
        %v1077 = vpop.f32.mrb[0].mxu0
        %v1078 = vpop.f32.mrb[0].mxu0
        %1079 = vdwg.mxu0
        %v1080 = vld [vmem:[%s12] sm:$0xf]
        %v1081 = vld [vmem:[%s12 + $0x4] sm:$0xf]
        %v1082 = vld [vmem:[%s12 + $0x8] sm:$0xf]
        %v1083 = vld [vmem:[%s12 + $0xc] sm:$0xf]
        %v1084 = vld [vmem:[%s13] sm:$0x1]
        %v1086 = vlaneseq
        %v1087 = vshrl.u32 %v1086, 7
        %v1088 = vsub.s32 0, %v1087
        %v1089 = vrot.slane %v1084, %v1088
        %v1095 = vunpack.c.l.b16 %v1080
        %v1096 = vunpack.c.l.b16 %v1081
        %v1097 = vunpack.c.l.b16 %v1082
        %v1098 = vunpack.c.l.b16 %v1083
        %v1099 = vpack.c.b16 %v1096, %v1095
        %v1100 = vpack.c.b16 %v1098, %v1097
        %1103 = vmatprep.subr.bf16.mxu0 0
        %1104 = vmatpush1.bf16.msra.mxu0 %v1099
        %1105 = vmatprep.subr.bf16.mxu0 0
        %1106 = vmatpush1.bf16.msra.mxu0 %v1100
        %1107 = vmatprep.subr.bf16.mxu0 0
        %1108 = vmatpush1.bf16.msra.mxu0 0
        %1109 = vmatprep.subr.bf16.mxu0 0
        %1110 = vmatpush1.bf16.msra.mxu0 0
        %1111 = vmatprep.subr.bf16.mxu0 0
        %1112 = vmatpush1.bf16.msra.mxu0 0
        %1113 = vmatprep.subr.bf16.mxu0 0
        %1114 = vmatpush1.bf16.msra.mxu0 0
        %1115 = vmatprep.subr.bf16.mxu0 0
        %1116 = vmatpush1.bf16.msra.mxu0 0
        %1117 = vmatprep.subr.bf16.mxu0 0
        %1118 = vmatpush1.bf16.msra.mxu0 0
        %1119 = vmatprep.subr.bf16.mxu0 0
        %1120 = vmatpush1.bf16.msra.mxu0 0
        %1121 = vmatprep.subr.bf16.mxu0 0
        %1122 = vmatpush1.bf16.msra.mxu0 0
        %1123 = vmatprep.subr.bf16.mxu0 0
        %1124 = vmatpush1.bf16.msra.mxu0 0
        %1125 = vmatprep.subr.bf16.mxu0 0
        %1126 = vmatpush1.bf16.msra.mxu0 0
        %1127 = vmatprep.subr.bf16.mxu0 0
        %1128 = vmatpush1.bf16.msra.mxu0 0
        %1129 = vmatprep.subr.bf16.mxu0 0
        %1130 = vmatpush1.bf16.msra.mxu0 0
        %1131 = vmatprep.subr.bf16.mxu0 0
        %1132 = vmatpush1.bf16.msra.mxu0 0
        %1133 = vmatprep.subr.bf16.mxu0 0
        %1134 = vmatpush1.bf16.msra.mxu0 0
        %1135 = vmatprep.mubr.bf16.mxu0 0
        %1136 = vmatmul.mubr.bf16.gmra.mrb[0].mxu0 %v1038
        %v1137 = vpop.f32.mrb[0].mxu0
        %v1138 = vadd.f32 %v1089, %v1137
        %v1139 = vpop.f32.mrb[0].mxu0
        %v1140 = vpop.f32.mrb[0].mxu0
        %v1141 = vpop.f32.mrb[0].mxu0
        %1142 = vdwg.mxu0
        %v1143 = vpack.c.bf16 %v931, %v928
        %v1144 = vpack.c.bf16 %v939, %v936
        %v1145 = vpack.c.bf16 %v1075, %v1075
        %vm1146 = vcmask 130048
        %v1148 = vsel %vm1146, %v1143, 0
        %v1151 = vsel %vm1146, %v1144, 0
        %v1154 = vsel %vm1146, %v1145, 0
        %1156 = vmatprep.subr.bf16.mxu0 0
        %1157 = vmatpush1.bf16.xpose.msra.mxu0 %v1154
        %1158 = vmatprep.subr.bf16.mxu0 0
        %1159 = vmatpush1.bf16.xpose.msra.mxu0 0
        %1160 = vmatprep.subr.bf16.mxu0 0
        %1161 = vmatpush1.bf16.xpose.msra.mxu0 0
        %1162 = vmatprep.subr.bf16.mxu0 0
        %1163 = vmatpush1.bf16.xpose.msra.mxu0 0
        %1164 = vmatprep.subr.bf16.mxu0 0
        %1165 = vmatpush1.bf16.xpose.msra.mxu0 0
        %1166 = vmatprep.subr.bf16.mxu0 0
        %1167 = vmatpush1.bf16.xpose.msra.mxu0 0
        %1168 = vmatprep.subr.bf16.mxu0 0
        %1169 = vmatpush1.bf16.xpose.msra.mxu0 0
        %1170 = vmatprep.subr.bf16.mxu0 0
        %1171 = vmatpush1.bf16.xpose.msra.mxu0 0
        %1172 = vmatprep.subr.bf16.mxu0 0
        %1173 = vmatpush1.bf16.xpose.msra.mxu0 0
        %1174 = vmatprep.subr.bf16.mxu0 0
        %1175 = vmatpush1.bf16.xpose.msra.mxu0 0
        %1176 = vmatprep.subr.bf16.mxu0 0
        %1177 = vmatpush1.bf16.xpose.msra.mxu0 0
        %1178 = vmatprep.subr.bf16.mxu0 0
        %1179 = vmatpush1.bf16.xpose.msra.mxu0 0
        %1180 = vmatprep.subr.bf16.mxu0 0
        %1181 = vmatpush1.bf16.xpose.msra.mxu0 0
        %1182 = vmatprep.subr.bf16.mxu0 0
        %1183 = vmatpush1.bf16.xpose.msra.mxu0 0
        %1184 = vmatprep.subr.bf16.mxu0 0
        %1185 = vmatpush1.bf16.xpose.msra.mxu0 0
        %1186 = vmatprep.subr.bf16.mxu0 0
        %1187 = vmatpush1.bf16.xpose.msra.mxu0 0
        %1188 = vmatprep.mubr.bf16.mxu0 0
        %1189 = vmatmul.mubr.bf16.gmra.mrb[0].mxu0 %v1148
        %v1190 = vpop.f32.mrb[0].mxu0
        %v1191 = vadd.f32 0.0, %v1190
        %v1192 = vpop.f32.mrb[0].mxu0
        %v1193 = vpop.f32.mrb[0].mxu0
        %v1194 = vadd.f32 0.0, %v1193
        %v1195 = vpop.f32.mrb[0].mxu0
        %1196 = vmatprep.mubr.bf16.mxu0 0
        %1197 = vmatmul.mubr.bf16.gmra.mrb[0].mxu0 %v1151
        %v1198 = vpop.f32.mrb[0].mxu0
        %v1199 = vadd.f32 0.0, %v1198
        %v1200 = vpop.f32.mrb[0].mxu0
        %v1201 = vpop.f32.mrb[0].mxu0
        %v1202 = vadd.f32 0.0, %v1201
        %v1203 = vpop.f32.mrb[0].mxu0
        %1204 = vdwg.mxu0
        %v1205 = vmax.f32 %v1191, -50000.0
        %v1206 = vmax.f32 %v1194, -50000.0
        %v1207 = vmax.f32 %v1199, -50000.0
        %v1208 = vmax.f32 %v1202, -50000.0
        %v1209 = vmin.f32 %v1205, 50000.0
        %v1210 = vmin.f32 %v1206, 50000.0
        %v1211 = vmin.f32 %v1207, 50000.0
        %v1212 = vmin.f32 %v1208, 50000.0
        %vm1213 = vcmask 64512
        %v1214 = vsel %vm1213, %v1209, -inf
        %1215 = vmax.xlane.f32.xlu0 %v1214
        %v1216 = vpop.xlane.xlu0 %1215
        %v1217 = vsel %vm1213, %v1210, -inf
        %1218 = vmax.xlane.f32.xlu0 %v1217
        %v1219 = vpop.xlane.xlu0 %1218
        %v1220 = vsel %vm1213, %v1211, -inf
        %1221 = vmax.xlane.f32.xlu0 %v1220
        %v1222 = vpop.xlane.xlu0 %1221
        %v1223 = vsel %vm1213, %v1212, -inf
        %1224 = vmax.xlane.f32.xlu0 %v1223
        %v1225 = vpop.xlane.xlu0 %1224
        %v1226 = vsub.f32 %v1209, %v1216
        %v1227 = vsub.f32 %v1210, %v1219
        %v1228 = vsub.f32 %v1211, %v1222
        %v1229 = vsub.f32 %v1212, %v1225
        %v1230 = vmul.f32 %v1226, 1.442695
        %v1231 = vpow.pop %v1230
        %v1232 = vmul.f32 %v1227, 1.442695
        %v1233 = vpow.pop %v1232
        %v1234 = vmul.f32 %v1228, 1.442695
        %v1235 = vpow.pop %v1234
        %v1236 = vmul.f32 %v1229, 1.442695
        %v1237 = vpow.pop %v1236
        %v1238 = vsel %vm1213, %v1231, 0.0
        %1239 = vadd.xlane.f32.xlu0 %v1238
        %v1240 = vpop.xlane.xlu0 %1239
        %v1241 = vsel %vm1213, %v1233, 0.0
        %1242 = vadd.xlane.f32.xlu0 %v1241
        %v1243 = vpop.xlane.xlu0 %1242
        %v1244 = vsel %vm1213, %v1235, 0.0
        %1245 = vadd.xlane.f32.xlu0 %v1244
        %v1246 = vpop.xlane.xlu0 %1245
        %v1247 = vsel %vm1213, %v1237, 0.0
        %1248 = vadd.xlane.f32.xlu0 %v1247
        %v1249 = vpop.xlane.xlu0 %1248
        %v1250 = vrcp.pop %v1240
        %v1251 = vrcp.pop %v1243
        %v1252 = vrcp.pop %v1246
        %v1253 = vrcp.pop %v1249
        %v1254 = vmul.f32 %v1231, %v1250
        %v1255 = vmul.f32 %v1233, %v1251
        %v1256 = vmul.f32 %v1235, %v1252
        %v1257 = vmul.f32 %v1237, %v1253
        %v1258 = vpack.c.bf16 %v1255, %v1254
        %v1259 = vpack.c.bf16 %v1257, %v1256
        %v1260 = vpack.c.bf16 %v1138, %v1138
        %v1262 = vsel %vm1213, %v1258, 0
        %v1265 = vsel %vm1213, %v1259, 0
        %vm1267 = vcmask 1043456
        %v1269 = vsel %vm1267, %v1260, 0
        %1271 = vmatprep.subr.bf16.mxu0 0
        %1272 = vmatpush1.bf16.msra.mxu0 %v1269
        %1273 = vmatprep.subr.bf16.mxu0 0
        %1274 = vmatpush1.bf16.msra.mxu0 0
        %1275 = vmatprep.subr.bf16.mxu0 0
        %1276 = vmatpush1.bf16.msra.mxu0 0
        %1277 = vmatprep.subr.bf16.mxu0 0
        %1278 = vmatpush1.bf16.msra.mxu0 0
        %1279 = vmatprep.subr.bf16.mxu0 0
        %1280 = vmatpush1.bf16.msra.mxu0 0
        %1281 = vmatprep.subr.bf16.mxu0 0
        %1282 = vmatpush1.bf16.msra.mxu0 0
        %1283 = vmatprep.subr.bf16.mxu0 0
        %1284 = vmatpush1.bf16.msra.mxu0 0
        %1285 = vmatprep.subr.bf16.mxu0 0
        %1286 = vmatpush1.bf16.msra.mxu0 0
        %1287 = vmatprep.subr.bf16.mxu0 0
        %1288 = vmatpush1.bf16.msra.mxu0 0
        %1289 = vmatprep.subr.bf16.mxu0 0
        %1290 = vmatpush1.bf16.msra.mxu0 0
        %1291 = vmatprep.subr.bf16.mxu0 0
        %1292 = vmatpush1.bf16.msra.mxu0 0
        %1293 = vmatprep.subr.bf16.mxu0 0
        %1294 = vmatpush1.bf16.msra.mxu0 0
        %1295 = vmatprep.subr.bf16.mxu0 0
        %1296 = vmatpush1.bf16.msra.mxu0 0
        %1297 = vmatprep.subr.bf16.mxu0 0
        %1298 = vmatpush1.bf16.msra.mxu0 0
        %1299 = vmatprep.subr.bf16.mxu0 0
        %1300 = vmatpush1.bf16.msra.mxu0 0
        %1301 = vmatprep.subr.bf16.mxu0 0
        %1302 = vmatpush1.bf16.msra.mxu0 0
        %1303 = vmatprep.mubr.bf16.mxu0 0
        %1304 = vmatmul.mubr.bf16.gmra.mrb[0].mxu0 %v1262
        %v1305 = vpop.f32.mrb[0].mxu0
        %v1306 = vadd.f32 0.0, %v1305
        %v1307 = vpop.f32.mrb[0].mxu0
        %v1308 = vpop.f32.mrb[0].mxu0
        %v1309 = vadd.f32 0.0, %v1308
        %v1310 = vpop.f32.mrb[0].mxu0
        %1311 = vmatprep.mubr.bf16.mxu0 0
        %1312 = vmatmul.mubr.bf16.gmra.mrb[0].mxu0 %v1265
        %v1313 = vpop.f32.mrb[0].mxu0
        %v1314 = vadd.f32 0.0, %v1313
        %v1315 = vpop.f32.mrb[0].mxu0
        %v1316 = vpop.f32.mrb[0].mxu0
        %v1317 = vadd.f32 0.0, %v1316
        %v1318 = vpop.f32.mrb[0].mxu0
        %1319 = vdwg.mxu0
        %v1320 = vpack.c.bf16 %v1309, %v1306
        %v1321 = vpack.c.bf16 %v1317, %v1314
        %v1322 = vld [vmem:[%s14] sm:$0xf]
        %v1323 = vld [vmem:[%s14 + $0x4] sm:$0xf]
        %1324 = vmatprep.subr.bf16.mxu0 0
        %1325 = vmatpush1.bf16.xpose.msra.mxu0 %v1148
        %1326 = vmatprep.subr.bf16.mxu0 0
        %1327 = vmatpush1.bf16.xpose.msra.mxu0 %v1151
        %1328 = vmatprep.subr.bf16.mxu0 0
        %1329 = vmatpush1.bf16.xpose.msra.mxu0 0
        %1330 = vmatprep.subr.bf16.mxu0 0
        %1331 = vmatpush1.bf16.xpose.msra.mxu0 0
        %1332 = vmatprep.subr.bf16.mxu0 0
        %1333 = vmatpush1.bf16.xpose.msra.mxu0 0
        %1334 = vmatprep.subr.bf16.mxu0 0
        %1335 = vmatpush1.bf16.xpose.msra.mxu0 0
        %1336 = vmatprep.subr.bf16.mxu0 0
        %1337 = vmatpush1.bf16.xpose.msra.mxu0 0
        %1338 = vmatprep.subr.bf16.mxu0 0
        %1339 = vmatpush1.bf16.xpose.msra.mxu0 0
        %1340 = vmatprep.subr.bf16.mxu0 0
        %1341 = vmatpush1.bf16.xpose.msra.mxu0 0
        %1342 = vmatprep.subr.bf16.mxu0 0
        %1343 = vmatpush1.bf16.xpose.msra.mxu0 0
        %1344 = vmatprep.subr.bf16.mxu0 0
        %1345 = vmatpush1.bf16.xpose.msra.mxu0 0
        %1346 = vmatprep.subr.bf16.mxu0 0
        %1347 = vmatpush1.bf16.xpose.msra.mxu0 0
        %1348 = vmatprep.subr.bf16.mxu0 0
        %1349 = vmatpush1.bf16.xpose.msra.mxu0 0
        %1350 = vmatprep.subr.bf16.mxu0 0
        %1351 = vmatpush1.bf16.xpose.msra.mxu0 0
        %1352 = vmatprep.subr.bf16.mxu0 0
        %1353 = vmatpush1.bf16.xpose.msra.mxu0 0
        %1354 = vmatprep.subr.bf16.mxu0 0
        %1355 = vmatpush1.bf16.xpose.msra.mxu0 0
        %1356 = vmatprep.mubr.bf16.mxu0 0
        %1357 = vmatmul.mubr.bf16.gmra.mrb[0].mxu0 %v1154
        %v1358 = vpop.f32.mrb[0].mxu0
        %v1359 = vadd.f32 0.0, %v1358
        %v1360 = vpop.f32.mrb[0].mxu0
        %v1361 = vpop.f32.mrb[0].mxu0
        %v1362 = vpop.f32.mrb[0].mxu0
        %1363 = vdwg.mxu0
        %v1364 = vmax.f32 %v1359, -50000.0
        %v1365 = vmin.f32 %v1364, 50000.0
        %v1366 = vld [vmem:[#allocation2] sm:$0xff]
        %v1367 = vsel %vm720, %v1365, -inf
        %1368 = vmax.xlane.f32.xlu0 %v1367
        %v1369 = vpop.xlane.xlu0 %1368
        %v1370 = vmax.f32 %v1366, %v1369
        %v1371 = vsub.f32 %v1366, %v1370
        %v1372 = vmul.f32 %v1371, 1.442695
        %v1373 = vpow.pop %v1372
        %1375 = vset.pattern.permute.xlu0 0
        %1376 = vperm.xlu0 %1375, %v1370
        %v1377 = vpop.permute.xlu0 %1376
        %v1379 = vsub.f32 %v1365, %v1377
        %v1380 = vmul.f32 %v1379, 1.442695
        %v1381 = vpow.pop %v1380
        %v1382 = vld [vmem:[#allocation3] sm:$0xff]
        %v1383 = vmul.f32 %v1373, %v1382
        %v1384 = vsel %vm720, %v1381, 0.0
        %1385 = vadd.xlane.f32.xlu0 %v1384
        %v1386 = vpop.xlane.xlu0 %1385
        %v1387 = vadd.f32 %v1383, %v1386
        %vm1388 = vcmask 7168
        %1389 = vst.msk [vmem:[#allocation3] sm:$0xff] %vm1388, %v1387
        %v1390 = vld [vmem:[#allocation4] sm:$0xff]
        %1392 = vset.pattern.permute.xlu0 0
        %1393 = vperm.xlu0 %1392, %v1373
        %v1394 = vpop.permute.xlu0 %1393
        %v1396 = vmul.f32 %v1394, %v1390
        %v1397 = vpack.c.bf16 %v1381, %v1381
        %v1398 = vpack.c.bf16 %v1003, %v1000
        %v1399 = vpack.c.bf16 %v1011, %v1008
        %v1401 = vsel %vm720, %v1397, 0
        %1403 = vmatprep.subr.bf16.mxu0 0
        %1404 = vmatpush1.bf16.msra.mxu0 %v1398
        %1405 = vmatprep.subr.bf16.mxu0 0
        %1406 = vmatpush1.bf16.msra.mxu0 %v1399
        %1407 = vmatprep.subr.bf16.mxu0 0
        %1408 = vmatpush1.bf16.msra.mxu0 0
        %1409 = vmatprep.subr.bf16.mxu0 0
        %1410 = vmatpush1.bf16.msra.mxu0 0
        %1411 = vmatprep.subr.bf16.mxu0 0
        %1412 = vmatpush1.bf16.msra.mxu0 0
        %1413 = vmatprep.subr.bf16.mxu0 0
        %1414 = vmatpush1.bf16.msra.mxu0 0
        %1415 = vmatprep.subr.bf16.mxu0 0
        %1416 = vmatpush1.bf16.msra.mxu0 0
        %1417 = vmatprep.subr.bf16.mxu0 0
        %1418 = vmatpush1.bf16.msra.mxu0 0
        %1419 = vmatprep.subr.bf16.mxu0 0
        %1420 = vmatpush1.bf16.msra.mxu0 0
        %1421 = vmatprep.subr.bf16.mxu0 0
        %1422 = vmatpush1.bf16.msra.mxu0 0
        %1423 = vmatprep.subr.bf16.mxu0 0
        %1424 = vmatpush1.bf16.msra.mxu0 0
        %1425 = vmatprep.subr.bf16.mxu0 0
        %1426 = vmatpush1.bf16.msra.mxu0 0
        %1427 = vmatprep.subr.bf16.mxu0 0
        %1428 = vmatpush1.bf16.msra.mxu0 0
        %1429 = vmatprep.subr.bf16.mxu0 0
        %1430 = vmatpush1.bf16.msra.mxu0 0
        %1431 = vmatprep.subr.bf16.mxu0 0
        %1432 = vmatpush1.bf16.msra.mxu0 0
        %1433 = vmatprep.subr.bf16.mxu0 0
        %1434 = vmatpush1.bf16.msra.mxu0 0
        %1435 = vmatprep.mubr.bf16.mxu0 0
        %1436 = vmatmul.mubr.bf16.gmra.mrb[0].mxu0 %v1401
        %v1437 = vpop.f32.mrb[0].mxu0
        %v1438 = vadd.f32 0.0, %v1437
        %v1439 = vpop.f32.mrb[0].mxu0
        %v1440 = vpop.f32.mrb[0].mxu0
        %v1441 = vpop.f32.mrb[0].mxu0
        %1442 = vdwg.mxu0
        %v1443 = vadd.f32 %v1396, %v1438
        %1444 = vst.msk [vmem:[#allocation4] sm:$0xff] %vm1146, %v1443
        %1445 = vst.msk [vmem:[#allocation2] sm:$0xff] %vm1388, %v1370
        %s1446 = scalar_lea.vmem %s6, 16
        %v1447 = vld [vmem:[%s1446] sm:$0xf]
        %v1448 = vld [vmem:[%s1446 + $0x4] sm:$0xf]
        %v1449 = vld [vmem:[%s1446 + $0x8] sm:$0xf]
        %v1450 = vld [vmem:[%s1446 + $0xc] sm:$0xf]
        %s1451 = scalar_lea.vmem %s7, 1
        %v1452 = vld [vmem:[%s1451] sm:$0x1]
        %v1454 = vlaneseq
        %v1455 = vshrl.u32 %v1454, 7
        %v1456 = vsub.s32 0, %v1455
        %v1457 = vrot.slane %v1452, %v1456
        %v1463 = vunpack.c.l.b16 %v1447
        %v1464 = vunpack.c.l.b16 %v1448
        %v1465 = vunpack.c.l.b16 %v1449
        %v1466 = vunpack.c.l.b16 %v1450
        %v1467 = vpack.c.b16 %v1464, %v1463
        %v1468 = vpack.c.b16 %v1466, %v1465
        %1471 = vmatprep.subr.bf16.mxu0 0
        %1472 = vmatpush1.bf16.msra.mxu0 %v1467
        %1473 = vmatprep.subr.bf16.mxu0 0
        %1474 = vmatpush1.bf16.msra.mxu0 %v1468
        %1475 = vmatprep.subr.bf16.mxu0 0
        %1476 = vmatpush1.bf16.msra.mxu0 0
        %1477 = vmatprep.subr.bf16.mxu0 0
        %1478 = vmatpush1.bf16.msra.mxu0 0
        %1479 = vmatprep.subr.bf16.mxu0 0
        %1480 = vmatpush1.bf16.msra.mxu0 0
        %1481 = vmatprep.subr.bf16.mxu0 0
        %1482 = vmatpush1.bf16.msra.mxu0 0
        %1483 = vmatprep.subr.bf16.mxu0 0
        %1484 = vmatpush1.bf16.msra.mxu0 0
        %1485 = vmatprep.subr.bf16.mxu0 0
        %1486 = vmatpush1.bf16.msra.mxu0 0
        %1487 = vmatprep.subr.bf16.mxu0 0
        %1488 = vmatpush1.bf16.msra.mxu0 0
        %1489 = vmatprep.subr.bf16.mxu0 0
        %1490 = vmatpush1.bf16.msra.mxu0 0
        %1491 = vmatprep.subr.bf16.mxu0 0
        %1492 = vmatpush1.bf16.msra.mxu0 0
        %1493 = vmatprep.subr.bf16.mxu0 0
        %1494 = vmatpush1.bf16.msra.mxu0 0
        %1495 = vmatprep.subr.bf16.mxu0 0
        %1496 = vmatpush1.bf16.msra.mxu0 0
        %1497 = vmatprep.subr.bf16.mxu0 0
        %1498 = vmatpush1.bf16.msra.mxu0 0
        %1499 = vmatprep.subr.bf16.mxu0 0
        %1500 = vmatpush1.bf16.msra.mxu0 0
        %1501 = vmatprep.subr.bf16.mxu0 0
        %1502 = vmatpush1.bf16.msra.mxu0 0
        %1503 = vmatprep.mubr.bf16.mxu0 0
        %1504 = vmatmul.mubr.bf16.gmra.mrb[0].mxu0 %v888
        %v1505 = vpop.f32.mrb[0].mxu0
        %v1506 = vadd.f32 %v1457, %v1505
        %v1507 = vpop.f32.mrb[0].mxu0
        %v1508 = vpop.f32.mrb[0].mxu0
        %v1509 = vadd.f32 %v1457, %v1508
        %v1510 = vpop.f32.mrb[0].mxu0
        %1511 = vmatprep.mubr.bf16.mxu0 0
        %1512 = vmatmul.mubr.bf16.gmra.mrb[0].mxu0 %v891
        %v1513 = vpop.f32.mrb[0].mxu0
        %v1514 = vadd.f32 %v1457, %v1513
        %v1515 = vpop.f32.mrb[0].mxu0
        %v1516 = vpop.f32.mrb[0].mxu0
        %v1517 = vadd.f32 %v1457, %v1516
        %v1518 = vpop.f32.mrb[0].mxu0
        %1519 = vdwg.mxu0
        %s1520 = scalar_lea.vmem %s10, 16
        %v1521 = vld [vmem:[%s1520] sm:$0xf]
        %v1522 = vld [vmem:[%s1520 + $0x4] sm:$0xf]
        %v1523 = vld [vmem:[%s1520 + $0x8] sm:$0xf]
        %v1524 = vld [vmem:[%s1520 + $0xc] sm:$0xf]
        %s1525 = scalar_lea.vmem %s11, 1
        %v1526 = vld [vmem:[%s1525] sm:$0x1]
        %v1528 = vlaneseq
        %v1529 = vshrl.u32 %v1528, 7
        %v1530 = vsub.s32 0, %v1529
        %v1531 = vrot.slane %v1526, %v1530
        %v1537 = vunpack.c.l.b16 %v1521
        %v1538 = vunpack.c.l.b16 %v1522
        %v1539 = vunpack.c.l.b16 %v1523
        %v1540 = vunpack.c.l.b16 %v1524
        %v1541 = vpack.c.b16 %v1538, %v1537
        %v1542 = vpack.c.b16 %v1540, %v1539
        %1545 = vmatprep.subr.bf16.mxu0 0
        %1546 = vmatpush1.bf16.msra.mxu0 %v1541
        %1547 = vmatprep.subr.bf16.mxu0 0
        %1548 = vmatpush1.bf16.msra.mxu0 %v1542
        %1549 = vmatprep.subr.bf16.mxu0 0
        %1550 = vmatpush1.bf16.msra.mxu0 0
        %1551 = vmatprep.subr.bf16.mxu0 0
        %1552 = vmatpush1.bf16.msra.mxu0 0
        %1553 = vmatprep.subr.bf16.mxu0 0
        %1554 = vmatpush1.bf16.msra.mxu0 0
        %1555 = vmatprep.subr.bf16.mxu0 0
        %1556 = vmatpush1.bf16.msra.mxu0 0
        %1557 = vmatprep.subr.bf16.mxu0 0
        %1558 = vmatpush1.bf16.msra.mxu0 0
        %1559 = vmatprep.subr.bf16.mxu0 0
        %1560 = vmatpush1.bf16.msra.mxu0 0
        %1561 = vmatprep.subr.bf16.mxu0 0
        %1562 = vmatpush1.bf16.msra.mxu0 0
        %1563 = vmatprep.subr.bf16.mxu0 0
        %1564 = vmatpush1.bf16.msra.mxu0 0
        %1565 = vmatprep.subr.bf16.mxu0 0
        %1566 = vmatpush1.bf16.msra.mxu0 0
        %1567 = vmatprep.subr.bf16.mxu0 0
        %1568 = vmatpush1.bf16.msra.mxu0 0
        %1569 = vmatprep.subr.bf16.mxu0 0
        %1570 = vmatpush1.bf16.msra.mxu0 0
        %1571 = vmatprep.subr.bf16.mxu0 0
        %1572 = vmatpush1.bf16.msra.mxu0 0
        %1573 = vmatprep.subr.bf16.mxu0 0
        %1574 = vmatpush1.bf16.msra.mxu0 0
        %1575 = vmatprep.subr.bf16.mxu0 0
        %1576 = vmatpush1.bf16.msra.mxu0 0
        %1577 = vmatprep.mubr.bf16.mxu0 0
        %1578 = vmatmul.mubr.bf16.gmra.mrb[0].mxu0 %v888
        %v1579 = vpop.f32.mrb[0].mxu0
        %v1580 = vadd.f32 %v1531, %v1579
        %v1581 = vpop.f32.mrb[0].mxu0
        %v1582 = vpop.f32.mrb[0].mxu0
        %v1583 = vadd.f32 %v1531, %v1582
        %v1584 = vpop.f32.mrb[0].mxu0
        %1585 = vmatprep.mubr.bf16.mxu0 0
        %1586 = vmatmul.mubr.bf16.gmra.mrb[0].mxu0 %v891
        %v1587 = vpop.f32.mrb[0].mxu0
        %v1588 = vadd.f32 %v1531, %v1587
        %v1589 = vpop.f32.mrb[0].mxu0
        %v1590 = vpop.f32.mrb[0].mxu0
        %v1591 = vadd.f32 %v1531, %v1590
        %v1592 = vpop.f32.mrb[0].mxu0
        %1593 = vdwg.mxu0
        %s1594 = scalar_lea.vmem %s8, 16
        %v1595 = vld [vmem:[%s1594] sm:$0xf]
        %v1596 = vld [vmem:[%s1594 + $0x4] sm:$0xf]
        %v1597 = vld [vmem:[%s1594 + $0x8] sm:$0xf]
        %v1598 = vld [vmem:[%s1594 + $0xc] sm:$0xf]
        %s1599 = scalar_lea.vmem %s9, 1
        %v1600 = vld [vmem:[%s1599] sm:$0x1]
        %v1602 = vlaneseq
        %v1603 = vshrl.u32 %v1602, 7
        %v1604 = vsub.s32 0, %v1603
        %v1605 = vrot.slane %v1600, %v1604
        %v1611 = vunpack.c.l.b16 %v1595
        %v1612 = vunpack.c.l.b16 %v1596
        %v1613 = vunpack.c.l.b16 %v1597
        %v1614 = vunpack.c.l.b16 %v1598
        %v1615 = vpack.c.b16 %v1612, %v1611
        %v1616 = vpack.c.b16 %v1614, %v1613
        %1619 = vmatprep.subr.bf16.mxu0 0
        %1620 = vmatpush1.bf16.msra.mxu0 %v1615
        %1621 = vmatprep.subr.bf16.mxu0 0
        %1622 = vmatpush1.bf16.msra.mxu0 %v1616
        %1623 = vmatprep.subr.bf16.mxu0 0
        %1624 = vmatpush1.bf16.msra.mxu0 0
        %1625 = vmatprep.subr.bf16.mxu0 0
        %1626 = vmatpush1.bf16.msra.mxu0 0
        %1627 = vmatprep.subr.bf16.mxu0 0
        %1628 = vmatpush1.bf16.msra.mxu0 0
        %1629 = vmatprep.subr.bf16.mxu0 0
        %1630 = vmatpush1.bf16.msra.mxu0 0
        %1631 = vmatprep.subr.bf16.mxu0 0
        %1632 = vmatpush1.bf16.msra.mxu0 0
        %1633 = vmatprep.subr.bf16.mxu0 0
        %1634 = vmatpush1.bf16.msra.mxu0 0
        %1635 = vmatprep.subr.bf16.mxu0 0
        %1636 = vmatpush1.bf16.msra.mxu0 0
        %1637 = vmatprep.subr.bf16.mxu0 0
        %1638 = vmatpush1.bf16.msra.mxu0 0
        %1639 = vmatprep.subr.bf16.mxu0 0
        %1640 = vmatpush1.bf16.msra.mxu0 0
        %1641 = vmatprep.subr.bf16.mxu0 0
        %1642 = vmatpush1.bf16.msra.mxu0 0
        %1643 = vmatprep.subr.bf16.mxu0 0
        %1644 = vmatpush1.bf16.msra.mxu0 0
        %1645 = vmatprep.subr.bf16.mxu0 0
        %1646 = vmatpush1.bf16.msra.mxu0 0
        %1647 = vmatprep.subr.bf16.mxu0 0
        %1648 = vmatpush1.bf16.msra.mxu0 0
        %1649 = vmatprep.subr.bf16.mxu0 0
        %1650 = vmatpush1.bf16.msra.mxu0 0
        %1651 = vmatprep.mubr.bf16.mxu0 0
        %1652 = vmatmul.mubr.bf16.gmra.mrb[0].mxu0 %v1038
        %v1653 = vpop.f32.mrb[0].mxu0
        %v1654 = vadd.f32 %v1605, %v1653
        %v1655 = vpop.f32.mrb[0].mxu0
        %v1656 = vpop.f32.mrb[0].mxu0
        %v1657 = vpop.f32.mrb[0].mxu0
        %1658 = vdwg.mxu0
        %s1659 = scalar_lea.vmem %s12, 16
        %v1660 = vld [vmem:[%s1659] sm:$0xf]
        %v1661 = vld [vmem:[%s1659 + $0x4] sm:$0xf]
        %v1662 = vld [vmem:[%s1659 + $0x8] sm:$0xf]
        %v1663 = vld [vmem:[%s1659 + $0xc] sm:$0xf]
        %s1664 = scalar_lea.vmem %s13, 1
        %v1665 = vld [vmem:[%s1664] sm:$0x1]
        %v1667 = vlaneseq
        %v1668 = vshrl.u32 %v1667, 7
        %v1669 = vsub.s32 0, %v1668
        %v1670 = vrot.slane %v1665, %v1669
        %v1676 = vunpack.c.l.b16 %v1660
        %v1677 = vunpack.c.l.b16 %v1661
        %v1678 = vunpack.c.l.b16 %v1662
        %v1679 = vunpack.c.l.b16 %v1663
        %v1680 = vpack.c.b16 %v1677, %v1676
        %v1681 = vpack.c.b16 %v1679, %v1678
        %1684 = vmatprep.subr.bf16.mxu0 0
        %1685 = vmatpush1.bf16.msra.mxu0 %v1680
        %1686 = vmatprep.subr.bf16.mxu0 0
        %1687 = vmatpush1.bf16.msra.mxu0 %v1681
        %1688 = vmatprep.subr.bf16.mxu0 0
        %1689 = vmatpush1.bf16.msra.mxu0 0
        %1690 = vmatprep.subr.bf16.mxu0 0
        %1691 = vmatpush1.bf16.msra.mxu0 0
        %1692 = vmatprep.subr.bf16.mxu0 0
        %1693 = vmatpush1.bf16.msra.mxu0 0
        %1694 = vmatprep.subr.bf16.mxu0 0
        %1695 = vmatpush1.bf16.msra.mxu0 0
        %1696 = vmatprep.subr.bf16.mxu0 0
        %1697 = vmatpush1.bf16.msra.mxu0 0
        %1698 = vmatprep.subr.bf16.mxu0 0
        %1699 = vmatpush1.bf16.msra.mxu0 0
        %1700 = vmatprep.subr.bf16.mxu0 0
        %1701 = vmatpush1.bf16.msra.mxu0 0
        %1702 = vmatprep.subr.bf16.mxu0 0
        %1703 = vmatpush1.bf16.msra.mxu0 0
        %1704 = vmatprep.subr.bf16.mxu0 0
        %1705 = vmatpush1.bf16.msra.mxu0 0
        %1706 = vmatprep.subr.bf16.mxu0 0
        %1707 = vmatpush1.bf16.msra.mxu0 0
        %1708 = vmatprep.subr.bf16.mxu0 0
        %1709 = vmatpush1.bf16.msra.mxu0 0
        %1710 = vmatprep.subr.bf16.mxu0 0
        %1711 = vmatpush1.bf16.msra.mxu0 0
        %1712 = vmatprep.subr.bf16.mxu0 0
        %1713 = vmatpush1.bf16.msra.mxu0 0
        %1714 = vmatprep.subr.bf16.mxu0 0
        %1715 = vmatpush1.bf16.msra.mxu0 0
        %1716 = vmatprep.mubr.bf16.mxu0 0
        %1717 = vmatmul.mubr.bf16.gmra.mrb[0].mxu0 %v1038
        %v1718 = vpop.f32.mrb[0].mxu0
        %v1719 = vadd.f32 %v1670, %v1718
        %v1720 = vpop.f32.mrb[0].mxu0
        %v1721 = vpop.f32.mrb[0].mxu0
        %v1722 = vpop.f32.mrb[0].mxu0
        %1723 = vdwg.mxu0
        %v1724 = vpack.c.bf16 %v1509, %v1506
        %v1725 = vpack.c.bf16 %v1517, %v1514
        %v1726 = vpack.c.bf16 %v1654, %v1654
        %v1728 = vsel %vm1146, %v1724, 0
        %v1731 = vsel %vm1146, %v1725, 0
        %v1734 = vsel %vm1146, %v1726, 0
        %1736 = vmatprep.subr.bf16.mxu0 0
        %1737 = vmatpush1.bf16.xpose.msra.mxu0 %v1734
        %1738 = vmatprep.subr.bf16.mxu0 0
        %1739 = vmatpush1.bf16.xpose.msra.mxu0 0
        %1740 = vmatprep.subr.bf16.mxu0 0
        %1741 = vmatpush1.bf16.xpose.msra.mxu0 0
        %1742 = vmatprep.subr.bf16.mxu0 0
        %1743 = vmatpush1.bf16.xpose.msra.mxu0 0
        %1744 = vmatprep.subr.bf16.mxu0 0
        %1745 = vmatpush1.bf16.xpose.msra.mxu0 0
        %1746 = vmatprep.subr.bf16.mxu0 0
        %1747 = vmatpush1.bf16.xpose.msra.mxu0 0
        %1748 = vmatprep.subr.bf16.mxu0 0
        %1749 = vmatpush1.bf16.xpose.msra.mxu0 0
        %1750 = vmatprep.subr.bf16.mxu0 0
        %1751 = vmatpush1.bf16.xpose.msra.mxu0 0
        %1752 = vmatprep.subr.bf16.mxu0 0
        %1753 = vmatpush1.bf16.xpose.msra.mxu0 0
        %1754 = vmatprep.subr.bf16.mxu0 0
        %1755 = vmatpush1.bf16.xpose.msra.mxu0 0
        %1756 = vmatprep.subr.bf16.mxu0 0
        %1757 = vmatpush1.bf16.xpose.msra.mxu0 0
        %1758 = vmatprep.subr.bf16.mxu0 0
        %1759 = vmatpush1.bf16.xpose.msra.mxu0 0
        %1760 = vmatprep.subr.bf16.mxu0 0
        %1761 = vmatpush1.bf16.xpose.msra.mxu0 0
        %1762 = vmatprep.subr.bf16.mxu0 0
        %1763 = vmatpush1.bf16.xpose.msra.mxu0 0
        %1764 = vmatprep.subr.bf16.mxu0 0
        %1765 = vmatpush1.bf16.xpose.msra.mxu0 0
        %1766 = vmatprep.subr.bf16.mxu0 0
        %1767 = vmatpush1.bf16.xpose.msra.mxu0 0
        %1768 = vmatprep.mubr.bf16.mxu0 0
        %1769 = vmatmul.mubr.bf16.gmra.mrb[0].mxu0 %v1728
        %v1770 = vpop.f32.mrb[0].mxu0
        %v1771 = vadd.f32 0.0, %v1770
        %v1772 = vpop.f32.mrb[0].mxu0
        %v1773 = vpop.f32.mrb[0].mxu0
        %v1774 = vadd.f32 0.0, %v1773
        %v1775 = vpop.f32.mrb[0].mxu0
        %1776 = vmatprep.mubr.bf16.mxu0 0
        %1777 = vmatmul.mubr.bf16.gmra.mrb[0].mxu0 %v1731
        %v1778 = vpop.f32.mrb[0].mxu0
        %v1779 = vadd.f32 0.0, %v1778
        %v1780 = vpop.f32.mrb[0].mxu0
        %v1781 = vpop.f32.mrb[0].mxu0
        %v1782 = vadd.f32 0.0, %v1781
        %v1783 = vpop.f32.mrb[0].mxu0
        %1784 = vdwg.mxu0
        %v1785 = vmax.f32 %v1771, -50000.0
        %v1786 = vmax.f32 %v1774, -50000.0
        %v1787 = vmax.f32 %v1779, -50000.0
        %v1788 = vmax.f32 %v1782, -50000.0
        %v1789 = vmin.f32 %v1785, 50000.0
        %v1790 = vmin.f32 %v1786, 50000.0
        %v1791 = vmin.f32 %v1787, 50000.0
        %v1792 = vmin.f32 %v1788, 50000.0
        %v1793 = vsel %vm1213, %v1789, -inf
        %1794 = vmax.xlane.f32.xlu0 %v1793
        %v1795 = vpop.xlane.xlu0 %1794
        %v1796 = vsel %vm1213, %v1790, -inf
        %1797 = vmax.xlane.f32.xlu0 %v1796
        %v1798 = vpop.xlane.xlu0 %1797
        %v1799 = vsel %vm1213, %v1791, -inf
        %1800 = vmax.xlane.f32.xlu0 %v1799
        %v1801 = vpop.xlane.xlu0 %1800
        %v1802 = vsel %vm1213, %v1792, -inf
        %1803 = vmax.xlane.f32.xlu0 %v1802
        %v1804 = vpop.xlane.xlu0 %1803
        %v1805 = vsub.f32 %v1789, %v1795
        %v1806 = vsub.f32 %v1790, %v1798
        %v1807 = vsub.f32 %v1791, %v1801
        %v1808 = vsub.f32 %v1792, %v1804
        %v1809 = vmul.f32 %v1805, 1.442695
        %v1810 = vpow.pop %v1809
        %v1811 = vmul.f32 %v1806, 1.442695
        %v1812 = vpow.pop %v1811
        %v1813 = vmul.f32 %v1807, 1.442695
        %v1814 = vpow.pop %v1813
        %v1815 = vmul.f32 %v1808, 1.442695
        %v1816 = vpow.pop %v1815
        %v1817 = vsel %vm1213, %v1810, 0.0
        %1818 = vadd.xlane.f32.xlu0 %v1817
        %v1819 = vpop.xlane.xlu0 %1818
        %v1820 = vsel %vm1213, %v1812, 0.0
        %1821 = vadd.xlane.f32.xlu0 %v1820
        %v1822 = vpop.xlane.xlu0 %1821
        %v1823 = vsel %vm1213, %v1814, 0.0
        %1824 = vadd.xlane.f32.xlu0 %v1823
        %v1825 = vpop.xlane.xlu0 %1824
        %v1826 = vsel %vm1213, %v1816, 0.0
        %1827 = vadd.xlane.f32.xlu0 %v1826
        %v1828 = vpop.xlane.xlu0 %1827
        %v1829 = vrcp.pop %v1819
        %v1830 = vrcp.pop %v1822
        %v1831 = vrcp.pop %v1825
        %v1832 = vrcp.pop %v1828
        %v1833 = vmul.f32 %v1810, %v1829
        %v1834 = vmul.f32 %v1812, %v1830
        %v1835 = vmul.f32 %v1814, %v1831
        %v1836 = vmul.f32 %v1816, %v1832
        %v1837 = vpack.c.bf16 %v1834, %v1833
        %v1838 = vpack.c.bf16 %v1836, %v1835
        %v1839 = vpack.c.bf16 %v1719, %v1719
        %v1841 = vsel %vm1213, %v1837, 0
        %v1844 = vsel %vm1213, %v1838, 0
        %v1847 = vsel %vm1267, %v1839, 0
        %1849 = vmatprep.subr.bf16.mxu0 0
        %1850 = vmatpush1.bf16.msra.mxu0 %v1847
        %1851 = vmatprep.subr.bf16.mxu0 0
        %1852 = vmatpush1.bf16.msra.mxu0 0
        %1853 = vmatprep.subr.bf16.mxu0 0
        %1854 = vmatpush1.bf16.msra.mxu0 0
        %1855 = vmatprep.subr.bf16.mxu0 0
        %1856 = vmatpush1.bf16.msra.mxu0 0
        %1857 = vmatprep.subr.bf16.mxu0 0
        %1858 = vmatpush1.bf16.msra.mxu0 0
        %1859 = vmatprep.subr.bf16.mxu0 0
        %1860 = vmatpush1.bf16.msra.mxu0 0
        %1861 = vmatprep.subr.bf16.mxu0 0
        %1862 = vmatpush1.bf16.msra.mxu0 0
        %1863 = vmatprep.subr.bf16.mxu0 0
        %1864 = vmatpush1.bf16.msra.mxu0 0
        %1865 = vmatprep.subr.bf16.mxu0 0
        %1866 = vmatpush1.bf16.msra.mxu0 0
        %1867 = vmatprep.subr.bf16.mxu0 0
        %1868 = vmatpush1.bf16.msra.mxu0 0
        %1869 = vmatprep.subr.bf16.mxu0 0
        %1870 = vmatpush1.bf16.msra.mxu0 0
        %1871 = vmatprep.subr.bf16.mxu0 0
        %1872 = vmatpush1.bf16.msra.mxu0 0
        %1873 = vmatprep.subr.bf16.mxu0 0
        %1874 = vmatpush1.bf16.msra.mxu0 0
        %1875 = vmatprep.subr.bf16.mxu0 0
        %1876 = vmatpush1.bf16.msra.mxu0 0
        %1877 = vmatprep.subr.bf16.mxu0 0
        %1878 = vmatpush1.bf16.msra.mxu0 0
        %1879 = vmatprep.subr.bf16.mxu0 0
        %1880 = vmatpush1.bf16.msra.mxu0 0
        %1881 = vmatprep.mubr.bf16.mxu0 0
        %1882 = vmatmul.mubr.bf16.gmra.mrb[0].mxu0 %v1841
        %v1883 = vpop.f32.mrb[0].mxu0
        %v1884 = vadd.f32 0.0, %v1883
        %v1885 = vpop.f32.mrb[0].mxu0
        %v1886 = vpop.f32.mrb[0].mxu0
        %v1887 = vadd.f32 0.0, %v1886
        %v1888 = vpop.f32.mrb[0].mxu0
        %1889 = vmatprep.mubr.bf16.mxu0 0
        %1890 = vmatmul.mubr.bf16.gmra.mrb[0].mxu0 %v1844
        %v1891 = vpop.f32.mrb[0].mxu0
        %v1892 = vadd.f32 0.0, %v1891
        %v1893 = vpop.f32.mrb[0].mxu0
        %v1894 = vpop.f32.mrb[0].mxu0
        %v1895 = vadd.f32 0.0, %v1894
        %v1896 = vpop.f32.mrb[0].mxu0
        %1897 = vdwg.mxu0
        %v1898 = vpack.c.bf16 %v1887, %v1884
        %v1899 = vpack.c.bf16 %v1895, %v1892
        %s1900 = scalar_lea.vmem %s14, 8
        %v1901 = vld [vmem:[%s1900] sm:$0xf]
        %v1902 = vld [vmem:[%s1900 + $0x4] sm:$0xf]
        %v1905 = vunpack.c.l.b16 %v1901
        %v1906 = vunpack.c.l.b16 %v1902
        %v1907 = vpack.c.b16 %v1906, %v1905
        %v1910 = vsel %vm1146, %v1898, 0
        %v1913 = vsel %vm1146, %v1899, 0
        %1915 = vmatprep.subr.bf16.mxu0 0
        %1916 = vmatpush1.bf16.msra.mxu0 %v1907
        %1917 = vmatprep.subr.bf16.mxu0 0
        %1918 = vmatpush1.bf16.msra.mxu0 0
        %1919 = vmatprep.subr.bf16.mxu0 0
        %1920 = vmatpush1.bf16.msra.mxu0 0
        %1921 = vmatprep.subr.bf16.mxu0 0
        %1922 = vmatpush1.bf16.msra.mxu0 0
        %1923 = vmatprep.subr.bf16.mxu0 0
        %1924 = vmatpush1.bf16.msra.mxu0 0
        %1925 = vmatprep.subr.bf16.mxu0 0
        %1926 = vmatpush1.bf16.msra.mxu0 0
        %1927 = vmatprep.subr.bf16.mxu0 0
        %1928 = vmatpush1.bf16.msra.mxu0 0
        %1929 = vmatprep.subr.bf16.mxu0 0
        %1930 = vmatpush1.bf16.msra.mxu0 0
        %1931 = vmatprep.subr.bf16.mxu0 0
        %1932 = vmatpush1.bf16.msra.mxu0 0
        %1933 = vmatprep.subr.bf16.mxu0 0
        %1934 = vmatpush1.bf16.msra.mxu0 0
        %1935 = vmatprep.subr.bf16.mxu0 0
        %1936 = vmatpush1.bf16.msra.mxu0 0
        %1937 = vmatprep.subr.bf16.mxu0 0
        %1938 = vmatpush1.bf16.msra.mxu0 0
        %1939 = vmatprep.subr.bf16.mxu0 0
        %1940 = vmatpush1.bf16.msra.mxu0 0
        %1941 = vmatprep.subr.bf16.mxu0 0
        %1942 = vmatpush1.bf16.msra.mxu0 0
        %1943 = vmatprep.subr.bf16.mxu0 0
        %1944 = vmatpush1.bf16.msra.mxu0 0
        %1945 = vmatprep.subr.bf16.mxu0 0
        %1946 = vmatpush1.bf16.msra.mxu0 0
        %1947 = vmatprep.mubr.bf16.mxu0 0
        %1948 = vmatmul.mubr.bf16.gmra.mrb[0].mxu0 %v1910
        %v1949 = vpop.f32.mrb[0].mxu0
        %v1950 = vadd.f32 0.0, %v1949
        %v1951 = vpop.f32.mrb[0].mxu0
        %v1952 = vpop.f32.mrb[0].mxu0
        %v1953 = vadd.f32 0.0, %v1952
        %v1954 = vpop.f32.mrb[0].mxu0
        %1955 = vmatprep.mubr.bf16.mxu0 0
        %1956 = vmatmul.mubr.bf16.gmra.mrb[0].mxu0 %v1913
        %v1957 = vpop.f32.mrb[0].mxu0
        %v1958 = vadd.f32 0.0, %v1957
        %v1959 = vpop.f32.mrb[0].mxu0
        %v1960 = vpop.f32.mrb[0].mxu0
        %v1961 = vadd.f32 0.0, %v1960
        %v1962 = vpop.f32.mrb[0].mxu0
        %1963 = vdwg.mxu0
        %v1966 = vunpack.c.l.b16 %v1322
        %v1967 = vunpack.c.l.b16 %v1323
        %v1968 = vpack.c.b16 %v1967, %v1966
        %v1971 = vsel %vm1146, %v1320, 0
        %v1974 = vsel %vm1146, %v1321, 0
        %1976 = vmatprep.subr.bf16.mxu0 0
        %1977 = vmatpush1.bf16.msra.mxu0 %v1968
        %1978 = vmatprep.subr.bf16.mxu0 0
        %1979 = vmatpush1.bf16.msra.mxu0 0
        %1980 = vmatprep.subr.bf16.mxu0 0
        %1981 = vmatpush1.bf16.msra.mxu0 0
        %1982 = vmatprep.subr.bf16.mxu0 0
        %1983 = vmatpush1.bf16.msra.mxu0 0
        %1984 = vmatprep.subr.bf16.mxu0 0
        %1985 = vmatpush1.bf16.msra.mxu0 0
        %1986 = vmatprep.subr.bf16.mxu0 0
        %1987 = vmatpush1.bf16.msra.mxu0 0
        %1988 = vmatprep.subr.bf16.mxu0 0
        %1989 = vmatpush1.bf16.msra.mxu0 0
        %1990 = vmatprep.subr.bf16.mxu0 0
        %1991 = vmatpush1.bf16.msra.mxu0 0
        %1992 = vmatprep.subr.bf16.mxu0 0
        %1993 = vmatpush1.bf16.msra.mxu0 0
        %1994 = vmatprep.subr.bf16.mxu0 0
        %1995 = vmatpush1.bf16.msra.mxu0 0
        %1996 = vmatprep.subr.bf16.mxu0 0
        %1997 = vmatpush1.bf16.msra.mxu0 0
        %1998 = vmatprep.subr.bf16.mxu0 0
        %1999 = vmatpush1.bf16.msra.mxu0 0
        %2000 = vmatprep.subr.bf16.mxu0 0
        %2001 = vmatpush1.bf16.msra.mxu0 0
        %2002 = vmatprep.subr.bf16.mxu0 0
        %2003 = vmatpush1.bf16.msra.mxu0 0
        %2004 = vmatprep.subr.bf16.mxu0 0
        %2005 = vmatpush1.bf16.msra.mxu0 0
        %2006 = vmatprep.subr.bf16.mxu0 0
        %2007 = vmatpush1.bf16.msra.mxu0 0
        %2008 = vmatprep.mubr.bf16.mxu0 0
        %2009 = vmatmul.mubr.bf16.gmra.mrb[0].mxu0 %v1971
        %v2010 = vpop.f32.mrb[0].mxu0
        %v2011 = vadd.f32 %v1950, %v2010
        %v2012 = vpop.f32.mrb[0].mxu0
        %v2013 = vpop.f32.mrb[0].mxu0
        %v2014 = vadd.f32 %v1953, %v2013
        %v2015 = vpop.f32.mrb[0].mxu0
        %2016 = vmatprep.mubr.bf16.mxu0 0
        %2017 = vmatmul.mubr.bf16.gmra.mrb[0].mxu0 %v1974
        %v2018 = vpop.f32.mrb[0].mxu0
        %v2019 = vadd.f32 %v1958, %v2018
        %v2020 = vpop.f32.mrb[0].mxu0
        %v2021 = vpop.f32.mrb[0].mxu0
        %v2022 = vadd.f32 %v1961, %v2021
        %v2023 = vpop.f32.mrb[0].mxu0
        %2024 = vdwg.mxu0
        %2025 = vmatprep.subr.bf16.mxu0 0
        %2026 = vmatpush1.bf16.xpose.msra.mxu0 %v1728
        %2027 = vmatprep.subr.bf16.mxu0 0
        %2028 = vmatpush1.bf16.xpose.msra.mxu0 %v1731
        %2029 = vmatprep.subr.bf16.mxu0 0
        %2030 = vmatpush1.bf16.xpose.msra.mxu0 0
        %2031 = vmatprep.subr.bf16.mxu0 0
        %2032 = vmatpush1.bf16.xpose.msra.mxu0 0
        %2033 = vmatprep.subr.bf16.mxu0 0
        %2034 = vmatpush1.bf16.xpose.msra.mxu0 0
        %2035 = vmatprep.subr.bf16.mxu0 0
        %2036 = vmatpush1.bf16.xpose.msra.mxu0 0
        %2037 = vmatprep.subr.bf16.mxu0 0
        %2038 = vmatpush1.bf16.xpose.msra.mxu0 0
        %2039 = vmatprep.subr.bf16.mxu0 0
        %2040 = vmatpush1.bf16.xpose.msra.mxu0 0
        %2041 = vmatprep.subr.bf16.mxu0 0
        %2042 = vmatpush1.bf16.xpose.msra.mxu0 0
        %2043 = vmatprep.subr.bf16.mxu0 0
        %2044 = vmatpush1.bf16.xpose.msra.mxu0 0
        %2045 = vmatprep.subr.bf16.mxu0 0
        %2046 = vmatpush1.bf16.xpose.msra.mxu0 0
        %2047 = vmatprep.subr.bf16.mxu0 0
        %2048 = vmatpush1.bf16.xpose.msra.mxu0 0
        %2049 = vmatprep.subr.bf16.mxu0 0
        %2050 = vmatpush1.bf16.xpose.msra.mxu0 0
        %2051 = vmatprep.subr.bf16.mxu0 0
        %2052 = vmatpush1.bf16.xpose.msra.mxu0 0
        %2053 = vmatprep.subr.bf16.mxu0 0
        %2054 = vmatpush1.bf16.xpose.msra.mxu0 0
        %2055 = vmatprep.subr.bf16.mxu0 0
        %2056 = vmatpush1.bf16.xpose.msra.mxu0 0
        %2057 = vmatprep.mubr.bf16.mxu0 0
        %2058 = vmatmul.mubr.bf16.gmra.mrb[0].mxu0 %v1734
        %v2059 = vpop.f32.mrb[0].mxu0
        %v2060 = vadd.f32 0.0, %v2059
        %v2061 = vpop.f32.mrb[0].mxu0
        %v2062 = vpop.f32.mrb[0].mxu0
        %v2063 = vpop.f32.mrb[0].mxu0
        %2064 = vdwg.mxu0
        %v2065 = vmax.f32 %v2060, -50000.0
        %v2066 = vmin.f32 %v2065, 50000.0
        %s2067 = scalar_lea.vmem [#allocation2], 8
        %v2068 = vld [vmem:[%s2067] sm:$0xff]
        %v2069 = vsel %vm720, %v2066, -inf
        %2070 = vmax.xlane.f32.xlu0 %v2069
        %v2071 = vpop.xlane.xlu0 %2070
        %v2072 = vmax.f32 %v2068, %v2071
        %v2073 = vsub.f32 %v2068, %v2072
        %v2074 = vmul.f32 %v2073, 1.442695
        %v2075 = vpow.pop %v2074
        %2077 = vset.pattern.permute.xlu0 0
        %2078 = vperm.xlu0 %2077, %v2072
        %v2079 = vpop.permute.xlu0 %2078
        %v2081 = vsub.f32 %v2066, %v2079
        %v2082 = vmul.f32 %v2081, 1.442695
        %v2083 = vpow.pop %v2082
        %s2084 = scalar_lea.vmem [#allocation3], 8
        %v2085 = vld [vmem:[%s2084] sm:$0xff]
        %v2086 = vmul.f32 %v2075, %v2085
        %v2087 = vsel %vm720, %v2083, 0.0
        %2088 = vadd.xlane.f32.xlu0 %v2087
        %v2089 = vpop.xlane.xlu0 %2088
        %v2090 = vadd.f32 %v2086, %v2089
        %2091 = vst.msk [vmem:[%s2084] sm:$0xff] %vm1388, %v2090
        %s2092 = scalar_lea.vmem [#allocation4], 8
        %v2093 = vld [vmem:[%s2092] sm:$0xff]
        %2095 = vset.pattern.permute.xlu0 0
        %2096 = vperm.xlu0 %2095, %v2075
        %v2097 = vpop.permute.xlu0 %2096
        %v2099 = vmul.f32 %v2097, %v2093
        %v2100 = vpack.c.bf16 %v2083, %v2083
        %v2101 = vpack.c.bf16 %v1583, %v1580
        %v2102 = vpack.c.bf16 %v1591, %v1588
        %v2104 = vsel %vm720, %v2100, 0
        %2106 = vmatprep.subr.bf16.mxu0 0
        %2107 = vmatpush1.bf16.msra.mxu0 %v2101
        %2108 = vmatprep.subr.bf16.mxu0 0
        %2109 = vmatpush1.bf16.msra.mxu0 %v2102
        %2110 = vmatprep.subr.bf16.mxu0 0
        %2111 = vmatpush1.bf16.msra.mxu0 0
        %2112 = vmatprep.subr.bf16.mxu0 0
        %2113 = vmatpush1.bf16.msra.mxu0 0
        %2114 = vmatprep.subr.bf16.mxu0 0
        %2115 = vmatpush1.bf16.msra.mxu0 0
        %2116 = vmatprep.subr.bf16.mxu0 0
        %2117 = vmatpush1.bf16.msra.mxu0 0
        %2118 = vmatprep.subr.bf16.mxu0 0
        %2119 = vmatpush1.bf16.msra.mxu0 0
        %2120 = vmatprep.subr.bf16.mxu0 0
        %2121 = vmatpush1.bf16.msra.mxu0 0
        %2122 = vmatprep.subr.bf16.mxu0 0
        %2123 = vmatpush1.bf16.msra.mxu0 0
        %2124 = vmatprep.subr.bf16.mxu0 0
        %2125 = vmatpush1.bf16.msra.mxu0 0
        %2126 = vmatprep.subr.bf16.mxu0 0
        %2127 = vmatpush1.bf16.msra.mxu0 0
        %2128 = vmatprep.subr.bf16.mxu0 0
        %2129 = vmatpush1.bf16.msra.mxu0 0
        %2130 = vmatprep.subr.bf16.mxu0 0
        %2131 = vmatpush1.bf16.msra.mxu0 0
        %2132 = vmatprep.subr.bf16.mxu0 0
        %2133 = vmatpush1.bf16.msra.mxu0 0
        %2134 = vmatprep.subr.bf16.mxu0 0
        %2135 = vmatpush1.bf16.msra.mxu0 0
        %2136 = vmatprep.subr.bf16.mxu0 0
        %2137 = vmatpush1.bf16.msra.mxu0 0
        %2138 = vmatprep.mubr.bf16.mxu0 0
        %2139 = vmatmul.mubr.bf16.gmra.mrb[0].mxu0 %v2104
        %v2140 = vpop.f32.mrb[0].mxu0
        %v2141 = vadd.f32 0.0, %v2140
        %v2142 = vpop.f32.mrb[0].mxu0
        %v2143 = vpop.f32.mrb[0].mxu0
        %v2144 = vpop.f32.mrb[0].mxu0
        %2145 = vdwg.mxu0
        %v2146 = vadd.f32 %v2099, %v2141
        %2147 = vst.msk [vmem:[%s2092] sm:$0xff] %vm1146, %v2146
        %2148 = vst.msk [vmem:[%s2067] sm:$0xff] %vm1388, %v2072
        %v2149 = vld [vmem:[%s15] sm:$0x1]
        %v2151 = vlaneseq
        %v2152 = vshrl.u32 %v2151, 7
        %v2153 = vsub.s32 0, %v2152
        %v2154 = vrot.slane %v2149, %v2153
        %v2156 = vadd.f32 %v2011, %v2154
        %v2157 = vadd.f32 %v2014, %v2154
        %v2158 = vadd.f32 %v2019, %v2154
        %v2159 = vadd.f32 %v2022, %v2154
        %v2160 = vld [vmem:[%s18] sm:$0x1]
        %v2162 = vlaneseq
        %v2163 = vshrl.u32 %v2162, 7
        %v2164 = vsub.s32 0, %v2163
        %v2165 = vrot.slane %v2160, %v2164
        %v2167 = vmul.f32 %v2165, %v2156
        %v2168 = vmul.f32 %v2165, %v2157
        %v2169 = vmul.f32 %v2165, %v2158
        %v2170 = vmul.f32 %v2165, %v2159
        %v2171 = vadd.f32 %v790, %v2167
        %v2172 = vadd.f32 %v791, %v2168
        %v2173 = vadd.f32 %v792, %v2169
        %v2174 = vadd.f32 %v793, %v2170
        %v2175 = vpack.c.bf16 %v2172, %v2171
        %v2176 = vpack.c.bf16 %v2174, %v2173
        %v2179 = vunpack.c.l.b16 %v2175
        %v2180 = vunpack.c.h.b16 %v2175
        %v2181 = vunpack.c.l.b16 %v2176
        %v2182 = vunpack.c.h.b16 %v2176
        %v2183 = vpack.c.b16 %v2179, %v2179
        %v2184 = vpack.c.b16 %v2180, %v2180
        %v2185 = vpack.c.b16 %v2181, %v2181
        %v2186 = vpack.c.b16 %v2182, %v2182
        %vm2191 = vcmask 257024
        %2192 = vst.msk [vmem:[%s695] sm:$0xf] %vm2191, %v2183
        %2193 = vst.msk [vmem:[%s695 + $0x4] sm:$0xf] %vm2191, %v2184
        %2194 = vst.msk [vmem:[%s695 + $0x8] sm:$0xf] %vm2191, %v2185
        %2195 = vst.msk [vmem:[%s695 + $0xc] sm:$0xf] %vm2191, %v2186
        %p2196 = scmp.eq.s32.totalorder %s40, 1
        // Predicated region
        $region101: #{tpu_custom_call.1} parent=95 // pred_check
          %p2197 = pneg %p2196
        $region102: #{tpu_custom_call.1} parent=95 // pred_check_branch
          %2199 = sbr.rel (%p2197) target = $region104
        $region103: #{tpu_custom_call.1} parent=95 // pred_region
          %v2200 = vld [vmem:[#allocation4] sm:$0xff]
          %v2201 = vld [vmem:[#allocation3] sm:$0xff]
          %v2202 = vrcp.pop %v2201
          %2204 = vset.pattern.permute.xlu0 0
          %2205 = vperm.xlu0 %2204, %v2202
          %v2206 = vpop.permute.xlu0 %2205
          %v2208 = vmul.f32 %v2200, %v2206
          %v2209 = vpack.c.bf16 %v2208, %v2208
          %v2210 = vld [vmem:[%s16] sm:$0xf]
          %v2211 = vld [vmem:[%s16 + $0x4] sm:$0xf]
          %v2212 = vld [vmem:[%s2092] sm:$0xff]
          %v2213 = vld [vmem:[%s2084] sm:$0xff]
          %v2214 = vrcp.pop %v2213
          %2216 = vset.pattern.permute.xlu0 0
          %2217 = vperm.xlu0 %2216, %v2214
          %v2218 = vpop.permute.xlu0 %2217
          %v2220 = vmul.f32 %v2212, %v2218
          %v2221 = vpack.c.bf16 %v2220, %v2220
          %s2222 = scalar_lea.vmem %s16, 8
          %v2223 = vld [vmem:[%s2222] sm:$0xf]
          %v2224 = vld [vmem:[%s2222 + $0x4] sm:$0xf]
          %v2227 = vunpack.c.l.b16 %v2223
          %v2228 = vunpack.c.l.b16 %v2224
          %v2229 = vpack.c.b16 %v2228, %v2227
          %v2232 = vsel %vm1146, %v2221, 0
          %2234 = vmatprep.subr.bf16.mxu0 0
          %2235 = vmatpush1.bf16.msra.mxu0 %v2229
          %2236 = vmatprep.subr.bf16.mxu0 0
          %2237 = vmatpush1.bf16.msra.mxu0 0
          %2238 = vmatprep.subr.bf16.mxu0 0
          %2239 = vmatpush1.bf16.msra.mxu0 0
          %2240 = vmatprep.subr.bf16.mxu0 0
          %2241 = vmatpush1.bf16.msra.mxu0 0
          %2242 = vmatprep.subr.bf16.mxu0 0
          %2243 = vmatpush1.bf16.msra.mxu0 0
          %2244 = vmatprep.subr.bf16.mxu0 0
          %2245 = vmatpush1.bf16.msra.mxu0 0
          %2246 = vmatprep.subr.bf16.mxu0 0
          %2247 = vmatpush1.bf16.msra.mxu0 0
          %2248 = vmatprep.subr.bf16.mxu0 0
          %2249 = vmatpush1.bf16.msra.mxu0 0
          %2250 = vmatprep.subr.bf16.mxu0 0
          %2251 = vmatpush1.bf16.msra.mxu0 0
          %2252 = vmatprep.subr.bf16.mxu0 0
          %2253 = vmatpush1.bf16.msra.mxu0 0
          %2254 = vmatprep.subr.bf16.mxu0 0
          %2255 = vmatpush1.bf16.msra.mxu0 0
          %2256 = vmatprep.subr.bf16.mxu0 0
          %2257 = vmatpush1.bf16.msra.mxu0 0
          %2258 = vmatprep.subr.bf16.mxu0 0
          %2259 = vmatpush1.bf16.msra.mxu0 0
          %2260 = vmatprep.subr.bf16.mxu0 0
          %2261 = vmatpush1.bf16.msra.mxu0 0
          %2262 = vmatprep.subr.bf16.mxu0 0
          %2263 = vmatpush1.bf16.msra.mxu0 0
          %2264 = vmatprep.subr.bf16.mxu0 0
          %2265 = vmatpush1.bf16.msra.mxu0 0
          %2266 = vmatprep.mubr.bf16.mxu0 0
          %2267 = vmatmul.mubr.bf16.gmra.mrb[0].mxu0 %v2232
          %v2268 = vpop.f32.mrb[0].mxu0
          %v2269 = vadd.f32 0.0, %v2268
          %v2270 = vpop.f32.mrb[0].mxu0
          %v2271 = vpop.f32.mrb[0].mxu0
          %v2272 = vpop.f32.mrb[0].mxu0
          %2273 = vdwg.mxu0
          %v2276 = vunpack.c.l.b16 %v2210
          %v2277 = vunpack.c.l.b16 %v2211
          %v2278 = vpack.c.b16 %v2277, %v2276
          %v2281 = vsel %vm1146, %v2209, 0
          %2283 = vmatprep.subr.bf16.mxu0 0
          %2284 = vmatpush1.bf16.msra.mxu0 %v2278
          %2285 = vmatprep.subr.bf16.mxu0 0
          %2286 = vmatpush1.bf16.msra.mxu0 0
          %2287 = vmatprep.subr.bf16.mxu0 0
          %2288 = vmatpush1.bf16.msra.mxu0 0
          %2289 = vmatprep.subr.bf16.mxu0 0
          %2290 = vmatpush1.bf16.msra.mxu0 0
          %2291 = vmatprep.subr.bf16.mxu0 0
          %2292 = vmatpush1.bf16.msra.mxu0 0
          %2293 = vmatprep.subr.bf16.mxu0 0
          %2294 = vmatpush1.bf16.msra.mxu0 0
          %2295 = vmatprep.subr.bf16.mxu0 0
          %2296 = vmatpush1.bf16.msra.mxu0 0
          %2297 = vmatprep.subr.bf16.mxu0 0
          %2298 = vmatpush1.bf16.msra.mxu0 0
          %2299 = vmatprep.subr.bf16.mxu0 0
          %2300 = vmatpush1.bf16.msra.mxu0 0
          %2301 = vmatprep.subr.bf16.mxu0 0
          %2302 = vmatpush1.bf16.msra.mxu0 0
          %2303 = vmatprep.subr.bf16.mxu0 0
          %2304 = vmatpush1.bf16.msra.mxu0 0
          %2305 = vmatprep.subr.bf16.mxu0 0
          %2306 = vmatpush1.bf16.msra.mxu0 0
          %2307 = vmatprep.subr.bf16.mxu0 0
          %2308 = vmatpush1.bf16.msra.mxu0 0
          %2309 = vmatprep.subr.bf16.mxu0 0
          %2310 = vmatpush1.bf16.msra.mxu0 0
          %2311 = vmatprep.subr.bf16.mxu0 0
          %2312 = vmatpush1.bf16.msra.mxu0 0
          %2313 = vmatprep.subr.bf16.mxu0 0
          %2314 = vmatpush1.bf16.msra.mxu0 0
          %2315 = vmatprep.mubr.bf16.mxu0 0
          %2316 = vmatmul.mubr.bf16.gmra.mrb[0].mxu0 %v2281
          %v2317 = vpop.f32.mrb[0].mxu0
          %v2318 = vadd.f32 %v2269, %v2317
          %v2319 = vpop.f32.mrb[0].mxu0
          %v2320 = vpop.f32.mrb[0].mxu0
          %v2321 = vpop.f32.mrb[0].mxu0
          %2322 = vdwg.mxu0
          %v2323 = vld [vmem:[%s17] sm:$0x1]
          %v2325 = vlaneseq
          %v2326 = vshrl.u32 %v2325, 7
          %v2327 = vsub.s32 0, %v2326
          %v2328 = vrot.slane %v2323, %v2327
          %v2330 = vadd.f32 %v2318, %v2328
          %v2331 = vpack.c.bf16 %v2330, %v2330
          %2332 = vst.msk [vmem:[%s672] sm:$0xf] %vm2191, %v2331
        $region104: #{tpu_custom_call.1} parent=95 // pred_fallthru
          _
        %s2333 = smul.u32 4, %s40
        %p2334 = scmp.lt.s32.totalorder %s39, 1
        %s2335 = scalar_select %p2334, %s39, 1
        %p2336 = scmp.lt.s32.totalorder %s2333, 7
        %s2337 = scalar_select %p2336, %s2333, 7
        %s2338 = smul.addr %s2335, 8
        %s2339 = sadd.s32 %s2337, %s2338
        %s2340 = smul.addr %s2339, 4
        %s2341 = scalar_lea.vmem %s19, %s2340
        %s2342 = sand.u32 %s494, 1
        %s2343 = scalar_lea.sflag [#allocation6], %s2342
        %s2344 = sand.u32 %s494, 1
        %s2345 = smul.addr %s2344, 4
        %s2346 = scalar_lea.vmem [#allocation5], %s2345
        // Predicated region
        $region105: #{tpu_custom_call.1} parent=95 // pred_check
          %p2347 = pneg %p478
        $region106: #{tpu_custom_call.1} parent=95 // pred_check_branch
          %2349 = sbr.rel (%p2347) target = $region108
        $region107: #{tpu_custom_call.1} parent=95 // pred_region
          %s2350 = smul.u32 4, %s40
        $region108: #{tpu_custom_call.1} parent=95 // pred_fallthru
          _
        // Predicated region
        $region109: #{tpu_custom_call.1} parent=95 // pred_check
          %p2351 = pneg %p504
        $region110: #{tpu_custom_call.1} parent=95 // pred_check_branch
          %2353 = sbr.rel (%p2351) target = $region112
        $region111: #{tpu_custom_call.1} parent=95 // pred_region
          %s2355 = ssub.s32 64, 64
          %2356 = vsyncadd %s2343, %s2355
          %s2357 = smul.addr %s39, 64
          %s2358 = scalar_lea.hbm %s20, %s2357
          %s2360 = sshll.u32 %s2346, 4
          %s2361 = int_to_ptr.vmem [resolvable:$true] %s2360
          %2363 = dma.vmem_to_hbm [thread:$0]  %s2361, 64, %s2358, %s2343
        $region112: #{tpu_custom_call.1} parent=95 // pred_fallthru
          _
      $region96: #{tpu_custom_call.1} parent=5 // pred_fallthru
        _
      %p2364 = scmp.le.s32.totalorder 2, %s30
      // Predicated region
      $region113: #{tpu_custom_call.1} parent=5 // pred_check
        %p2365 = pneg %p2364
      $region114: #{tpu_custom_call.1} parent=5 // pred_check_branch
        %2367 = sbr.rel (%p2365) target = $region116
      $region115: #{tpu_custom_call.1} parent=5 // pred_region
        %s2368 = ssub.s32 %s30, 2
        // Predicated region
        $region117: #{tpu_custom_call.1} parent=115 // pred_check
          %p2369 = pneg %p484
        $region118: #{tpu_custom_call.1} parent=115 // pred_check_branch
          %2371 = sbr.rel (%p2369) target = $region120
        $region119: #{tpu_custom_call.1} parent=115 // pred_region
          %s2372 = smul.u32 4, %s42
          %p2373 = scmp.lt.s32.totalorder %s41, 1
          %s2374 = scalar_select %p2373, %s41, 1
          %p2375 = scmp.lt.s32.totalorder %s2372, 7
          %s2376 = scalar_select %p2375, %s2372, 7
          %s2377 = smul.addr %s2374, 8
          %s2378 = sadd.s32 %s2376, %s2377
          %s2379 = smul.addr %s2378, 4
          %s2380 = scalar_lea.vmem %s19, %s2379
        $region120: #{tpu_custom_call.1} parent=115 // pred_fallthru
          _
        // Predicated region
        $region121: #{tpu_custom_call.1} parent=115 // pred_check
          %p2381 = pneg %p510
        $region122: #{tpu_custom_call.1} parent=115 // pred_check_branch
          %2383 = sbr.rel (%p2381) target = $region124
        $region123: #{tpu_custom_call.1} parent=115 // pred_region
          %s2384 = sand.u32 %s495, 1
          %s2385 = scalar_lea.sflag [#allocation6], %s2384
          %s2386 = sand.u32 %s495, 1
          %s2387 = smul.addr %s2386, 4
          %s2388 = scalar_lea.vmem [#allocation5], %s2387
          %2389 = dma.done %s2385, 64
        $region124: #{tpu_custom_call.1} parent=115 // pred_fallthru
          _
      $region116: #{tpu_custom_call.1} parent=5 // pred_fallthru
        _
    $region6: #{tpu_custom_call.1} parent=1 // loop_footer
      %s34 = sadd.s32 1, %s30
    $region7: #{tpu_custom_call.1} parent=1 // loop_footer_branch
      %29 = sbr.rel target = $region3
    $region8: #{tpu_custom_call.1} parent=1 // loop_exit
      _
    %2390 = vsyncpa [#allocation6], 1
    %s2391 = scalar_lea.sflag [#allocation6], 1
    %2392 = vsyncpa %s2391, 1

</llo_original>
